<compile_context>
chip_gen: v5e
topology: v5e:2x2
jax: 0.10.0
libtpu: 0.0.40
codegen_flags: <defaults>
</compile_context>

<pallas_src>
import functools

import jax
import jax.numpy as jnp
from jax.experimental import pallas as pl
from jax.experimental.pallas import tpu as pltpu

ACTION_SIZE = 3
D_IN, D_H1, D_H2, D_H3, D_OUT = 81, 512, 512, 256, ACTION_SIZE
D_IN_PAD = 128     # lane-dense input width  (81 zero-padded to 128)
D_OUT_PAD = 128    # lane-dense output width (3 zero-padded to 128)

# Trace-time cost model used only to pick the batch tile.
_STEP_OVERHEAD_US = 0.35        # fixed per-grid-step pipeline overhead
_MXU_US_PER_128_ROWS = 0.15     # ~125 MFLOP per 128 rows on a v6e-class MXU


def _round_up(n, m):
    return ((n + m - 1) // m) * m


def _choose_tile(batch, batch_tile):
    """Pick (tb, b_pad): batch tile (multiple of 128 rows) and padded batch.

    Minimizes  n_steps * step_overhead + padded_rows * mxu_time  subject to
    tb <= batch_tile, and keeps >= 2 grid steps when there is enough work so
    the "parallel" batch axis can shard across both v7x TensorCores.
    """
    b_min = _round_up(max(batch, 1), 128)       # bf16-sublane / MXU-M friendly
    m = b_min // 128
    max_units = max(1, min(batch_tile // 128, m))
    if m >= 2:                                   # leave work for the 2nd TC (v7x)
        max_units = min(max_units, max(1, (m + 1) // 2))
    best_units, best_cost = 1, None
    for u in range(1, max_units + 1):
        steps = -(-m // u)
        cost = steps * _STEP_OVERHEAD_US + steps * u * _MXU_US_PER_128_ROWS
        if best_cost is None or cost < best_cost:
            best_units, best_cost = u, cost
    tb = 128 * best_units
    b_pad = _round_up(b_min, tb)
    return tb, b_pad


def _mlp_kernel(x_ref,
                w1_ref, b1_ref,
                w2_ref, b2_ref,
                w3_ref, b3_ref,
                w4_ref, b4_ref,
                o_ref):
    # bf16 operands -> MXU, f32 accumulation; bias-add / ReLU in f32 on the VPU.
    x = x_ref[...]                                                    # bf16 [tb, 128]
    h = jnp.dot(x, w1_ref[...], preferred_element_type=jnp.float32) + b1_ref[...]
    h = jnp.maximum(h, 0.0).astype(jnp.bfloat16)
    h = jnp.dot(h, w2_ref[...], preferred_element_type=jnp.float32) + b2_ref[...]
    h = jnp.maximum(h, 0.0).astype(jnp.bfloat16)
    h = jnp.dot(h, w3_ref[...], preferred_element_type=jnp.float32) + b3_ref[...]
    h = jnp.maximum(h, 0.0).astype(jnp.bfloat16)
    out = jnp.dot(h, w4_ref[...], preferred_element_type=jnp.float32) + b4_ref[...]
    o_ref[...] = out.astype(o_ref.dtype)                              # f32 [tb, 128]


def _build_call(b_pad, tb):
    def pinned(shape):
        # Grid-invariant weight/bias blocks (same (0,0) tile every step).
        return pl.BlockSpec(shape, lambda i: (0, 0))

    grid_spec = pltpu.PrefetchScalarGridSpec(
        num_scalar_prefetch=0,
        grid=(b_pad // tb,),
        in_specs=[
            pl.BlockSpec((tb, D_IN_PAD), lambda i: (i, 0)),
            pinned((D_IN_PAD, D_H1)), pinned((1, D_H1)),
            pinned((D_H1, D_H2)), pinned((1, D_H2)),
            pinned((D_H2, D_H3)), pinned((1, D_H3)),
            pinned((D_H3, D_OUT_PAD)), pinned((1, D_OUT_PAD)),
        ],
        out_specs=pl.BlockSpec((tb, D_OUT_PAD), lambda i: (i, 0)),
    )

    flops = 2 * b_pad * (D_IN_PAD * D_H1 + D_H1 * D_H2 +
                         D_H2 * D_H3 + D_H3 * D_OUT_PAD)
    weight_bytes = 2 * (D_IN_PAD * D_H1 + D_H1 * D_H2 +
                        D_H2 * D_H3 + D_H3 * D_OUT_PAD)          # bf16 weights
    bias_bytes = 4 * (D_H1 + D_H2 + D_H3 + D_OUT_PAD)            # f32 biases
    bytes_accessed = (b_pad * D_IN_PAD * 2 + b_pad * D_OUT_PAD * 4
                      + weight_bytes + bias_bytes)
    cost = pl.CostEstimate(flops=flops, transcendentals=0,
                           bytes_accessed=bytes_accessed)

    return pl.pallas_call(
        _mlp_kernel,
        out_shape=jax.ShapeDtypeStruct((b_pad, D_OUT_PAD), jnp.float32),
        grid_spec=grid_spec,
        cost_estimate=cost,
        compiler_params=pltpu.CompilerParams(
            dimension_semantics=("parallel",),
            vmem_limit_bytes=32 * 1024 * 1024,   # ~1 MB weights + <=1 MB tiles/step
            # Let XLA fuse the 81->128 pad + bf16 cast of x into the pallas
            # call instead of materializing the padded input in HBM.
            allow_input_fusion=[True] + [False] * 8,
        ),
    )


@functools.partial(jax.jit, static_argnames=("batch_tile",))
def _forward_impl(x, packed_params, *, batch_tile):
    B = x.shape[0]
    tb, b_pad = _choose_tile(B, batch_tile)

    # Lane-dense, bf16 input tile (zero-pad features 81 -> 128, batch -> b_pad).
    xp = jnp.zeros((b_pad, D_IN_PAD), jnp.bfloat16)
    xp = xp.at[:B, :D_IN].set(x.astype(jnp.bfloat16))

    out = _build_call(b_pad, tb)(
        xp,
        packed_params["w1"], packed_params["b1"],
        packed_params["w2"], packed_params["b2"],
        packed_params["w3"], packed_params["b3"],
        packed_params["w4"], packed_params["b4"])
    return out[:B, :D_OUT]


def vec_model_forward(x, packed_params, *, batch_tile=1024):
    """VecModel forward.  x: [B, 81] float.  Returns [B, 3] float32."""
    return _forward_impl(x, packed_params, batch_tile=batch_tile)


def init_params(key):
    """Torch-default-style init (U[-1/sqrt(fan_in), 1/sqrt(fan_in)]).
    Weights stored as [in_features, out_features], f32."""
    dims = [(D_IN, D_H1), (D_H1, D_H2), (D_H2, D_H3), (D_H3, D_OUT)]
    params = {}
    for idx, (fan_in, fan_out) in enumerate(dims, start=1):
        key, kw, kb = jax.random.split(key, 3)
        bound = 1.0 / (fan_in ** 0.5)
        params[f"w{idx}"] = jax.random.uniform(
            kw, (fan_in, fan_out), jnp.float32, minval=-bound, maxval=bound)
        params[f"b{idx}"] = jax.random.uniform(
            kb, (1, fan_out), jnp.float32, minval=-bound, maxval=bound)
    return params


def pack_params(params):
    """Pad to lane-dense shapes and cast weights to bf16 (biases stay f32)."""
    w1 = jnp.zeros((D_IN_PAD, D_H1), jnp.bfloat16).at[:D_IN, :].set(
        params["w1"].astype(jnp.bfloat16))
    w4 = jnp.zeros((D_H3, D_OUT_PAD), jnp.bfloat16).at[:, :D_OUT].set(
        params["w4"].astype(jnp.bfloat16))
    b4 = jnp.zeros((1, D_OUT_PAD), jnp.float32).at[:, :D_OUT].set(
        params["b4"].astype(jnp.float32))
    return {
        "w1": w1,
        "b1": params["b1"].astype(jnp.float32),
        "w2": params["w2"].astype(jnp.bfloat16),
        "b2": params["b2"].astype(jnp.float32),
        "w3": params["w3"].astype(jnp.bfloat16),
        "b3": params["b3"].astype(jnp.float32),
        "w4": w4,
        "b4": b4,
    }


def reference_forward(x, params):
    """Pure-JAX reference mirroring the kernel's bf16-matmul / f32-accumulate path."""
    def lin(h, w, b):
        return jnp.dot(h.astype(jnp.bfloat16), w.astype(jnp.bfloat16),
                       preferred_element_type=jnp.float32) + b
    h = jnp.maximum(lin(x, params["w1"], params["b1"]), 0.0)
    h = jnp.maximum(lin(h, params["w2"], params["b2"]), 0.0)
    h = jnp.maximum(lin(h, params["w3"], params["b3"]), 0.0)
    return lin(h, params["w4"], params["b4"])


if __name__ == "__main__":
    key = jax.random.PRNGKey(0)
    k_params, k_x1, k_x2 = jax.random.split(key, 3)

    params = init_params(k_params)
    packed = pack_params(params)

    # Two small cases: single grid step (B=8) and multi-step grid with a
    # non-tile-multiple batch (B=300 -> tb=256, 2 steps).
    for batch, kx in ((8, k_x1), (300, k_x2)):
        x = jax.random.normal(kx, (batch, D_IN), dtype=jnp.float32)
        out = jax.block_until_ready(vec_model_forward(x, packed))
        ref = reference_forward(x, params)
        assert out.shape == (batch, ACTION_SIZE)
        err = float(jnp.max(jnp.abs(out - ref)))
        assert jnp.allclose(out, ref, atol=1e-2, rtol=1e-2), err

    print("KERNEL_OK")
</pallas_src>

<mosaic_0001>
module attributes {stable_mosaic.version = 11 : i64} {
  func.func @_mlp_kernel(%arg0: i32, %arg1: memref<128x128xbf16, #tpu.memory_space<vmem>>, %arg2: memref<128x512xbf16, #tpu.memory_space<vmem>>, %arg3: memref<1x512xf32, #tpu.memory_space<vmem>>, %arg4: memref<512x512xbf16, #tpu.memory_space<vmem>>, %arg5: memref<1x512xf32, #tpu.memory_space<vmem>>, %arg6: memref<512x256xbf16, #tpu.memory_space<vmem>>, %arg7: memref<1x256xf32, #tpu.memory_space<vmem>>, %arg8: memref<256x128xbf16, #tpu.memory_space<vmem>>, %arg9: memref<1x128xf32, #tpu.memory_space<vmem>>, %arg10: memref<128x128xf32, #tpu.memory_space<vmem>>) attributes {dimension_semantics = [#tpu.dimension_semantics<parallel>], iteration_bounds = array<i64: 1>, scalar_prefetch = 0 : i64, scratch_operands = 0 : i64, tpu.core_type = #tpu.core_type<tc>, window_params = [{transform_indices = @transform_0, window_bounds = array<i64: 128, 128>}, {pipeline_mode = #tpu.pipeline_mode<synchronous>, transform_indices = @transform_1, window_bounds = array<i64: 128, 512>}, {pipeline_mode = #tpu.pipeline_mode<synchronous>, transform_indices = @transform_2, window_bounds = array<i64: 1, 512>}, {pipeline_mode = #tpu.pipeline_mode<synchronous>, transform_indices = @transform_3, window_bounds = array<i64: 512, 512>}, {pipeline_mode = #tpu.pipeline_mode<synchronous>, transform_indices = @transform_4, window_bounds = array<i64: 1, 512>}, {pipeline_mode = #tpu.pipeline_mode<synchronous>, transform_indices = @transform_5, window_bounds = array<i64: 512, 256>}, {pipeline_mode = #tpu.pipeline_mode<synchronous>, transform_indices = @transform_6, window_bounds = array<i64: 1, 256>}, {pipeline_mode = #tpu.pipeline_mode<synchronous>, transform_indices = @transform_7, window_bounds = array<i64: 256, 128>}, {pipeline_mode = #tpu.pipeline_mode<synchronous>, transform_indices = @transform_8, window_bounds = array<i64: 1, 128>}, {transform_indices = @transform_9, window_bounds = array<i64: 128, 128>}]} {
    %c0 = arith.constant 0 : index
    %c0_0 = arith.constant 0 : index
    %0 = vector.load %arg1[%c0, %c0_0] : memref<128x128xbf16, #tpu.memory_space<vmem>>, vector<128x128xbf16>
    %c0_1 = arith.constant 0 : index
    %c0_2 = arith.constant 0 : index
    %1 = vector.load %arg2[%c0_1, %c0_2] : memref<128x512xbf16, #tpu.memory_space<vmem>>, vector<128x512xbf16>
    %cst = arith.constant dense<0.000000e+00> : vector<128x512xf32>
    %2 = tpu.matmul %0, %1, %cst {dimension_numbers = #tpu.dot_dimension_numbers<[1], [0], [0], [1], [0, 0, 1, 1], [], []>} : vector<128x128xbf16>, vector<128x512xbf16>, vector<128x512xf32> -> vector<128x512xf32>
    %c0_3 = arith.constant 0 : index
    %c0_4 = arith.constant 0 : index
    %3 = vector.load %arg3[%c0_3, %c0_4] : memref<1x512xf32, #tpu.memory_space<vmem>>, vector<1x512xf32>
    %4 = vector.broadcast %3 : vector<1x512xf32> to vector<128x512xf32>
    %5 = arith.addf %2, %4 : vector<128x512xf32>
    %cst_5 = arith.constant 0.000000e+00 : f32
    %6 = vector.broadcast %cst_5 : f32 to vector<128x512xf32>
    %7 = arith.maximumf %5, %6 : vector<128x512xf32>
    %8 = arith.truncf %7 : vector<128x512xf32> to vector<128x512xbf16>
    %c0_6 = arith.constant 0 : index
    %c0_7 = arith.constant 0 : index
    %9 = vector.load %arg4[%c0_6, %c0_7] : memref<512x512xbf16, #tpu.memory_space<vmem>>, vector<512x512xbf16>
    %cst_8 = arith.constant dense<0.000000e+00> : vector<128x512xf32>
    %10 = tpu.matmul %8, %9, %cst_8 {dimension_numbers = #tpu.dot_dimension_numbers<[1], [0], [0], [1], [0, 0, 1, 1], [], []>} : vector<128x512xbf16>, vector<512x512xbf16>, vector<128x512xf32> -> vector<128x512xf32>
    %c0_9 = arith.constant 0 : index
    %c0_10 = arith.constant 0 : index
    %11 = vector.load %arg5[%c0_9, %c0_10] : memref<1x512xf32, #tpu.memory_space<vmem>>, vector<1x512xf32>
    %12 = vector.broadcast %11 : vector<1x512xf32> to vector<128x512xf32>
    %13 = arith.addf %10, %12 : vector<128x512xf32>
    %cst_11 = arith.constant 0.000000e+00 : f32
    %14 = vector.broadcast %cst_11 : f32 to vector<128x512xf32>
    %15 = arith.maximumf %13, %14 : vector<128x512xf32>
    %16 = arith.truncf %15 : vector<128x512xf32> to vector<128x512xbf16>
    %c0_12 = arith.constant 0 : index
    %c0_13 = arith.constant 0 : index
    %17 = vector.load %arg6[%c0_12, %c0_13] : memref<512x256xbf16, #tpu.memory_space<vmem>>, vector<512x256xbf16>
    %cst_14 = arith.constant dense<0.000000e+00> : vector<128x256xf32>
    %18 = tpu.matmul %16, %17, %cst_14 {dimension_numbers = #tpu.dot_dimension_numbers<[1], [0], [0], [1], [0, 0, 1, 1], [], []>} : vector<128x512xbf16>, vector<512x256xbf16>, vector<128x256xf32> -> vector<128x256xf32>
    %c0_15 = arith.constant 0 : index
    %c0_16 = arith.constant 0 : index
    %19 = vector.load %arg7[%c0_15, %c0_16] : memref<1x256xf32, #tpu.memory_space<vmem>>, vector<1x256xf32>
    %20 = vector.broadcast %19 : vector<1x256xf32> to vector<128x256xf32>
    %21 = arith.addf %18, %20 : vector<128x256xf32>
    %cst_17 = arith.constant 0.000000e+00 : f32
    %22 = vector.broadcast %cst_17 : f32 to vector<128x256xf32>
    %23 = arith.maximumf %21, %22 : vector<128x256xf32>
    %24 = arith.truncf %23 : vector<128x256xf32> to vector<128x256xbf16>
    %c0_18 = arith.constant 0 : index
    %c0_19 = arith.constant 0 : index
    %25 = vector.load %arg8[%c0_18, %c0_19] : memref<256x128xbf16, #tpu.memory_space<vmem>>, vector<256x128xbf16>
    %cst_20 = arith.constant dense<0.000000e+00> : vector<128x128xf32>
    %26 = tpu.matmul %24, %25, %cst_20 {dimension_numbers = #tpu.dot_dimension_numbers<[1], [0], [0], [1], [0, 0, 1, 1], [], []>} : vector<128x256xbf16>, vector<256x128xbf16>, vector<128x128xf32> -> vector<128x128xf32>
    %c0_21 = arith.constant 0 : index
    %c0_22 = arith.constant 0 : index
    %27 = vector.load %arg9[%c0_21, %c0_22] : memref<1x128xf32, #tpu.memory_space<vmem>>, vector<1x128xf32>
    %28 = vector.broadcast %27 : vector<1x128xf32> to vector<128x128xf32>
    %29 = arith.addf %26, %28 : vector<128x128xf32>
    %c0_23 = arith.constant 0 : index
    %c0_24 = arith.constant 0 : index
    %30 = vector.load %arg10[%c0_23, %c0_24] : memref<128x128xf32, #tpu.memory_space<vmem>>, vector<128x128xf32>
    tpu.vector_store %arg10[%c0_23, %c0_24], %29 {strides = array<i32>} : memref<128x128xf32, #tpu.memory_space<vmem>>, vector<128x128xf32>,
    return
  }
  func.func @transform_0(%arg0: i32) -> (i32, i32) {
    %c0_i32 = arith.constant 0 : i32
    %c0_i32_0 = arith.constant 0 : i32
    return %arg0, %c0_i32 : i32, i32
  }
  func.func @transform_1(%arg0: i32) -> (i32, i32) {
    %c0_i32 = arith.constant 0 : i32
    %c0_i32_0 = arith.constant 0 : i32
    %c0_i32_1 = arith.constant 0 : i32
    return %c0_i32, %c0_i32_0 : i32, i32
  }
  func.func @transform_2(%arg0: i32) -> (i32, i32) {
    %c0_i32 = arith.constant 0 : i32
    %c0_i32_0 = arith.constant 0 : i32
    %c0_i32_1 = arith.constant 0 : i32
    return %c0_i32, %c0_i32_0 : i32, i32
  }
  func.func @transform_3(%arg0: i32) -> (i32, i32) {
    %c0_i32 = arith.constant 0 : i32
    %c0_i32_0 = arith.constant 0 : i32
    %c0_i32_1 = arith.constant 0 : i32
    return %c0_i32, %c0_i32_0 : i32, i32
  }
  func.func @transform_4(%arg0: i32) -> (i32, i32) {
    %c0_i32 = arith.constant 0 : i32
    %c0_i32_0 = arith.constant 0 : i32
    %c0_i32_1 = arith.constant 0 : i32
    return %c0_i32, %c0_i32_0 : i32, i32
  }
  func.func @transform_5(%arg0: i32) -> (i32, i32) {
    %c0_i32 = arith.constant 0 : i32
    %c0_i32_0 = arith.constant 0 : i32
    %c0_i32_1 = arith.constant 0 : i32
    return %c0_i32, %c0_i32_0 : i32, i32
  }
  func.func @transform_6(%arg0: i32) -> (i32, i32) {
    %c0_i32 = arith.constant 0 : i32
    %c0_i32_0 = arith.constant 0 : i32
    %c0_i32_1 = arith.constant 0 : i32
    return %c0_i32, %c0_i32_0 : i32, i32
  }
  func.func @transform_7(%arg0: i32) -> (i32, i32) {
    %c0_i32 = arith.constant 0 : i32
    %c0_i32_0 = arith.constant 0 : i32
    %c0_i32_1 = arith.constant 0 : i32
    return %c0_i32, %c0_i32_0 : i32, i32
  }
  func.func @transform_8(%arg0: i32) -> (i32, i32) {
    %c0_i32 = arith.constant 0 : i32
    %c0_i32_0 = arith.constant 0 : i32
    %c0_i32_1 = arith.constant 0 : i32
    return %c0_i32, %c0_i32_0 : i32, i32
  }
  func.func @transform_9(%arg0: i32) -> (i32, i32) {
    %c0_i32 = arith.constant 0 : i32
    %c0_i32_0 = arith.constant 0 : i32
    return %arg0, %c0_i32 : i32, i32
  }
}

</mosaic_0001>

<llo_original>
// kernel: _forward_impl.2
$region0: #{_forward_impl.2}
  #allocation0 [shape = 'u32[]', space=smem, size = 0x4, offset = 0x4, fixed_abs, tag = 'smem constant byte address 0x4 - core index']
  #allocation1 [shape = 'u32[72,128]{1,0:T(1,128)}', space=vmem, size = 0x9000, scoped, tag = 'internal scratch']
  #allocation2 [shape = 'u32[2048]{0}', space=vmem, size = 0x2000, scoped, tag = 'scoped memory for _forward_impl.2']
  #allocation3 [shape = 'u32[2048]{0}', space=vmem, size = 0x2000, scoped, tag = 'scoped memory for _forward_impl.2']
  #allocation4 [shape = 'u32[2048]{0}', space=vmem, size = 0x2000, scoped, tag = 'scoped memory for _forward_impl.2']
  #allocation5 [shape = 'u32[2048]{0}', space=vmem, size = 0x2000, scoped, tag = 'scoped memory for _forward_impl.2']
  #allocation6 [shape = 'u32[2048]{0}', space=vmem, size = 0x2000, scoped, tag = 'scoped memory for _forward_impl.2']
  %s0 = inlined_call_operand.hbm [shape: bf16[128,512], index: 0, kind: input, shape index: {}]
  %s1 = inlined_call_operand.vmem [shape: f32[1,512], index: 1, kind: input, shape index: {}]
  %s2 = inlined_call_operand.hbm [shape: bf16[512,512], index: 2, kind: input, shape index: {}]
  %s3 = inlined_call_operand.vmem [shape: f32[1,512], index: 3, kind: input, shape index: {}]
  %s4 = inlined_call_operand.hbm [shape: bf16[512,256], index: 4, kind: input, shape index: {}]
  %s5 = inlined_call_operand.vmem [shape: f32[1,256], index: 5, kind: input, shape index: {}]
  %s6 = inlined_call_operand.hbm [shape: bf16[256,128], index: 6, kind: input, shape index: {}]
  %s7 = inlined_call_operand.vmem [shape: f32[1,128], index: 7, kind: input, shape index: {}]
  %s8 = inlined_call_operand.vmem [shape: bf16[8,81], index: 8, kind: input, shape index: {}]
  %s9 = inlined_call_operand.<no memory space> [shape: bf16[], index: 9, kind: input, shape index: {}]
  %s10 = inlined_call_operand.vmem [shape: f32[128,128], index: 10, kind: output, shape index: {}]
  %s11 = sld [smem:[#allocation0]]
  $region62: #{_forward_impl.2} parent=0
    _
  %s13 = ssub.s32 1, %s11
  %s14 = scalar_select 0, %s13, %s11
  %v15 = vstv %s9
  %v16 = vunpack.i.l.bf16 %v15
  %v18 = vunpack.i.h.bf16 %v15
  $region1: #{_forward_impl.2} parent=0
    #allocation7 [shape = 'u8[131072]{0}', space=vmem, size = 0x20000, scoped, tag = 'input window, operand 1, single buffered']
    #allocation8 [shape = 's32[1]{0}', space=sflag, size = 0x4, scoped, tag = 'scoped memory for _forward_impl.2']
    #allocation9 [shape = 'u8[524288]{0}', space=vmem, size = 0x80000, scoped, tag = 'input window, operand 3, single buffered']
    #allocation10 [shape = 's32[1]{0}', space=sflag, size = 0x4, scoped, tag = 'scoped memory for _forward_impl.2']
    #allocation11 [shape = 'u8[262144]{0}', space=vmem, size = 0x40000, scoped, tag = 'input window, operand 5, single buffered']
    #allocation12 [shape = 'u8[65536]{0}', space=vmem, size = 0x10000, scoped, tag = 'input window, operand 7, single buffered']
    #allocation13 [shape = 's32[1]{0}', space=sflag, size = 0x4, scoped, tag = 'scoped memory for _forward_impl.2']
    #allocation14 [shape = 'u8[32768]{0}', space=vmem, size = 0x8000, dematerialized = true, scoped, tag = 'FusionAdapter Buffer %fusion.1 = bf16[128,128]{1,0:T(8,128)(2,1)} fusion(%param_8.1, %param_9), kind=kLoop, calls=%fused_computation.1.clone, metadata={op_name="jit(_forward_impl)/scatter" stack_frame_id=10}']
    %20 = vsyncpa [#allocation8], 0
    %21 = vsyncpa [#allocation10], 0
    %22 = vsyncpa [#allocation13], 0
    // Predicated region
    $region2: #{_forward_impl.2} parent=1 // pred_check
      _
    $region3: #{_forward_impl.2} parent=1 // pred_check_branch
      %24 = sbr.rel (0) target = $region5
    $region4: #{_forward_impl.2} parent=1 // pred_region
      _
    $region5: #{_forward_impl.2} parent=1 // pred_fallthru
      _
    // Predicated region
    $region6: #{_forward_impl.2} parent=1 // pred_check
      _
    $region7: #{_forward_impl.2} parent=1 // pred_check_branch
      %26 = sbr.rel (0) target = $region9
    $region8: #{_forward_impl.2} parent=1 // pred_region
      %28 = vsyncadd [#allocation8], 0
      %s29 = sshll.u32 %s0, 4
      %s30 = int_to_ptr.hbm [resolvable:$true] %s29
      %s31 = sshll.u32 [#allocation7], 4
      %s32 = int_to_ptr.vmem [resolvable:$true] %s31
      %37 = dma.hbm_to_vmem [thread:$0]  %s30, 4096, %s32, [#allocation8], 256, 256, 16
    $region9: #{_forward_impl.2} parent=1 // pred_fallthru
      _
    // Predicated region
    $region10: #{_forward_impl.2} parent=1 // pred_check
      _
    $region11: #{_forward_impl.2} parent=1 // pred_check_branch
      %39 = sbr.rel (0) target = $region13
    $region12: #{_forward_impl.2} parent=1 // pred_region
      _
    $region13: #{_forward_impl.2} parent=1 // pred_fallthru
      _
    // Predicated region
    $region14: #{_forward_impl.2} parent=1 // pred_check
      _
    $region15: #{_forward_impl.2} parent=1 // pred_check_branch
      %41 = sbr.rel (0) target = $region17
    $region16: #{_forward_impl.2} parent=1 // pred_region
      %43 = vsyncadd [#allocation10], 0
      %s44 = sshll.u32 %s2, 4
      %s45 = int_to_ptr.hbm [resolvable:$true] %s44
      %s46 = sshll.u32 [#allocation9], 4
      %s47 = int_to_ptr.vmem [resolvable:$true] %s46
      %52 = dma.hbm_to_vmem [thread:$0]  %s45, 16384, %s47, [#allocation10], 256, 256, 16
    $region17: #{_forward_impl.2} parent=1 // pred_fallthru
      _
    // Predicated region
    $region18: #{_forward_impl.2} parent=1 // pred_check
      _
    $region19: #{_forward_impl.2} parent=1 // pred_check_branch
      %54 = sbr.rel (0) target = $region21
    $region20: #{_forward_impl.2} parent=1 // pred_region
      _
    $region21: #{_forward_impl.2} parent=1 // pred_fallthru
      _
    // Predicated region
    $region22: #{_forward_impl.2} parent=1 // pred_check
      _
    $region23: #{_forward_impl.2} parent=1 // pred_check_branch
      %56 = sbr.rel (0) target = $region25
    $region24: #{_forward_impl.2} parent=1 // pred_region
      %58 = vsyncadd [#allocation10], 0
      %s59 = sshll.u32 %s4, 4
      %s60 = int_to_ptr.hbm [resolvable:$true] %s59
      %s61 = sshll.u32 [#allocation11], 4
      %s62 = int_to_ptr.vmem [resolvable:$true] %s61
      %67 = dma.hbm_to_vmem [thread:$0]  %s60, 8192, %s62, [#allocation10], 128, 128, 8
    $region25: #{_forward_impl.2} parent=1 // pred_fallthru
      _
    // Predicated region
    $region26: #{_forward_impl.2} parent=1 // pred_check
      _
    $region27: #{_forward_impl.2} parent=1 // pred_check_branch
      %69 = sbr.rel (0) target = $region29
    $region28: #{_forward_impl.2} parent=1 // pred_region
      _
    $region29: #{_forward_impl.2} parent=1 // pred_fallthru
      _
    // Predicated region
    $region30: #{_forward_impl.2} parent=1 // pred_check
      _
    $region31: #{_forward_impl.2} parent=1 // pred_check_branch
      %71 = sbr.rel (0) target = $region33
    $region32: #{_forward_impl.2} parent=1 // pred_region
      %73 = vsyncadd [#allocation13], 0
      %s74 = sshll.u32 %s6, 4
      %s75 = int_to_ptr.hbm [resolvable:$true] %s74
      %s76 = sshll.u32 [#allocation12], 4
      %s77 = int_to_ptr.vmem [resolvable:$true] %s76
      %82 = dma.hbm_to_vmem [thread:$0]  %s75, 2048, %s77, [#allocation13], 64, 64, 4
    $region33: #{_forward_impl.2} parent=1 // pred_fallthru
      _
    // Predicated region
    $region34: #{_forward_impl.2} parent=1 // pred_check
      _
    $region35: #{_forward_impl.2} parent=1 // pred_check_branch
      %84 = sbr.rel (0) target = $region37
    $region36: #{_forward_impl.2} parent=1 // pred_region
      _
    $region37: #{_forward_impl.2} parent=1 // pred_fallthru
      _
    // Predicated region
    $region38: #{_forward_impl.2} parent=1 // pred_check
      _
    $region39: #{_forward_impl.2} parent=1 // pred_check_branch
      %86 = sbr.rel (0) target = $region41
    $region40: #{_forward_impl.2} parent=1 // pred_region
      %88 = dma.done [#allocation8], 4096
    $region41: #{_forward_impl.2} parent=1 // pred_fallthru
      _
    // Predicated region
    $region42: #{_forward_impl.2} parent=1 // pred_check
      _
    $region43: #{_forward_impl.2} parent=1 // pred_check_branch
      %90 = sbr.rel (0) target = $region45
    $region44: #{_forward_impl.2} parent=1 // pred_region
      %92 = dma.done [#allocation10], 16384
    $region45: #{_forward_impl.2} parent=1 // pred_fallthru
      _
    // Predicated region
    $region46: #{_forward_impl.2} parent=1 // pred_check
      _
    $region47: #{_forward_impl.2} parent=1 // pred_check_branch
      %94 = sbr.rel (0) target = $region49
    $region48: #{_forward_impl.2} parent=1 // pred_region
      %96 = dma.done [#allocation10], 8192
    $region49: #{_forward_impl.2} parent=1 // pred_fallthru
      _
    // Predicated region
    $region50: #{_forward_impl.2} parent=1 // pred_check
      _
    $region51: #{_forward_impl.2} parent=1 // pred_check_branch
      %98 = sbr.rel (0) target = $region53
    $region52: #{_forward_impl.2} parent=1 // pred_region
      %100 = dma.done [#allocation13], 2048
    $region53: #{_forward_impl.2} parent=1 // pred_fallthru
      _
    %s102 = sor.u32 255, 127
    %s103 = sand.u32 %s102, 85
    %s104 = sshrl.u32 %s103, 1
    %s105 = sor.u32 %s103, %s104
    %s106 = sand.u32 51, %s105
    %s107 = sshrl.u32 %s106, 2
    %s108 = sor.u32 %s106, %s107
    %s109 = sand.u32 15, %s108
    %v110 = vld [vmem:[%s8] sm:%s109]
    %v111 = vunpack.c.l.bf16 %v110
    %v112 = vunpack.c.h.bf16 %v110
    %v113 = vlaneseq
    %v114 = vand.u32 %v113, 127
    %vm116 = vcmp.lt.s32.totalorder %v114, 81
    %v117 = vsel %vm116, %v111, %v16
    %v118 = vpack.c.bf16 0.0, %v117
    %s120 = ssub.s32 16, 1
    %121 = vst [vmem:[#allocation14] sm:%s120] %v118
    %s122 = scalar_lea.vmem [#allocation14], 4
    %v123 = vpack.c.bf16 0.0, %v16
    %s125 = ssub.s32 16, 1
    %126 = vst [vmem:[%s122] sm:%s125] %v123
    %s127 = scalar_lea.vmem [#allocation14], 8
    %v128 = vpack.c.bf16 0.0, %v16
    %s130 = ssub.s32 16, 1
    %131 = vst [vmem:[%s127] sm:%s130] %v128
    %s132 = scalar_lea.vmem [#allocation14], 12
    %v133 = vpack.c.bf16 0.0, %v16
    %s135 = ssub.s32 16, 1
    %136 = vst [vmem:[%s132] sm:%s135] %v133
    %s137 = scalar_lea.vmem [#allocation14], 16
    %v138 = vpack.c.bf16 0.0, %v16
    %s140 = ssub.s32 16, 1
    %141 = vst [vmem:[%s137] sm:%s140] %v138
    %s142 = scalar_lea.vmem [#allocation14], 20
    %v143 = vpack.c.bf16 0.0, %v16
    %s145 = ssub.s32 16, 1
    %146 = vst [vmem:[%s142] sm:%s145] %v143
    %s147 = scalar_lea.vmem [#allocation14], 24
    %v148 = vpack.c.bf16 0.0, %v16
    %s150 = ssub.s32 16, 1
    %151 = vst [vmem:[%s147] sm:%s150] %v148
    %s152 = scalar_lea.vmem [#allocation14], 28
    %v153 = vpack.c.bf16 0.0, %v16
    %s155 = ssub.s32 16, 1
    %156 = vst [vmem:[%s152] sm:%s155] %v153
    %s157 = scalar_lea.vmem [#allocation14], 32
    %v158 = vpack.c.bf16 0.0, %v16
    %s160 = ssub.s32 16, 1
    %161 = vst [vmem:[%s157] sm:%s160] %v158
    %s162 = scalar_lea.vmem [#allocation14], 36
    %v163 = vpack.c.bf16 0.0, %v16
    %s165 = ssub.s32 16, 1
    %166 = vst [vmem:[%s162] sm:%s165] %v163
    %s167 = scalar_lea.vmem [#allocation14], 40
    %v168 = vpack.c.bf16 0.0, %v16
    %s170 = ssub.s32 16, 1
    %171 = vst [vmem:[%s167] sm:%s170] %v168
    %s172 = scalar_lea.vmem [#allocation14], 44
    %v173 = vpack.c.bf16 0.0, %v16
    %s175 = ssub.s32 16, 1
    %176 = vst [vmem:[%s172] sm:%s175] %v173
    %s177 = scalar_lea.vmem [#allocation14], 48
    %v178 = vpack.c.bf16 0.0, %v16
    %s180 = ssub.s32 16, 1
    %181 = vst [vmem:[%s177] sm:%s180] %v178
    %s182 = scalar_lea.vmem [#allocation14], 52
    %v183 = vpack.c.bf16 0.0, %v16
    %s185 = ssub.s32 16, 1
    %186 = vst [vmem:[%s182] sm:%s185] %v183
    %s187 = scalar_lea.vmem [#allocation14], 56
    %v188 = vpack.c.bf16 0.0, %v16
    %s190 = ssub.s32 16, 1
    %191 = vst [vmem:[%s187] sm:%s190] %v188
    %s192 = scalar_lea.vmem [#allocation14], 60
    %v193 = vpack.c.bf16 0.0, %v16
    %s195 = ssub.s32 16, 1
    %196 = vst [vmem:[%s192] sm:%s195] %v193
    %v197 = vld [vmem:[#allocation14] sm:$0xf]
    %v198 = vld [vmem:[#allocation14 + $0x4] sm:$0xf]
    %v199 = vld [vmem:[#allocation14 + $0x8] sm:$0xf]
    %v200 = vld [vmem:[#allocation14 + $0xc] sm:$0xf]
    %v201 = vld [vmem:[#allocation14 + $0x10] sm:$0xf]
    %v202 = vld [vmem:[#allocation14 + $0x14] sm:$0xf]
    %v203 = vld [vmem:[#allocation14 + $0x18] sm:$0xf]
    %v204 = vld [vmem:[#allocation14 + $0x1c] sm:$0xf]
    %v205 = vld [vmem:[#allocation14 + $0x20] sm:$0xf]
    %v206 = vld [vmem:[#allocation14 + $0x24] sm:$0xf]
    %v207 = vld [vmem:[#allocation14 + $0x28] sm:$0xf]
    %v208 = vld [vmem:[#allocation14 + $0x2c] sm:$0xf]
    %v209 = vld [vmem:[#allocation14 + $0x30] sm:$0xf]
    %v210 = vld [vmem:[#allocation14 + $0x34] sm:$0xf]
    %v211 = vld [vmem:[#allocation14 + $0x38] sm:$0xf]
    %v212 = vld [vmem:[#allocation14 + $0x3c] sm:$0xf]
    %v213 = vld [vmem:[#allocation7] sm:$0xff]
    %v214 = vld [vmem:[#allocation7 + $0x8] sm:$0xff]
    %v215 = vld [vmem:[#allocation7 + $0x10] sm:$0xff]
    %v216 = vld [vmem:[#allocation7 + $0x18] sm:$0xff]
    %v217 = vld [vmem:[#allocation7 + $0x20] sm:$0xff]
    %v218 = vld [vmem:[#allocation7 + $0x28] sm:$0xff]
    %v219 = vld [vmem:[#allocation7 + $0x30] sm:$0xff]
    %v220 = vld [vmem:[#allocation7 + $0x38] sm:$0xff]
    %v221 = vld [vmem:[#allocation7 + $0x40] sm:$0xff]
    %v222 = vld [vmem:[#allocation7 + $0x48] sm:$0xff]
    %v223 = vld [vmem:[#allocation7 + $0x50] sm:$0xff]
    %v224 = vld [vmem:[#allocation7 + $0x58] sm:$0xff]
    %v225 = vld [vmem:[#allocation7 + $0x60] sm:$0xff]
    %v226 = vld [vmem:[#allocation7 + $0x68] sm:$0xff]
    %v227 = vld [vmem:[#allocation7 + $0x70] sm:$0xff]
    %v228 = vld [vmem:[#allocation7 + $0x78] sm:$0xff]
    %v229 = vld [vmem:[#allocation7 + $0x80] sm:$0xff]
    %v230 = vld [vmem:[#allocation7 + $0x88] sm:$0xff]
    %v231 = vld [vmem:[#allocation7 + $0x90] sm:$0xff]
    %v232 = vld [vmem:[#allocation7 + $0x98] sm:$0xff]
    %v233 = vld [vmem:[#allocation7 + $0xa0] sm:$0xff]
    %v234 = vld [vmem:[#allocation7 + $0xa8] sm:$0xff]
    %v235 = vld [vmem:[#allocation7 + $0xb0] sm:$0xff]
    %v236 = vld [vmem:[#allocation7 + $0xb8] sm:$0xff]
    %v237 = vld [vmem:[#allocation7 + $0xc0] sm:$0xff]
    %v238 = vld [vmem:[#allocation7 + $0xc8] sm:$0xff]
    %v239 = vld [vmem:[#allocation7 + $0xd0] sm:$0xff]
    %v240 = vld [vmem:[#allocation7 + $0xd8] sm:$0xff]
    %v241 = vld [vmem:[#allocation7 + $0xe0] sm:$0xff]
    %v242 = vld [vmem:[#allocation7 + $0xe8] sm:$0xff]
    %v243 = vld [vmem:[#allocation7 + $0xf0] sm:$0xff]
    %v244 = vld [vmem:[#allocation7 + $0xf8] sm:$0xff]
    %v245 = vld [vmem:[%s1] sm:$0xf]
    %v247 = vperm.slane %v245, 0
    %v248 = vperm.slane %v245, 1
    %v249 = vperm.slane %v245, 2
    %v250 = vperm.slane %v245, 3
    %v271 = vunpack.c.l.b16 %v197
    %v272 = vunpack.c.l.b16 %v198
    %v273 = vunpack.c.l.b16 %v199
    %v274 = vunpack.c.l.b16 %v200
    %v275 = vunpack.c.l.b16 %v201
    %v276 = vunpack.c.l.b16 %v202
    %v277 = vunpack.c.l.b16 %v203
    %v278 = vunpack.c.l.b16 %v204
    %v279 = vunpack.c.l.b16 %v205
    %v280 = vunpack.c.l.b16 %v206
    %v281 = vunpack.c.l.b16 %v207
    %v282 = vunpack.c.l.b16 %v208
    %v283 = vunpack.c.l.b16 %v209
    %v284 = vunpack.c.l.b16 %v210
    %v285 = vunpack.c.l.b16 %v211
    %v286 = vunpack.c.l.b16 %v212
    %v287 = vpack.c.b16 %v272, %v271
    %v288 = vpack.c.b16 %v274, %v273
    %v289 = vpack.c.b16 %v276, %v275
    %v290 = vpack.c.b16 %v278, %v277
    %v291 = vpack.c.b16 %v280, %v279
    %v292 = vpack.c.b16 %v282, %v281
    %v293 = vpack.c.b16 %v284, %v283
    %v294 = vpack.c.b16 %v286, %v285
    %v335 = vunpack.c.l.b16 %v213
    %v336 = vunpack.c.h.b16 %v213
    %v337 = vunpack.c.l.b16 %v214
    %v338 = vunpack.c.h.b16 %v214
    %v339 = vunpack.c.l.b16 %v215
    %v340 = vunpack.c.h.b16 %v215
    %v341 = vunpack.c.l.b16 %v216
    %v342 = vunpack.c.h.b16 %v216
    %v343 = vunpack.c.l.b16 %v217
    %v344 = vunpack.c.h.b16 %v217
    %v345 = vunpack.c.l.b16 %v218
    %v346 = vunpack.c.h.b16 %v218
    %v347 = vunpack.c.l.b16 %v219
    %v348 = vunpack.c.h.b16 %v219
    %v349 = vunpack.c.l.b16 %v220
    %v350 = vunpack.c.h.b16 %v220
    %v351 = vunpack.c.l.b16 %v221
    %v352 = vunpack.c.h.b16 %v221
    %v353 = vunpack.c.l.b16 %v222
    %v354 = vunpack.c.h.b16 %v222
    %v355 = vunpack.c.l.b16 %v223
    %v356 = vunpack.c.h.b16 %v223
    %v357 = vunpack.c.l.b16 %v224
    %v358 = vunpack.c.h.b16 %v224
    %v359 = vunpack.c.l.b16 %v225
    %v360 = vunpack.c.h.b16 %v225
    %v361 = vunpack.c.l.b16 %v226
    %v362 = vunpack.c.h.b16 %v226
    %v363 = vunpack.c.l.b16 %v227
    %v364 = vunpack.c.h.b16 %v227
    %v365 = vunpack.c.l.b16 %v228
    %v366 = vunpack.c.h.b16 %v228
    %v367 = vunpack.c.l.b16 %v229
    %v368 = vunpack.c.h.b16 %v229
    %v369 = vunpack.c.l.b16 %v230
    %v370 = vunpack.c.h.b16 %v230
    %v371 = vunpack.c.l.b16 %v231
    %v372 = vunpack.c.h.b16 %v231
    %v373 = vunpack.c.l.b16 %v232
    %v374 = vunpack.c.h.b16 %v232
    %v375 = vunpack.c.l.b16 %v233
    %v376 = vunpack.c.h.b16 %v233
    %v377 = vunpack.c.l.b16 %v234
    %v378 = vunpack.c.h.b16 %v234
    %v379 = vunpack.c.l.b16 %v235
    %v380 = vunpack.c.h.b16 %v235
    %v381 = vunpack.c.l.b16 %v236
    %v382 = vunpack.c.h.b16 %v236
    %v383 = vunpack.c.l.b16 %v237
    %v384 = vunpack.c.h.b16 %v237
    %v385 = vunpack.c.l.b16 %v238
    %v386 = vunpack.c.h.b16 %v238
    %v387 = vunpack.c.l.b16 %v239
    %v388 = vunpack.c.h.b16 %v239
    %v389 = vunpack.c.l.b16 %v240
    %v390 = vunpack.c.h.b16 %v240
    %v391 = vunpack.c.l.b16 %v241
    %v392 = vunpack.c.h.b16 %v241
    %v393 = vunpack.c.l.b16 %v242
    %v394 = vunpack.c.h.b16 %v242
    %v395 = vunpack.c.l.b16 %v243
    %v396 = vunpack.c.h.b16 %v243
    %v397 = vunpack.c.l.b16 %v244
    %v398 = vunpack.c.h.b16 %v244
    %v399 = vpack.c.b16 %v339, %v335
    %v400 = vpack.c.b16 %v340, %v336
    %v401 = vpack.c.b16 %v341, %v337
    %v402 = vpack.c.b16 %v342, %v338
    %v403 = vpack.c.b16 %v347, %v343
    %v404 = vpack.c.b16 %v348, %v344
    %v405 = vpack.c.b16 %v349, %v345
    %v406 = vpack.c.b16 %v350, %v346
    %v407 = vpack.c.b16 %v355, %v351
    %v408 = vpack.c.b16 %v356, %v352
    %v409 = vpack.c.b16 %v357, %v353
    %v410 = vpack.c.b16 %v358, %v354
    %v411 = vpack.c.b16 %v363, %v359
    %v412 = vpack.c.b16 %v364, %v360
    %v413 = vpack.c.b16 %v365, %v361
    %v414 = vpack.c.b16 %v366, %v362
    %v415 = vpack.c.b16 %v371, %v367
    %v416 = vpack.c.b16 %v372, %v368
    %v417 = vpack.c.b16 %v373, %v369
    %v418 = vpack.c.b16 %v374, %v370
    %v419 = vpack.c.b16 %v379, %v375
    %v420 = vpack.c.b16 %v380, %v376
    %v421 = vpack.c.b16 %v381, %v377
    %v422 = vpack.c.b16 %v382, %v378
    %v423 = vpack.c.b16 %v387, %v383
    %v424 = vpack.c.b16 %v388, %v384
    %v425 = vpack.c.b16 %v389, %v385
    %v426 = vpack.c.b16 %v390, %v386
    %v427 = vpack.c.b16 %v395, %v391
    %v428 = vpack.c.b16 %v396, %v392
    %v429 = vpack.c.b16 %v397, %v393
    %v430 = vpack.c.b16 %v398, %v394
    %463 = vmatpush.bf16.msra.mxu0 %v427
    %464 = vmatpush.bf16.msra.mxu0 %v423
    %465 = vmatpush.bf16.msra.mxu0 %v419
    %466 = vmatpush.bf16.msra.mxu0 %v415
    %467 = vmatpush.bf16.msra.mxu0 %v411
    %468 = vmatpush.bf16.msra.mxu0 %v407
    %469 = vmatpush.bf16.msra.mxu0 %v403
    %470 = vmatpush.bf16.msra.mxu0 %v399
    %471 = vmatmul.bf16.gmra.mxu0 %v287
    %v472 = vpop.f32.mrf.mxu0
    %v473 = vadd.f32 %v247, %v472
    %v474 = vpop.f32.mrf.mxu0
    %v475 = vadd.f32 %v247, %v474
    %476 = vmatmul.bf16.gmra.mxu0 %v288
    %v477 = vpop.f32.mrf.mxu0
    %v478 = vadd.f32 %v247, %v477
    %v479 = vpop.f32.mrf.mxu0
    %v480 = vadd.f32 %v247, %v479
    %481 = vmatmul.bf16.gmra.mxu0 %v289
    %v482 = vpop.f32.mrf.mxu0
    %v483 = vadd.f32 %v247, %v482
    %v484 = vpop.f32.mrf.mxu0
    %v485 = vadd.f32 %v247, %v484
    %486 = vmatmul.bf16.gmra.mxu0 %v290
    %v487 = vpop.f32.mrf.mxu0
    %v488 = vadd.f32 %v247, %v487
    %v489 = vpop.f32.mrf.mxu0
    %v490 = vadd.f32 %v247, %v489
    %491 = vmatmul.bf16.gmra.mxu0 %v291
    %v492 = vpop.f32.mrf.mxu0
    %v493 = vadd.f32 %v247, %v492
    %v494 = vpop.f32.mrf.mxu0
    %v495 = vadd.f32 %v247, %v494
    %496 = vmatmul.bf16.gmra.mxu0 %v292
    %v497 = vpop.f32.mrf.mxu0
    %v498 = vadd.f32 %v247, %v497
    %v499 = vpop.f32.mrf.mxu0
    %v500 = vadd.f32 %v247, %v499
    %501 = vmatmul.bf16.gmra.mxu0 %v293
    %v502 = vpop.f32.mrf.mxu0
    %v503 = vadd.f32 %v247, %v502
    %v504 = vpop.f32.mrf.mxu0
    %v505 = vadd.f32 %v247, %v504
    %506 = vmatmul.bf16.gmra.mxu0 %v294
    %v507 = vpop.f32.mrf.mxu0
    %v508 = vadd.f32 %v247, %v507
    %v509 = vpop.f32.mrf.mxu0
    %v510 = vadd.f32 %v247, %v509
    %511 = vdwg.mxu0
    %512 = vmatpush.bf16.msra.mxu0 %v428
    %513 = vmatpush.bf16.msra.mxu0 %v424
    %514 = vmatpush.bf16.msra.mxu0 %v420
    %515 = vmatpush.bf16.msra.mxu0 %v416
    %516 = vmatpush.bf16.msra.mxu0 %v412
    %517 = vmatpush.bf16.msra.mxu0 %v408
    %518 = vmatpush.bf16.msra.mxu0 %v404
    %519 = vmatpush.bf16.msra.mxu0 %v400
    %520 = vmatmul.bf16.gmra.mxu0 %v287
    %v521 = vpop.f32.mrf.mxu0
    %v522 = vadd.f32 %v248, %v521
    %v523 = vpop.f32.mrf.mxu0
    %v524 = vadd.f32 %v248, %v523
    %525 = vmatmul.bf16.gmra.mxu0 %v288
    %v526 = vpop.f32.mrf.mxu0
    %v527 = vadd.f32 %v248, %v526
    %v528 = vpop.f32.mrf.mxu0
    %v529 = vadd.f32 %v248, %v528
    %530 = vmatmul.bf16.gmra.mxu0 %v289
    %v531 = vpop.f32.mrf.mxu0
    %v532 = vadd.f32 %v248, %v531
    %v533 = vpop.f32.mrf.mxu0
    %v534 = vadd.f32 %v248, %v533
    %535 = vmatmul.bf16.gmra.mxu0 %v290
    %v536 = vpop.f32.mrf.mxu0
    %v537 = vadd.f32 %v248, %v536
    %v538 = vpop.f32.mrf.mxu0
    %v539 = vadd.f32 %v248, %v538
    %540 = vmatmul.bf16.gmra.mxu0 %v291
    %v541 = vpop.f32.mrf.mxu0
    %v542 = vadd.f32 %v248, %v541
    %v543 = vpop.f32.mrf.mxu0
    %v544 = vadd.f32 %v248, %v543
    %545 = vmatmul.bf16.gmra.mxu0 %v292
    %v546 = vpop.f32.mrf.mxu0
    %v547 = vadd.f32 %v248, %v546
    %v548 = vpop.f32.mrf.mxu0
    %v549 = vadd.f32 %v248, %v548
    %550 = vmatmul.bf16.gmra.mxu0 %v293
    %v551 = vpop.f32.mrf.mxu0
    %v552 = vadd.f32 %v248, %v551
    %v553 = vpop.f32.mrf.mxu0
    %v554 = vadd.f32 %v248, %v553
    %555 = vmatmul.bf16.gmra.mxu0 %v294
    %v556 = vpop.f32.mrf.mxu0
    %v557 = vadd.f32 %v248, %v556
    %v558 = vpop.f32.mrf.mxu0
    %v559 = vadd.f32 %v248, %v558
    %560 = vdwg.mxu0
    %561 = vmatpush.bf16.msra.mxu0 %v429
    %562 = vmatpush.bf16.msra.mxu0 %v425
    %563 = vmatpush.bf16.msra.mxu0 %v421
    %564 = vmatpush.bf16.msra.mxu0 %v417
    %565 = vmatpush.bf16.msra.mxu0 %v413
    %566 = vmatpush.bf16.msra.mxu0 %v409
    %567 = vmatpush.bf16.msra.mxu0 %v405
    %568 = vmatpush.bf16.msra.mxu0 %v401
    %569 = vmatmul.bf16.gmra.mxu0 %v287
    %v570 = vpop.f32.mrf.mxu0
    %v571 = vadd.f32 %v249, %v570
    %v572 = vpop.f32.mrf.mxu0
    %v573 = vadd.f32 %v249, %v572
    %574 = vmatmul.bf16.gmra.mxu0 %v288
    %v575 = vpop.f32.mrf.mxu0
    %v576 = vadd.f32 %v249, %v575
    %v577 = vpop.f32.mrf.mxu0
    %v578 = vadd.f32 %v249, %v577
    %579 = vmatmul.bf16.gmra.mxu0 %v289
    %v580 = vpop.f32.mrf.mxu0
    %v581 = vadd.f32 %v249, %v580
    %v582 = vpop.f32.mrf.mxu0
    %v583 = vadd.f32 %v249, %v582
    %584 = vmatmul.bf16.gmra.mxu0 %v290
    %v585 = vpop.f32.mrf.mxu0
    %v586 = vadd.f32 %v249, %v585
    %v587 = vpop.f32.mrf.mxu0
    %v588 = vadd.f32 %v249, %v587
    %589 = vmatmul.bf16.gmra.mxu0 %v291
    %v590 = vpop.f32.mrf.mxu0
    %v591 = vadd.f32 %v249, %v590
    %v592 = vpop.f32.mrf.mxu0
    %v593 = vadd.f32 %v249, %v592
    %594 = vmatmul.bf16.gmra.mxu0 %v292
    %v595 = vpop.f32.mrf.mxu0
    %v596 = vadd.f32 %v249, %v595
    %v597 = vpop.f32.mrf.mxu0
    %v598 = vadd.f32 %v249, %v597
    %599 = vmatmul.bf16.gmra.mxu0 %v293
    %v600 = vpop.f32.mrf.mxu0
    %v601 = vadd.f32 %v249, %v600
    %v602 = vpop.f32.mrf.mxu0
    %v603 = vadd.f32 %v249, %v602
    %604 = vmatmul.bf16.gmra.mxu0 %v294
    %v605 = vpop.f32.mrf.mxu0
    %v606 = vadd.f32 %v249, %v605
    %v607 = vpop.f32.mrf.mxu0
    %v608 = vadd.f32 %v249, %v607
    %609 = vdwg.mxu0
    %610 = vmatpush.bf16.msra.mxu0 %v430
    %611 = vmatpush.bf16.msra.mxu0 %v426
    %612 = vmatpush.bf16.msra.mxu0 %v422
    %613 = vmatpush.bf16.msra.mxu0 %v418
    %614 = vmatpush.bf16.msra.mxu0 %v414
    %615 = vmatpush.bf16.msra.mxu0 %v410
    %616 = vmatpush.bf16.msra.mxu0 %v406
    %617 = vmatpush.bf16.msra.mxu0 %v402
    %618 = vmatmul.bf16.gmra.mxu0 %v287
    %v619 = vpop.f32.mrf.mxu0
    %v620 = vadd.f32 %v250, %v619
    %v621 = vpop.f32.mrf.mxu0
    %v622 = vadd.f32 %v250, %v621
    %623 = vmatmul.bf16.gmra.mxu0 %v288
    %v624 = vpop.f32.mrf.mxu0
    %v625 = vadd.f32 %v250, %v624
    %v626 = vpop.f32.mrf.mxu0
    %v627 = vadd.f32 %v250, %v626
    %628 = vmatmul.bf16.gmra.mxu0 %v289
    %v629 = vpop.f32.mrf.mxu0
    %v630 = vadd.f32 %v250, %v629
    %v631 = vpop.f32.mrf.mxu0
    %v632 = vadd.f32 %v250, %v631
    %633 = vmatmul.bf16.gmra.mxu0 %v290
    %v634 = vpop.f32.mrf.mxu0
    %v635 = vadd.f32 %v250, %v634
    %v636 = vpop.f32.mrf.mxu0
    %v637 = vadd.f32 %v250, %v636
    %638 = vmatmul.bf16.gmra.mxu0 %v291
    %v639 = vpop.f32.mrf.mxu0
    %v640 = vadd.f32 %v250, %v639
    %v641 = vpop.f32.mrf.mxu0
    %v642 = vadd.f32 %v250, %v641
    %643 = vmatmul.bf16.gmra.mxu0 %v292
    %v644 = vpop.f32.mrf.mxu0
    %v645 = vadd.f32 %v250, %v644
    %v646 = vpop.f32.mrf.mxu0
    %v647 = vadd.f32 %v250, %v646
    %648 = vmatmul.bf16.gmra.mxu0 %v293
    %v649 = vpop.f32.mrf.mxu0
    %v650 = vadd.f32 %v250, %v649
    %v651 = vpop.f32.mrf.mxu0
    %v652 = vadd.f32 %v250, %v651
    %653 = vmatmul.bf16.gmra.mxu0 %v294
    %v654 = vpop.f32.mrf.mxu0
    %v655 = vadd.f32 %v250, %v654
    %v656 = vpop.f32.mrf.mxu0
    %v657 = vadd.f32 %v250, %v656
    %658 = vdwg.mxu0
    %v659 = vmax.f32 %v473, 0.0
    %v660 = vmax.f32 %v522, 0.0
    %v661 = vmax.f32 %v571, 0.0
    %v662 = vmax.f32 %v620, 0.0
    %v663 = vmax.f32 %v475, 0.0
    %v664 = vmax.f32 %v524, 0.0
    %v665 = vmax.f32 %v573, 0.0
    %v666 = vmax.f32 %v622, 0.0
    %v667 = vmax.f32 %v478, 0.0
    %v668 = vmax.f32 %v527, 0.0
    %v669 = vmax.f32 %v576, 0.0
    %v670 = vmax.f32 %v625, 0.0
    %v671 = vmax.f32 %v480, 0.0
    %v672 = vmax.f32 %v529, 0.0
    %v673 = vmax.f32 %v578, 0.0
    %v674 = vmax.f32 %v627, 0.0
    %v675 = vmax.f32 %v483, 0.0
    %v676 = vmax.f32 %v532, 0.0
    %v677 = vmax.f32 %v581, 0.0
    %v678 = vmax.f32 %v630, 0.0
    %v679 = vmax.f32 %v485, 0.0
    %v680 = vmax.f32 %v534, 0.0
    %v681 = vmax.f32 %v583, 0.0
    %v682 = vmax.f32 %v632, 0.0
    %v683 = vmax.f32 %v488, 0.0
    %v684 = vmax.f32 %v537, 0.0
    %v685 = vmax.f32 %v586, 0.0
    %v686 = vmax.f32 %v635, 0.0
    %v687 = vmax.f32 %v490, 0.0
    %v688 = vmax.f32 %v539, 0.0
    %v689 = vmax.f32 %v588, 0.0
    %v690 = vmax.f32 %v637, 0.0
    %v691 = vmax.f32 %v493, 0.0
    %v692 = vmax.f32 %v542, 0.0
    %v693 = vmax.f32 %v591, 0.0
    %v694 = vmax.f32 %v640, 0.0
    %v695 = vmax.f32 %v495, 0.0
    %v696 = vmax.f32 %v544, 0.0
    %v697 = vmax.f32 %v593, 0.0
    %v698 = vmax.f32 %v642, 0.0
    %v699 = vmax.f32 %v498, 0.0
    %v700 = vmax.f32 %v547, 0.0
    %v701 = vmax.f32 %v596, 0.0
    %v702 = vmax.f32 %v645, 0.0
    %v703 = vmax.f32 %v500, 0.0
    %v704 = vmax.f32 %v549, 0.0
    %v705 = vmax.f32 %v598, 0.0
    %v706 = vmax.f32 %v647, 0.0
    %v707 = vmax.f32 %v503, 0.0
    %v708 = vmax.f32 %v552, 0.0
    %v709 = vmax.f32 %v601, 0.0
    %v710 = vmax.f32 %v650, 0.0
    %v711 = vmax.f32 %v505, 0.0
    %v712 = vmax.f32 %v554, 0.0
    %v713 = vmax.f32 %v603, 0.0
    %v714 = vmax.f32 %v652, 0.0
    %v715 = vmax.f32 %v508, 0.0
    %v716 = vmax.f32 %v557, 0.0
    %v717 = vmax.f32 %v606, 0.0
    %v718 = vmax.f32 %v655, 0.0
    %v719 = vmax.f32 %v510, 0.0
    %v720 = vmax.f32 %v559, 0.0
    %v721 = vmax.f32 %v608, 0.0
    %v722 = vmax.f32 %v657, 0.0
    %v723 = vpack.c.bf16 %v663, %v659
    %v724 = vpack.c.bf16 %v664, %v660
    %v725 = vpack.c.bf16 %v665, %v661
    %v726 = vpack.c.bf16 %v666, %v662
    %v727 = vpack.c.bf16 %v671, %v667
    %v728 = vpack.c.bf16 %v672, %v668
    %v729 = vpack.c.bf16 %v673, %v669
    %v730 = vpack.c.bf16 %v674, %v670
    %v731 = vpack.c.bf16 %v679, %v675
    %v732 = vpack.c.bf16 %v680, %v676
    %v733 = vpack.c.bf16 %v681, %v677
    %v734 = vpack.c.bf16 %v682, %v678
    %v735 = vpack.c.bf16 %v687, %v683
    %v736 = vpack.c.bf16 %v688, %v684
    %v737 = vpack.c.bf16 %v689, %v685
    %v738 = vpack.c.bf16 %v690, %v686
    %v739 = vpack.c.bf16 %v695, %v691
    %v740 = vpack.c.bf16 %v696, %v692
    %v741 = vpack.c.bf16 %v697, %v693
    %v742 = vpack.c.bf16 %v698, %v694
    %v743 = vpack.c.bf16 %v703, %v699
    %v744 = vpack.c.bf16 %v704, %v700
    %v745 = vpack.c.bf16 %v705, %v701
    %v746 = vpack.c.bf16 %v706, %v702
    %v747 = vpack.c.bf16 %v711, %v707
    %v748 = vpack.c.bf16 %v712, %v708
    %v749 = vpack.c.bf16 %v713, %v709
    %v750 = vpack.c.bf16 %v714, %v710
    %v751 = vpack.c.bf16 %v719, %v715
    %v752 = vpack.c.bf16 %v720, %v716
    %v753 = vpack.c.bf16 %v721, %v717
    %v754 = vpack.c.bf16 %v722, %v718
    %v755 = vld [vmem:[#allocation9] sm:$0xff]
    %v756 = vld [vmem:[#allocation9 + $0x8] sm:$0xff]
    %v757 = vld [vmem:[#allocation9 + $0x10] sm:$0xff]
    %v758 = vld [vmem:[#allocation9 + $0x18] sm:$0xff]
    %v759 = vld [vmem:[#allocation9 + $0x20] sm:$0xff]
    %v760 = vld [vmem:[#allocation9 + $0x28] sm:$0xff]
    %v761 = vld [vmem:[#allocation9 + $0x30] sm:$0xff]
    %v762 = vld [vmem:[#allocation9 + $0x38] sm:$0xff]
    %v763 = vld [vmem:[#allocation9 + $0x40] sm:$0xff]
    %v764 = vld [vmem:[#allocation9 + $0x48] sm:$0xff]
    %v765 = vld [vmem:[#allocation9 + $0x50] sm:$0xff]
    %v766 = vld [vmem:[#allocation9 + $0x58] sm:$0xff]
    %v767 = vld [vmem:[#allocation9 + $0x60] sm:$0xff]
    %v768 = vld [vmem:[#allocation9 + $0x68] sm:$0xff]
    %v769 = vld [vmem:[#allocation9 + $0x70] sm:$0xff]
    %v770 = vld [vmem:[#allocation9 + $0x78] sm:$0xff]
    %v771 = vld [vmem:[#allocation9 + $0x80] sm:$0xff]
    %v772 = vld [vmem:[#allocation9 + $0x88] sm:$0xff]
    %v773 = vld [vmem:[#allocation9 + $0x90] sm:$0xff]
    %v774 = vld [vmem:[#allocation9 + $0x98] sm:$0xff]
    %v775 = vld [vmem:[#allocation9 + $0xa0] sm:$0xff]
    %v776 = vld [vmem:[#allocation9 + $0xa8] sm:$0xff]
    %v777 = vld [vmem:[#allocation9 + $0xb0] sm:$0xff]
    %v778 = vld [vmem:[#allocation9 + $0xb8] sm:$0xff]
    %v779 = vld [vmem:[#allocation9 + $0xc0] sm:$0xff]
    %v780 = vld [vmem:[#allocation9 + $0xc8] sm:$0xff]
    %v781 = vld [vmem:[#allocation9 + $0xd0] sm:$0xff]
    %v782 = vld [vmem:[#allocation9 + $0xd8] sm:$0xff]
    %v783 = vld [vmem:[#allocation9 + $0xe0] sm:$0xff]
    %v784 = vld [vmem:[#allocation9 + $0xe8] sm:$0xff]
    %v785 = vld [vmem:[#allocation9 + $0xf0] sm:$0xff]
    %v786 = vld [vmem:[#allocation9 + $0xf8] sm:$0xff]
    %v787 = vld [vmem:[#allocation9 + $0x100] sm:$0xff]
    %v788 = vld [vmem:[#allocation9 + $0x108] sm:$0xff]
    %v789 = vld [vmem:[#allocation9 + $0x110] sm:$0xff]
    %v790 = vld [vmem:[#allocation9 + $0x118] sm:$0xff]
    %v791 = vld [vmem:[#allocation9 + $0x120] sm:$0xff]
    %v792 = vld [vmem:[#allocation9 + $0x128] sm:$0xff]
    %v793 = vld [vmem:[#allocation9 + $0x130] sm:$0xff]
    %v794 = vld [vmem:[#allocation9 + $0x138] sm:$0xff]
    %v795 = vld [vmem:[#allocation9 + $0x140] sm:$0xff]
    %v796 = vld [vmem:[#allocation9 + $0x148] sm:$0xff]
    %v797 = vld [vmem:[#allocation9 + $0x150] sm:$0xff]
    %v798 = vld [vmem:[#allocation9 + $0x158] sm:$0xff]
    %v799 = vld [vmem:[#allocation9 + $0x160] sm:$0xff]
    %v800 = vld [vmem:[#allocation9 + $0x168] sm:$0xff]
    %v801 = vld [vmem:[#allocation9 + $0x170] sm:$0xff]
    %v802 = vld [vmem:[#allocation9 + $0x178] sm:$0xff]
    %v803 = vld [vmem:[#allocation9 + $0x180] sm:$0xff]
    %v804 = vld [vmem:[#allocation9 + $0x188] sm:$0xff]
    %v805 = vld [vmem:[#allocation9 + $0x190] sm:$0xff]
    %v806 = vld [vmem:[#allocation9 + $0x198] sm:$0xff]
    %v807 = vld [vmem:[#allocation9 + $0x1a0] sm:$0xff]
    %v808 = vld [vmem:[#allocation9 + $0x1a8] sm:$0xff]
    %v809 = vld [vmem:[#allocation9 + $0x1b0] sm:$0xff]
    %v810 = vld [vmem:[#allocation9 + $0x1b8] sm:$0xff]
    %v811 = vld [vmem:[#allocation9 + $0x1c0] sm:$0xff]
    %v812 = vld [vmem:[#allocation9 + $0x1c8] sm:$0xff]
    %v813 = vld [vmem:[#allocation9 + $0x1d0] sm:$0xff]
    %v814 = vld [vmem:[#allocation9 + $0x1d8] sm:$0xff]
    %v815 = vld [vmem:[#allocation9 + $0x1e0] sm:$0xff]
    %v816 = vld [vmem:[#allocation9 + $0x1e8] sm:$0xff]
    %v817 = vld [vmem:[#allocation9 + $0x1f0] sm:$0xff]
    %v818 = vld [vmem:[#allocation9 + $0x1f8] sm:$0xff]
    %v819 = vld [vmem:[#allocation9 + $0x200] sm:$0xff]
    %v820 = vld [vmem:[#allocation9 + $0x208] sm:$0xff]
    %v821 = vld [vmem:[#allocation9 + $0x210] sm:$0xff]
    %v822 = vld [vmem:[#allocation9 + $0x218] sm:$0xff]
    %v823 = vld [vmem:[#allocation9 + $0x220] sm:$0xff]
    %v824 = vld [vmem:[#allocation9 + $0x228] sm:$0xff]
    %v825 = vld [vmem:[#allocation9 + $0x230] sm:$0xff]
    %v826 = vld [vmem:[#allocation9 + $0x238] sm:$0xff]
    %v827 = vld [vmem:[#allocation9 + $0x240] sm:$0xff]
    %v828 = vld [vmem:[#allocation9 + $0x248] sm:$0xff]
    %v829 = vld [vmem:[#allocation9 + $0x250] sm:$0xff]
    %v830 = vld [vmem:[#allocation9 + $0x258] sm:$0xff]
    %v831 = vld [vmem:[#allocation9 + $0x260] sm:$0xff]
    %v832 = vld [vmem:[#allocation9 + $0x268] sm:$0xff]
    %v833 = vld [vmem:[#allocation9 + $0x270] sm:$0xff]
    %v834 = vld [vmem:[#allocation9 + $0x278] sm:$0xff]
    %v835 = vld [vmem:[#allocation9 + $0x280] sm:$0xff]
    %v836 = vld [vmem:[#allocation9 + $0x288] sm:$0xff]
    %v837 = vld [vmem:[#allocation9 + $0x290] sm:$0xff]
    %v838 = vld [vmem:[#allocation9 + $0x298] sm:$0xff]
    %v839 = vld [vmem:[#allocation9 + $0x2a0] sm:$0xff]
    %v840 = vld [vmem:[#allocation9 + $0x2a8] sm:$0xff]
    %v841 = vld [vmem:[#allocation9 + $0x2b0] sm:$0xff]
    %v842 = vld [vmem:[#allocation9 + $0x2b8] sm:$0xff]
    %v843 = vld [vmem:[#allocation9 + $0x2c0] sm:$0xff]
    %v844 = vld [vmem:[#allocation9 + $0x2c8] sm:$0xff]
    %v845 = vld [vmem:[#allocation9 + $0x2d0] sm:$0xff]
    %v846 = vld [vmem:[#allocation9 + $0x2d8] sm:$0xff]
    %v847 = vld [vmem:[#allocation9 + $0x2e0] sm:$0xff]
    %v848 = vld [vmem:[#allocation9 + $0x2e8] sm:$0xff]
    %v849 = vld [vmem:[#allocation9 + $0x2f0] sm:$0xff]
    %v850 = vld [vmem:[#allocation9 + $0x2f8] sm:$0xff]
    %v851 = vld [vmem:[#allocation9 + $0x300] sm:$0xff]
    %v852 = vld [vmem:[#allocation9 + $0x308] sm:$0xff]
    %v853 = vld [vmem:[#allocation9 + $0x310] sm:$0xff]
    %v854 = vld [vmem:[#allocation9 + $0x318] sm:$0xff]
    %v855 = vld [vmem:[#allocation9 + $0x320] sm:$0xff]
    %v856 = vld [vmem:[#allocation9 + $0x328] sm:$0xff]
    %v857 = vld [vmem:[#allocation9 + $0x330] sm:$0xff]
    %v858 = vld [vmem:[#allocation9 + $0x338] sm:$0xff]
    %v859 = vld [vmem:[#allocation9 + $0x340] sm:$0xff]
    %v860 = vld [vmem:[#allocation9 + $0x348] sm:$0xff]
    %v861 = vld [vmem:[#allocation9 + $0x350] sm:$0xff]
    %v862 = vld [vmem:[#allocation9 + $0x358] sm:$0xff]
    %v863 = vld [vmem:[#allocation9 + $0x360] sm:$0xff]
    %v864 = vld [vmem:[#allocation9 + $0x368] sm:$0xff]
    %v865 = vld [vmem:[#allocation9 + $0x370] sm:$0xff]
    %v866 = vld [vmem:[#allocation9 + $0x378] sm:$0xff]
    %v867 = vld [vmem:[#allocation9 + $0x380] sm:$0xff]
    %v868 = vld [vmem:[#allocation9 + $0x388] sm:$0xff]
    %v869 = vld [vmem:[#allocation9 + $0x390] sm:$0xff]
    %v870 = vld [vmem:[#allocation9 + $0x398] sm:$0xff]
    %v871 = vld [vmem:[#allocation9 + $0x3a0] sm:$0xff]
    %v872 = vld [vmem:[#allocation9 + $0x3a8] sm:$0xff]
    %v873 = vld [vmem:[#allocation9 + $0x3b0] sm:$0xff]
    %v874 = vld [vmem:[#allocation9 + $0x3b8] sm:$0xff]
    %v875 = vld [vmem:[#allocation9 + $0x3c0] sm:$0xff]
    %v876 = vld [vmem:[#allocation9 + $0x3c8] sm:$0xff]
    %v877 = vld [vmem:[#allocation9 + $0x3d0] sm:$0xff]
    %v878 = vld [vmem:[#allocation9 + $0x3d8] sm:$0xff]
    %v879 = vld [vmem:[#allocation9 + $0x3e0] sm:$0xff]
    %v880 = vld [vmem:[#allocation9 + $0x3e8] sm:$0xff]
    %v881 = vld [vmem:[#allocation9 + $0x3f0] sm:$0xff]
    %v882 = vld [vmem:[#allocation9 + $0x3f8] sm:$0xff]
    %v883 = vld [vmem:[%s3] sm:$0xf]
    %v885 = vperm.slane %v883, 0
    %v886 = vperm.slane %v883, 1
    %v887 = vperm.slane %v883, 2
    %v888 = vperm.slane %v883, 3
    %v1021 = vunpack.c.l.b16 %v755
    %v1022 = vunpack.c.h.b16 %v755
    %v1023 = vunpack.c.l.b16 %v756
    %v1024 = vunpack.c.h.b16 %v756
    %v1025 = vunpack.c.l.b16 %v757
    %v1026 = vunpack.c.h.b16 %v757
    %v1027 = vunpack.c.l.b16 %v758
    %v1028 = vunpack.c.h.b16 %v758
    %v1029 = vunpack.c.l.b16 %v759
    %v1030 = vunpack.c.h.b16 %v759
    %v1031 = vunpack.c.l.b16 %v760
    %v1032 = vunpack.c.h.b16 %v760
    %v1033 = vunpack.c.l.b16 %v761
    %v1034 = vunpack.c.h.b16 %v761
    %v1035 = vunpack.c.l.b16 %v762
    %v1036 = vunpack.c.h.b16 %v762
    %v1037 = vunpack.c.l.b16 %v763
    %v1038 = vunpack.c.h.b16 %v763
    %v1039 = vunpack.c.l.b16 %v764
    %v1040 = vunpack.c.h.b16 %v764
    %v1041 = vunpack.c.l.b16 %v765
    %v1042 = vunpack.c.h.b16 %v765
    %v1043 = vunpack.c.l.b16 %v766
    %v1044 = vunpack.c.h.b16 %v766
    %v1045 = vunpack.c.l.b16 %v767
    %v1046 = vunpack.c.h.b16 %v767
    %v1047 = vunpack.c.l.b16 %v768
    %v1048 = vunpack.c.h.b16 %v768
    %v1049 = vunpack.c.l.b16 %v769
    %v1050 = vunpack.c.h.b16 %v769
    %v1051 = vunpack.c.l.b16 %v770
    %v1052 = vunpack.c.h.b16 %v770
    %v1053 = vunpack.c.l.b16 %v771
    %v1054 = vunpack.c.h.b16 %v771
    %v1055 = vunpack.c.l.b16 %v772
    %v1056 = vunpack.c.h.b16 %v772
    %v1057 = vunpack.c.l.b16 %v773
    %v1058 = vunpack.c.h.b16 %v773
    %v1059 = vunpack.c.l.b16 %v774
    %v1060 = vunpack.c.h.b16 %v774
    %v1061 = vunpack.c.l.b16 %v775
    %v1062 = vunpack.c.h.b16 %v775
    %v1063 = vunpack.c.l.b16 %v776
    %v1064 = vunpack.c.h.b16 %v776
    %v1065 = vunpack.c.l.b16 %v777
    %v1066 = vunpack.c.h.b16 %v777
    %v1067 = vunpack.c.l.b16 %v778
    %v1068 = vunpack.c.h.b16 %v778
    %v1069 = vunpack.c.l.b16 %v779
    %v1070 = vunpack.c.h.b16 %v779
    %v1071 = vunpack.c.l.b16 %v780
    %v1072 = vunpack.c.h.b16 %v780
    %v1073 = vunpack.c.l.b16 %v781
    %v1074 = vunpack.c.h.b16 %v781
    %v1075 = vunpack.c.l.b16 %v782
    %v1076 = vunpack.c.h.b16 %v782
    %v1077 = vunpack.c.l.b16 %v783
    %v1078 = vunpack.c.h.b16 %v783
    %v1079 = vunpack.c.l.b16 %v784
    %v1080 = vunpack.c.h.b16 %v784
    %v1081 = vunpack.c.l.b16 %v785
    %v1082 = vunpack.c.h.b16 %v785
    %v1083 = vunpack.c.l.b16 %v786
    %v1084 = vunpack.c.h.b16 %v786
    %v1085 = vunpack.c.l.b16 %v787
    %v1086 = vunpack.c.h.b16 %v787
    %v1087 = vunpack.c.l.b16 %v788
    %v1088 = vunpack.c.h.b16 %v788
    %v1089 = vunpack.c.l.b16 %v789
    %v1090 = vunpack.c.h.b16 %v789
    %v1091 = vunpack.c.l.b16 %v790
    %v1092 = vunpack.c.h.b16 %v790
    %v1093 = vunpack.c.l.b16 %v791
    %v1094 = vunpack.c.h.b16 %v791
    %v1095 = vunpack.c.l.b16 %v792
    %v1096 = vunpack.c.h.b16 %v792
    %v1097 = vunpack.c.l.b16 %v793
    %v1098 = vunpack.c.h.b16 %v793
    %v1099 = vunpack.c.l.b16 %v794
    %v1100 = vunpack.c.h.b16 %v794
    %v1101 = vunpack.c.l.b16 %v795
    %v1102 = vunpack.c.h.b16 %v795
    %v1103 = vunpack.c.l.b16 %v796
    %v1104 = vunpack.c.h.b16 %v796
    %v1105 = vunpack.c.l.b16 %v797
    %v1106 = vunpack.c.h.b16 %v797
    %v1107 = vunpack.c.l.b16 %v798
    %v1108 = vunpack.c.h.b16 %v798
    %v1109 = vunpack.c.l.b16 %v799
    %v1110 = vunpack.c.h.b16 %v799
    %v1111 = vunpack.c.l.b16 %v800
    %v1112 = vunpack.c.h.b16 %v800
    %v1113 = vunpack.c.l.b16 %v801
    %v1114 = vunpack.c.h.b16 %v801
    %v1115 = vunpack.c.l.b16 %v802
    %v1116 = vunpack.c.h.b16 %v802
    %v1117 = vunpack.c.l.b16 %v803
    %v1118 = vunpack.c.h.b16 %v803
    %v1119 = vunpack.c.l.b16 %v804
    %v1120 = vunpack.c.h.b16 %v804
    %v1121 = vunpack.c.l.b16 %v805
    %v1122 = vunpack.c.h.b16 %v805
    %v1123 = vunpack.c.l.b16 %v806
    %v1124 = vunpack.c.h.b16 %v806
    %v1125 = vunpack.c.l.b16 %v807
    %v1126 = vunpack.c.h.b16 %v807
    %v1127 = vunpack.c.l.b16 %v808
    %v1128 = vunpack.c.h.b16 %v808
    %v1129 = vunpack.c.l.b16 %v809
    %v1130 = vunpack.c.h.b16 %v809
    %v1131 = vunpack.c.l.b16 %v810
    %v1132 = vunpack.c.h.b16 %v810
    %v1133 = vunpack.c.l.b16 %v811
    %v1134 = vunpack.c.h.b16 %v811
    %v1135 = vunpack.c.l.b16 %v812
    %v1136 = vunpack.c.h.b16 %v812
    %v1137 = vunpack.c.l.b16 %v813
    %v1138 = vunpack.c.h.b16 %v813
    %v1139 = vunpack.c.l.b16 %v814
    %v1140 = vunpack.c.h.b16 %v814
    %v1141 = vunpack.c.l.b16 %v815
    %v1142 = vunpack.c.h.b16 %v815
    %v1143 = vunpack.c.l.b16 %v816
    %v1144 = vunpack.c.h.b16 %v816
    %v1145 = vunpack.c.l.b16 %v817
    %v1146 = vunpack.c.h.b16 %v817
    %v1147 = vunpack.c.l.b16 %v818
    %v1148 = vunpack.c.h.b16 %v818
    %v1149 = vunpack.c.l.b16 %v819
    %v1150 = vunpack.c.h.b16 %v819
    %v1151 = vunpack.c.l.b16 %v820
    %v1152 = vunpack.c.h.b16 %v820
    %v1153 = vunpack.c.l.b16 %v821
    %v1154 = vunpack.c.h.b16 %v821
    %v1155 = vunpack.c.l.b16 %v822
    %v1156 = vunpack.c.h.b16 %v822
    %v1157 = vunpack.c.l.b16 %v823
    %v1158 = vunpack.c.h.b16 %v823
    %v1159 = vunpack.c.l.b16 %v824
    %v1160 = vunpack.c.h.b16 %v824
    %v1161 = vunpack.c.l.b16 %v825
    %v1162 = vunpack.c.h.b16 %v825
    %v1163 = vunpack.c.l.b16 %v826
    %v1164 = vunpack.c.h.b16 %v826
    %v1165 = vunpack.c.l.b16 %v827
    %v1166 = vunpack.c.h.b16 %v827
    %v1167 = vunpack.c.l.b16 %v828
    %v1168 = vunpack.c.h.b16 %v828
    %v1169 = vunpack.c.l.b16 %v829
    %v1170 = vunpack.c.h.b16 %v829
    %v1171 = vunpack.c.l.b16 %v830
    %v1172 = vunpack.c.h.b16 %v830
    %v1173 = vunpack.c.l.b16 %v831
    %v1174 = vunpack.c.h.b16 %v831
    %v1175 = vunpack.c.l.b16 %v832
    %v1176 = vunpack.c.h.b16 %v832
    %v1177 = vunpack.c.l.b16 %v833
    %v1178 = vunpack.c.h.b16 %v833
    %v1179 = vunpack.c.l.b16 %v834
    %v1180 = vunpack.c.h.b16 %v834
    %v1181 = vunpack.c.l.b16 %v835
    %v1182 = vunpack.c.h.b16 %v835
    %v1183 = vunpack.c.l.b16 %v836
    %v1184 = vunpack.c.h.b16 %v836
    %v1185 = vunpack.c.l.b16 %v837
    %v1186 = vunpack.c.h.b16 %v837
    %v1187 = vunpack.c.l.b16 %v838
    %v1188 = vunpack.c.h.b16 %v838
    %v1189 = vunpack.c.l.b16 %v839
    %v1190 = vunpack.c.h.b16 %v839
    %v1191 = vunpack.c.l.b16 %v840
    %v1192 = vunpack.c.h.b16 %v840
    %v1193 = vunpack.c.l.b16 %v841
    %v1194 = vunpack.c.h.b16 %v841
    %v1195 = vunpack.c.l.b16 %v842
    %v1196 = vunpack.c.h.b16 %v842
    %v1197 = vunpack.c.l.b16 %v843
    %v1198 = vunpack.c.h.b16 %v843
    %v1199 = vunpack.c.l.b16 %v844
    %v1200 = vunpack.c.h.b16 %v844
    %v1201 = vunpack.c.l.b16 %v845
    %v1202 = vunpack.c.h.b16 %v845
    %v1203 = vunpack.c.l.b16 %v846
    %v1204 = vunpack.c.h.b16 %v846
    %v1205 = vunpack.c.l.b16 %v847
    %v1206 = vunpack.c.h.b16 %v847
    %v1207 = vunpack.c.l.b16 %v848
    %v1208 = vunpack.c.h.b16 %v848
    %v1209 = vunpack.c.l.b16 %v849
    %v1210 = vunpack.c.h.b16 %v849
    %v1211 = vunpack.c.l.b16 %v850
    %v1212 = vunpack.c.h.b16 %v850
    %v1213 = vunpack.c.l.b16 %v851
    %v1214 = vunpack.c.h.b16 %v851
    %v1215 = vunpack.c.l.b16 %v852
    %v1216 = vunpack.c.h.b16 %v852
    %v1217 = vunpack.c.l.b16 %v853
    %v1218 = vunpack.c.h.b16 %v853
    %v1219 = vunpack.c.l.b16 %v854
    %v1220 = vunpack.c.h.b16 %v854
    %v1221 = vunpack.c.l.b16 %v855
    %v1222 = vunpack.c.h.b16 %v855
    %v1223 = vunpack.c.l.b16 %v856
    %v1224 = vunpack.c.h.b16 %v856
    %v1225 = vunpack.c.l.b16 %v857
    %v1226 = vunpack.c.h.b16 %v857
    %v1227 = vunpack.c.l.b16 %v858
    %v1228 = vunpack.c.h.b16 %v858
    %v1229 = vunpack.c.l.b16 %v859
    %v1230 = vunpack.c.h.b16 %v859
    %v1231 = vunpack.c.l.b16 %v860
    %v1232 = vunpack.c.h.b16 %v860
    %v1233 = vunpack.c.l.b16 %v861
    %v1234 = vunpack.c.h.b16 %v861
    %v1235 = vunpack.c.l.b16 %v862
    %v1236 = vunpack.c.h.b16 %v862
    %v1237 = vunpack.c.l.b16 %v863
    %v1238 = vunpack.c.h.b16 %v863
    %v1239 = vunpack.c.l.b16 %v864
    %v1240 = vunpack.c.h.b16 %v864
    %v1241 = vunpack.c.l.b16 %v865
    %v1242 = vunpack.c.h.b16 %v865
    %v1243 = vunpack.c.l.b16 %v866
    %v1244 = vunpack.c.h.b16 %v866
    %v1245 = vunpack.c.l.b16 %v867
    %v1246 = vunpack.c.h.b16 %v867
    %v1247 = vunpack.c.l.b16 %v868
    %v1248 = vunpack.c.h.b16 %v868
    %v1249 = vunpack.c.l.b16 %v869
    %v1250 = vunpack.c.h.b16 %v869
    %v1251 = vunpack.c.l.b16 %v870
    %v1252 = vunpack.c.h.b16 %v870
    %v1253 = vunpack.c.l.b16 %v871
    %v1254 = vunpack.c.h.b16 %v871
    %v1255 = vunpack.c.l.b16 %v872
    %v1256 = vunpack.c.h.b16 %v872
    %v1257 = vunpack.c.l.b16 %v873
    %v1258 = vunpack.c.h.b16 %v873
    %v1259 = vunpack.c.l.b16 %v874
    %v1260 = vunpack.c.h.b16 %v874
    %v1261 = vunpack.c.l.b16 %v875
    %v1262 = vunpack.c.h.b16 %v875
    %v1263 = vunpack.c.l.b16 %v876
    %v1264 = vunpack.c.h.b16 %v876
    %v1265 = vunpack.c.l.b16 %v877
    %v1266 = vunpack.c.h.b16 %v877
    %v1267 = vunpack.c.l.b16 %v878
    %v1268 = vunpack.c.h.b16 %v878
    %v1269 = vunpack.c.l.b16 %v879
    %v1270 = vunpack.c.h.b16 %v879
    %v1271 = vunpack.c.l.b16 %v880
    %v1272 = vunpack.c.h.b16 %v880
    %v1273 = vunpack.c.l.b16 %v881
    %v1274 = vunpack.c.h.b16 %v881
    %v1275 = vunpack.c.l.b16 %v882
    %v1276 = vunpack.c.h.b16 %v882
    %v1277 = vpack.c.b16 %v1025, %v1021
    %v1278 = vpack.c.b16 %v1026, %v1022
    %v1279 = vpack.c.b16 %v1027, %v1023
    %v1280 = vpack.c.b16 %v1028, %v1024
    %v1281 = vpack.c.b16 %v1033, %v1029
    %v1282 = vpack.c.b16 %v1034, %v1030
    %v1283 = vpack.c.b16 %v1035, %v1031
    %v1284 = vpack.c.b16 %v1036, %v1032
    %v1285 = vpack.c.b16 %v1041, %v1037
    %v1286 = vpack.c.b16 %v1042, %v1038
    %v1287 = vpack.c.b16 %v1043, %v1039
    %v1288 = vpack.c.b16 %v1044, %v1040
    %v1289 = vpack.c.b16 %v1049, %v1045
    %v1290 = vpack.c.b16 %v1050, %v1046
    %v1291 = vpack.c.b16 %v1051, %v1047
    %v1292 = vpack.c.b16 %v1052, %v1048
    %v1293 = vpack.c.b16 %v1057, %v1053
    %v1294 = vpack.c.b16 %v1058, %v1054
    %v1295 = vpack.c.b16 %v1059, %v1055
    %v1296 = vpack.c.b16 %v1060, %v1056
    %v1297 = vpack.c.b16 %v1065, %v1061
    %v1298 = vpack.c.b16 %v1066, %v1062
    %v1299 = vpack.c.b16 %v1067, %v1063
    %v1300 = vpack.c.b16 %v1068, %v1064
    %v1301 = vpack.c.b16 %v1073, %v1069
    %v1302 = vpack.c.b16 %v1074, %v1070
    %v1303 = vpack.c.b16 %v1075, %v1071
    %v1304 = vpack.c.b16 %v1076, %v1072
    %v1305 = vpack.c.b16 %v1081, %v1077
    %v1306 = vpack.c.b16 %v1082, %v1078
    %v1307 = vpack.c.b16 %v1083, %v1079
    %v1308 = vpack.c.b16 %v1084, %v1080
    %v1309 = vpack.c.b16 %v1089, %v1085
    %v1310 = vpack.c.b16 %v1090, %v1086
    %v1311 = vpack.c.b16 %v1091, %v1087
    %v1312 = vpack.c.b16 %v1092, %v1088
    %v1313 = vpack.c.b16 %v1097, %v1093
    %v1314 = vpack.c.b16 %v1098, %v1094
    %v1315 = vpack.c.b16 %v1099, %v1095
    %v1316 = vpack.c.b16 %v1100, %v1096
    %v1317 = vpack.c.b16 %v1105, %v1101
    %v1318 = vpack.c.b16 %v1106, %v1102
    %v1319 = vpack.c.b16 %v1107, %v1103
    %v1320 = vpack.c.b16 %v1108, %v1104
    %v1321 = vpack.c.b16 %v1113, %v1109
    %v1322 = vpack.c.b16 %v1114, %v1110
    %v1323 = vpack.c.b16 %v1115, %v1111
    %v1324 = vpack.c.b16 %v1116, %v1112
    %v1325 = vpack.c.b16 %v1121, %v1117
    %v1326 = vpack.c.b16 %v1122, %v1118
    %v1327 = vpack.c.b16 %v1123, %v1119
    %v1328 = vpack.c.b16 %v1124, %v1120
    %v1329 = vpack.c.b16 %v1129, %v1125
    %v1330 = vpack.c.b16 %v1130, %v1126
    %v1331 = vpack.c.b16 %v1131, %v1127
    %v1332 = vpack.c.b16 %v1132, %v1128
    %v1333 = vpack.c.b16 %v1137, %v1133
    %v1334 = vpack.c.b16 %v1138, %v1134
    %v1335 = vpack.c.b16 %v1139, %v1135
    %v1336 = vpack.c.b16 %v1140, %v1136
    %v1337 = vpack.c.b16 %v1145, %v1141
    %v1338 = vpack.c.b16 %v1146, %v1142
    %v1339 = vpack.c.b16 %v1147, %v1143
    %v1340 = vpack.c.b16 %v1148, %v1144
    %v1341 = vpack.c.b16 %v1153, %v1149
    %v1342 = vpack.c.b16 %v1154, %v1150
    %v1343 = vpack.c.b16 %v1155, %v1151
    %v1344 = vpack.c.b16 %v1156, %v1152
    %v1345 = vpack.c.b16 %v1161, %v1157
    %v1346 = vpack.c.b16 %v1162, %v1158
    %v1347 = vpack.c.b16 %v1163, %v1159
    %v1348 = vpack.c.b16 %v1164, %v1160
    %v1349 = vpack.c.b16 %v1169, %v1165
    %v1350 = vpack.c.b16 %v1170, %v1166
    %v1351 = vpack.c.b16 %v1171, %v1167
    %v1352 = vpack.c.b16 %v1172, %v1168
    %v1353 = vpack.c.b16 %v1177, %v1173
    %v1354 = vpack.c.b16 %v1178, %v1174
    %v1355 = vpack.c.b16 %v1179, %v1175
    %v1356 = vpack.c.b16 %v1180, %v1176
    %v1357 = vpack.c.b16 %v1185, %v1181
    %v1358 = vpack.c.b16 %v1186, %v1182
    %v1359 = vpack.c.b16 %v1187, %v1183
    %v1360 = vpack.c.b16 %v1188, %v1184
    %v1361 = vpack.c.b16 %v1193, %v1189
    %v1362 = vpack.c.b16 %v1194, %v1190
    %v1363 = vpack.c.b16 %v1195, %v1191
    %v1364 = vpack.c.b16 %v1196, %v1192
    %v1365 = vpack.c.b16 %v1201, %v1197
    %v1366 = vpack.c.b16 %v1202, %v1198
    %v1367 = vpack.c.b16 %v1203, %v1199
    %v1368 = vpack.c.b16 %v1204, %v1200
    %v1369 = vpack.c.b16 %v1209, %v1205
    %v1370 = vpack.c.b16 %v1210, %v1206
    %v1371 = vpack.c.b16 %v1211, %v1207
    %v1372 = vpack.c.b16 %v1212, %v1208
    %v1373 = vpack.c.b16 %v1217, %v1213
    %v1374 = vpack.c.b16 %v1218, %v1214
    %v1375 = vpack.c.b16 %v1219, %v1215
    %v1376 = vpack.c.b16 %v1220, %v1216
    %v1377 = vpack.c.b16 %v1225, %v1221
    %v1378 = vpack.c.b16 %v1226, %v1222
    %v1379 = vpack.c.b16 %v1227, %v1223
    %v1380 = vpack.c.b16 %v1228, %v1224
    %v1381 = vpack.c.b16 %v1233, %v1229
    %v1382 = vpack.c.b16 %v1234, %v1230
    %v1383 = vpack.c.b16 %v1235, %v1231
    %v1384 = vpack.c.b16 %v1236, %v1232
    %v1385 = vpack.c.b16 %v1241, %v1237
    %v1386 = vpack.c.b16 %v1242, %v1238
    %v1387 = vpack.c.b16 %v1243, %v1239
    %v1388 = vpack.c.b16 %v1244, %v1240
    %v1389 = vpack.c.b16 %v1249, %v1245
    %v1390 = vpack.c.b16 %v1250, %v1246
    %v1391 = vpack.c.b16 %v1251, %v1247
    %v1392 = vpack.c.b16 %v1252, %v1248
    %v1393 = vpack.c.b16 %v1257, %v1253
    %v1394 = vpack.c.b16 %v1258, %v1254
    %v1395 = vpack.c.b16 %v1259, %v1255
    %v1396 = vpack.c.b16 %v1260, %v1256
    %v1397 = vpack.c.b16 %v1265, %v1261
    %v1398 = vpack.c.b16 %v1266, %v1262
    %v1399 = vpack.c.b16 %v1267, %v1263
    %v1400 = vpack.c.b16 %v1268, %v1264
    %v1401 = vpack.c.b16 %v1273, %v1269
    %v1402 = vpack.c.b16 %v1274, %v1270
    %v1403 = vpack.c.b16 %v1275, %v1271
    %v1404 = vpack.c.b16 %v1276, %v1272
    %1533 = vmatpush.bf16.msra.mxu0 %v1305
    %1534 = vmatpush.bf16.msra.mxu0 %v1301
    %1535 = vmatpush.bf16.msra.mxu0 %v1297
    %1536 = vmatpush.bf16.msra.mxu0 %v1293
    %1537 = vmatpush.bf16.msra.mxu0 %v1289
    %1538 = vmatpush.bf16.msra.mxu0 %v1285
    %1539 = vmatpush.bf16.msra.mxu0 %v1281
    %1540 = vmatpush.bf16.msra.mxu0 %v1277
    %1541 = vmatmul.bf16.gmra.mxu0 %v723
    %v1542 = vpop.f32.mrf.mxu0
    %v1543 = vadd.f32 %v885, %v1542
    %v1544 = vpop.f32.mrf.mxu0
    %v1545 = vadd.f32 %v885, %v1544
    %1546 = vmatmul.bf16.gmra.mxu0 %v727
    %v1547 = vpop.f32.mrf.mxu0
    %v1548 = vadd.f32 %v885, %v1547
    %v1549 = vpop.f32.mrf.mxu0
    %v1550 = vadd.f32 %v885, %v1549
    %1551 = vmatmul.bf16.gmra.mxu0 %v731
    %v1552 = vpop.f32.mrf.mxu0
    %v1553 = vadd.f32 %v885, %v1552
    %v1554 = vpop.f32.mrf.mxu0
    %v1555 = vadd.f32 %v885, %v1554
    %1556 = vmatmul.bf16.gmra.mxu0 %v735
    %v1557 = vpop.f32.mrf.mxu0
    %v1558 = vadd.f32 %v885, %v1557
    %v1559 = vpop.f32.mrf.mxu0
    %v1560 = vadd.f32 %v885, %v1559
    %1561 = vmatmul.bf16.gmra.mxu0 %v739
    %v1562 = vpop.f32.mrf.mxu0
    %v1563 = vadd.f32 %v885, %v1562
    %v1564 = vpop.f32.mrf.mxu0
    %v1565 = vadd.f32 %v885, %v1564
    %1566 = vmatmul.bf16.gmra.mxu0 %v743
    %v1567 = vpop.f32.mrf.mxu0
    %v1568 = vadd.f32 %v885, %v1567
    %v1569 = vpop.f32.mrf.mxu0
    %v1570 = vadd.f32 %v885, %v1569
    %1571 = vmatmul.bf16.gmra.mxu0 %v747
    %v1572 = vpop.f32.mrf.mxu0
    %v1573 = vadd.f32 %v885, %v1572
    %v1574 = vpop.f32.mrf.mxu0
    %v1575 = vadd.f32 %v885, %v1574
    %1576 = vmatmul.bf16.gmra.mxu0 %v751
    %v1577 = vpop.f32.mrf.mxu0
    %v1578 = vadd.f32 %v885, %v1577
    %v1579 = vpop.f32.mrf.mxu0
    %v1580 = vadd.f32 %v885, %v1579
    %1581 = vdwg.mxu0
    %1582 = vmatpush.bf16.msra.mxu0 %v1337
    %1583 = vmatpush.bf16.msra.mxu0 %v1333
    %1584 = vmatpush.bf16.msra.mxu0 %v1329
    %1585 = vmatpush.bf16.msra.mxu0 %v1325
    %1586 = vmatpush.bf16.msra.mxu0 %v1321
    %1587 = vmatpush.bf16.msra.mxu0 %v1317
    %1588 = vmatpush.bf16.msra.mxu0 %v1313
    %1589 = vmatpush.bf16.msra.mxu0 %v1309
    %1590 = vmatmul.bf16.gmra.mxu0 %v724
    %v1591 = vpop.f32.mrf.mxu0
    %v1592 = vadd.f32 %v1543, %v1591
    %v1593 = vpop.f32.mrf.mxu0
    %v1594 = vadd.f32 %v1545, %v1593
    %1595 = vmatmul.bf16.gmra.mxu0 %v728
    %v1596 = vpop.f32.mrf.mxu0
    %v1597 = vadd.f32 %v1548, %v1596
    %v1598 = vpop.f32.mrf.mxu0
    %v1599 = vadd.f32 %v1550, %v1598
    %1600 = vmatmul.bf16.gmra.mxu0 %v732
    %v1601 = vpop.f32.mrf.mxu0
    %v1602 = vadd.f32 %v1553, %v1601
    %v1603 = vpop.f32.mrf.mxu0
    %v1604 = vadd.f32 %v1555, %v1603
    %1605 = vmatmul.bf16.gmra.mxu0 %v736
    %v1606 = vpop.f32.mrf.mxu0
    %v1607 = vadd.f32 %v1558, %v1606
    %v1608 = vpop.f32.mrf.mxu0
    %v1609 = vadd.f32 %v1560, %v1608
    %1610 = vmatmul.bf16.gmra.mxu0 %v740
    %v1611 = vpop.f32.mrf.mxu0
    %v1612 = vadd.f32 %v1563, %v1611
    %v1613 = vpop.f32.mrf.mxu0
    %v1614 = vadd.f32 %v1565, %v1613
    %1615 = vmatmul.bf16.gmra.mxu0 %v744
    %v1616 = vpop.f32.mrf.mxu0
    %v1617 = vadd.f32 %v1568, %v1616
    %v1618 = vpop.f32.mrf.mxu0
    %v1619 = vadd.f32 %v1570, %v1618
    %1620 = vmatmul.bf16.gmra.mxu0 %v748
    %v1621 = vpop.f32.mrf.mxu0
    %v1622 = vadd.f32 %v1573, %v1621
    %v1623 = vpop.f32.mrf.mxu0
    %v1624 = vadd.f32 %v1575, %v1623
    %1625 = vmatmul.bf16.gmra.mxu0 %v752
    %v1626 = vpop.f32.mrf.mxu0
    %v1627 = vadd.f32 %v1578, %v1626
    %v1628 = vpop.f32.mrf.mxu0
    %v1629 = vadd.f32 %v1580, %v1628
    %1630 = vdwg.mxu0
    %1631 = vmatpush.bf16.msra.mxu0 %v1369
    %1632 = vmatpush.bf16.msra.mxu0 %v1365
    %1633 = vmatpush.bf16.msra.mxu0 %v1361
    %1634 = vmatpush.bf16.msra.mxu0 %v1357
    %1635 = vmatpush.bf16.msra.mxu0 %v1353
    %1636 = vmatpush.bf16.msra.mxu0 %v1349
    %1637 = vmatpush.bf16.msra.mxu0 %v1345
    %1638 = vmatpush.bf16.msra.mxu0 %v1341
    %1639 = vmatmul.bf16.gmra.mxu0 %v725
    %v1640 = vpop.f32.mrf.mxu0
    %v1641 = vadd.f32 %v1592, %v1640
    %v1642 = vpop.f32.mrf.mxu0
    %v1643 = vadd.f32 %v1594, %v1642
    %1644 = vmatmul.bf16.gmra.mxu0 %v729
    %v1645 = vpop.f32.mrf.mxu0
    %v1646 = vadd.f32 %v1597, %v1645
    %v1647 = vpop.f32.mrf.mxu0
    %v1648 = vadd.f32 %v1599, %v1647
    %1649 = vmatmul.bf16.gmra.mxu0 %v733
    %v1650 = vpop.f32.mrf.mxu0
    %v1651 = vadd.f32 %v1602, %v1650
    %v1652 = vpop.f32.mrf.mxu0
    %v1653 = vadd.f32 %v1604, %v1652
    %1654 = vmatmul.bf16.gmra.mxu0 %v737
    %v1655 = vpop.f32.mrf.mxu0
    %v1656 = vadd.f32 %v1607, %v1655
    %v1657 = vpop.f32.mrf.mxu0
    %v1658 = vadd.f32 %v1609, %v1657
    %1659 = vmatmul.bf16.gmra.mxu0 %v741
    %v1660 = vpop.f32.mrf.mxu0
    %v1661 = vadd.f32 %v1612, %v1660
    %v1662 = vpop.f32.mrf.mxu0
    %v1663 = vadd.f32 %v1614, %v1662
    %1664 = vmatmul.bf16.gmra.mxu0 %v745
    %v1665 = vpop.f32.mrf.mxu0
    %v1666 = vadd.f32 %v1617, %v1665
    %v1667 = vpop.f32.mrf.mxu0
    %v1668 = vadd.f32 %v1619, %v1667
    %1669 = vmatmul.bf16.gmra.mxu0 %v749
    %v1670 = vpop.f32.mrf.mxu0
    %v1671 = vadd.f32 %v1622, %v1670
    %v1672 = vpop.f32.mrf.mxu0
    %v1673 = vadd.f32 %v1624, %v1672
    %1674 = vmatmul.bf16.gmra.mxu0 %v753
    %v1675 = vpop.f32.mrf.mxu0
    %v1676 = vadd.f32 %v1627, %v1675
    %v1677 = vpop.f32.mrf.mxu0
    %v1678 = vadd.f32 %v1629, %v1677
    %1679 = vdwg.mxu0
    %1680 = vmatpush.bf16.msra.mxu0 %v1401
    %1681 = vmatpush.bf16.msra.mxu0 %v1397
    %1682 = vmatpush.bf16.msra.mxu0 %v1393
    %1683 = vmatpush.bf16.msra.mxu0 %v1389
    %1684 = vmatpush.bf16.msra.mxu0 %v1385
    %1685 = vmatpush.bf16.msra.mxu0 %v1381
    %1686 = vmatpush.bf16.msra.mxu0 %v1377
    %1687 = vmatpush.bf16.msra.mxu0 %v1373
    %1688 = vmatmul.bf16.gmra.mxu0 %v726
    %v1689 = vpop.f32.mrf.mxu0
    %v1690 = vadd.f32 %v1641, %v1689
    %v1691 = vpop.f32.mrf.mxu0
    %v1692 = vadd.f32 %v1643, %v1691
    %1693 = vmatmul.bf16.gmra.mxu0 %v730
    %v1694 = vpop.f32.mrf.mxu0
    %v1695 = vadd.f32 %v1646, %v1694
    %v1696 = vpop.f32.mrf.mxu0
    %v1697 = vadd.f32 %v1648, %v1696
    %1698 = vmatmul.bf16.gmra.mxu0 %v734
    %v1699 = vpop.f32.mrf.mxu0
    %v1700 = vadd.f32 %v1651, %v1699
    %v1701 = vpop.f32.mrf.mxu0
    %v1702 = vadd.f32 %v1653, %v1701
    %1703 = vmatmul.bf16.gmra.mxu0 %v738
    %v1704 = vpop.f32.mrf.mxu0
    %v1705 = vadd.f32 %v1656, %v1704
    %v1706 = vpop.f32.mrf.mxu0
    %v1707 = vadd.f32 %v1658, %v1706
    %1708 = vmatmul.bf16.gmra.mxu0 %v742
    %v1709 = vpop.f32.mrf.mxu0
    %v1710 = vadd.f32 %v1661, %v1709
    %v1711 = vpop.f32.mrf.mxu0
    %v1712 = vadd.f32 %v1663, %v1711
    %1713 = vmatmul.bf16.gmra.mxu0 %v746
    %v1714 = vpop.f32.mrf.mxu0
    %v1715 = vadd.f32 %v1666, %v1714
    %v1716 = vpop.f32.mrf.mxu0
    %v1717 = vadd.f32 %v1668, %v1716
    %1718 = vmatmul.bf16.gmra.mxu0 %v750
    %v1719 = vpop.f32.mrf.mxu0
    %v1720 = vadd.f32 %v1671, %v1719
    %v1721 = vpop.f32.mrf.mxu0
    %v1722 = vadd.f32 %v1673, %v1721
    %1723 = vmatmul.bf16.gmra.mxu0 %v754
    %v1724 = vpop.f32.mrf.mxu0
    %v1725 = vadd.f32 %v1676, %v1724
    %v1726 = vpop.f32.mrf.mxu0
    %v1727 = vadd.f32 %v1678, %v1726
    %1728 = vdwg.mxu0
    %1729 = vmatpush.bf16.msra.mxu0 %v1306
    %1730 = vmatpush.bf16.msra.mxu0 %v1302
    %1731 = vmatpush.bf16.msra.mxu0 %v1298
    %1732 = vmatpush.bf16.msra.mxu0 %v1294
    %1733 = vmatpush.bf16.msra.mxu0 %v1290
    %1734 = vmatpush.bf16.msra.mxu0 %v1286
    %1735 = vmatpush.bf16.msra.mxu0 %v1282
    %1736 = vmatpush.bf16.msra.mxu0 %v1278
    %1737 = vmatmul.bf16.gmra.mxu0 %v723
    %v1738 = vpop.f32.mrf.mxu0
    %v1739 = vadd.f32 %v886, %v1738
    %v1740 = vpop.f32.mrf.mxu0
    %v1741 = vadd.f32 %v886, %v1740
    %1742 = vmatmul.bf16.gmra.mxu0 %v727
    %v1743 = vpop.f32.mrf.mxu0
    %v1744 = vadd.f32 %v886, %v1743
    %v1745 = vpop.f32.mrf.mxu0
    %v1746 = vadd.f32 %v886, %v1745
    %1747 = vmatmul.bf16.gmra.mxu0 %v731
    %v1748 = vpop.f32.mrf.mxu0
    %v1749 = vadd.f32 %v886, %v1748
    %v1750 = vpop.f32.mrf.mxu0
    %v1751 = vadd.f32 %v886, %v1750
    %1752 = vmatmul.bf16.gmra.mxu0 %v735
    %v1753 = vpop.f32.mrf.mxu0
    %v1754 = vadd.f32 %v886, %v1753
    %v1755 = vpop.f32.mrf.mxu0
    %v1756 = vadd.f32 %v886, %v1755
    %1757 = vmatmul.bf16.gmra.mxu0 %v739
    %v1758 = vpop.f32.mrf.mxu0
    %v1759 = vadd.f32 %v886, %v1758
    %v1760 = vpop.f32.mrf.mxu0
    %v1761 = vadd.f32 %v886, %v1760
    %1762 = vmatmul.bf16.gmra.mxu0 %v743
    %v1763 = vpop.f32.mrf.mxu0
    %v1764 = vadd.f32 %v886, %v1763
    %v1765 = vpop.f32.mrf.mxu0
    %v1766 = vadd.f32 %v886, %v1765
    %1767 = vmatmul.bf16.gmra.mxu0 %v747
    %v1768 = vpop.f32.mrf.mxu0
    %v1769 = vadd.f32 %v886, %v1768
    %v1770 = vpop.f32.mrf.mxu0
    %v1771 = vadd.f32 %v886, %v1770
    %1772 = vmatmul.bf16.gmra.mxu0 %v751
    %v1773 = vpop.f32.mrf.mxu0
    %v1774 = vadd.f32 %v886, %v1773
    %v1775 = vpop.f32.mrf.mxu0
    %v1776 = vadd.f32 %v886, %v1775
    %1777 = vdwg.mxu0
    %1778 = vmatpush.bf16.msra.mxu0 %v1338
    %1779 = vmatpush.bf16.msra.mxu0 %v1334
    %1780 = vmatpush.bf16.msra.mxu0 %v1330
    %1781 = vmatpush.bf16.msra.mxu0 %v1326
    %1782 = vmatpush.bf16.msra.mxu0 %v1322
    %1783 = vmatpush.bf16.msra.mxu0 %v1318
    %1784 = vmatpush.bf16.msra.mxu0 %v1314
    %1785 = vmatpush.bf16.msra.mxu0 %v1310
    %1786 = vmatmul.bf16.gmra.mxu0 %v724
    %v1787 = vpop.f32.mrf.mxu0
    %v1788 = vadd.f32 %v1739, %v1787
    %v1789 = vpop.f32.mrf.mxu0
    %v1790 = vadd.f32 %v1741, %v1789
    %1791 = vmatmul.bf16.gmra.mxu0 %v728
    %v1792 = vpop.f32.mrf.mxu0
    %v1793 = vadd.f32 %v1744, %v1792
    %v1794 = vpop.f32.mrf.mxu0
    %v1795 = vadd.f32 %v1746, %v1794
    %1796 = vmatmul.bf16.gmra.mxu0 %v732
    %v1797 = vpop.f32.mrf.mxu0
    %v1798 = vadd.f32 %v1749, %v1797
    %v1799 = vpop.f32.mrf.mxu0
    %v1800 = vadd.f32 %v1751, %v1799
    %1801 = vmatmul.bf16.gmra.mxu0 %v736
    %v1802 = vpop.f32.mrf.mxu0
    %v1803 = vadd.f32 %v1754, %v1802
    %v1804 = vpop.f32.mrf.mxu0
    %v1805 = vadd.f32 %v1756, %v1804
    %1806 = vmatmul.bf16.gmra.mxu0 %v740
    %v1807 = vpop.f32.mrf.mxu0
    %v1808 = vadd.f32 %v1759, %v1807
    %v1809 = vpop.f32.mrf.mxu0
    %v1810 = vadd.f32 %v1761, %v1809
    %1811 = vmatmul.bf16.gmra.mxu0 %v744
    %v1812 = vpop.f32.mrf.mxu0
    %v1813 = vadd.f32 %v1764, %v1812
    %v1814 = vpop.f32.mrf.mxu0
    %v1815 = vadd.f32 %v1766, %v1814
    %1816 = vmatmul.bf16.gmra.mxu0 %v748
    %v1817 = vpop.f32.mrf.mxu0
    %v1818 = vadd.f32 %v1769, %v1817
    %v1819 = vpop.f32.mrf.mxu0
    %v1820 = vadd.f32 %v1771, %v1819
    %1821 = vmatmul.bf16.gmra.mxu0 %v752
    %v1822 = vpop.f32.mrf.mxu0
    %v1823 = vadd.f32 %v1774, %v1822
    %v1824 = vpop.f32.mrf.mxu0
    %v1825 = vadd.f32 %v1776, %v1824
    %1826 = vdwg.mxu0
    %1827 = vmatpush.bf16.msra.mxu0 %v1370
    %1828 = vmatpush.bf16.msra.mxu0 %v1366
    %1829 = vmatpush.bf16.msra.mxu0 %v1362
    %1830 = vmatpush.bf16.msra.mxu0 %v1358
    %1831 = vmatpush.bf16.msra.mxu0 %v1354
    %1832 = vmatpush.bf16.msra.mxu0 %v1350
    %1833 = vmatpush.bf16.msra.mxu0 %v1346
    %1834 = vmatpush.bf16.msra.mxu0 %v1342
    %1835 = vmatmul.bf16.gmra.mxu0 %v725
    %v1836 = vpop.f32.mrf.mxu0
    %v1837 = vadd.f32 %v1788, %v1836
    %v1838 = vpop.f32.mrf.mxu0
    %v1839 = vadd.f32 %v1790, %v1838
    %1840 = vmatmul.bf16.gmra.mxu0 %v729
    %v1841 = vpop.f32.mrf.mxu0
    %v1842 = vadd.f32 %v1793, %v1841
    %v1843 = vpop.f32.mrf.mxu0
    %v1844 = vadd.f32 %v1795, %v1843
    %1845 = vmatmul.bf16.gmra.mxu0 %v733
    %v1846 = vpop.f32.mrf.mxu0
    %v1847 = vadd.f32 %v1798, %v1846
    %v1848 = vpop.f32.mrf.mxu0
    %v1849 = vadd.f32 %v1800, %v1848
    %1850 = vmatmul.bf16.gmra.mxu0 %v737
    %v1851 = vpop.f32.mrf.mxu0
    %v1852 = vadd.f32 %v1803, %v1851
    %v1853 = vpop.f32.mrf.mxu0
    %v1854 = vadd.f32 %v1805, %v1853
    %1855 = vmatmul.bf16.gmra.mxu0 %v741
    %v1856 = vpop.f32.mrf.mxu0
    %v1857 = vadd.f32 %v1808, %v1856
    %v1858 = vpop.f32.mrf.mxu0
    %v1859 = vadd.f32 %v1810, %v1858
    %1860 = vmatmul.bf16.gmra.mxu0 %v745
    %v1861 = vpop.f32.mrf.mxu0
    %v1862 = vadd.f32 %v1813, %v1861
    %v1863 = vpop.f32.mrf.mxu0
    %v1864 = vadd.f32 %v1815, %v1863
    %1865 = vmatmul.bf16.gmra.mxu0 %v749
    %v1866 = vpop.f32.mrf.mxu0
    %v1867 = vadd.f32 %v1818, %v1866
    %v1868 = vpop.f32.mrf.mxu0
    %v1869 = vadd.f32 %v1820, %v1868
    %1870 = vmatmul.bf16.gmra.mxu0 %v753
    %v1871 = vpop.f32.mrf.mxu0
    %v1872 = vadd.f32 %v1823, %v1871
    %v1873 = vpop.f32.mrf.mxu0
    %v1874 = vadd.f32 %v1825, %v1873
    %1875 = vdwg.mxu0
    %1876 = vmatpush.bf16.msra.mxu0 %v1402
    %1877 = vmatpush.bf16.msra.mxu0 %v1398
    %1878 = vmatpush.bf16.msra.mxu0 %v1394
    %1879 = vmatpush.bf16.msra.mxu0 %v1390
    %1880 = vmatpush.bf16.msra.mxu0 %v1386
    %1881 = vmatpush.bf16.msra.mxu0 %v1382
    %1882 = vmatpush.bf16.msra.mxu0 %v1378
    %1883 = vmatpush.bf16.msra.mxu0 %v1374
    %1884 = vmatmul.bf16.gmra.mxu0 %v726
    %v1885 = vpop.f32.mrf.mxu0
    %v1886 = vadd.f32 %v1837, %v1885
    %v1887 = vpop.f32.mrf.mxu0
    %v1888 = vadd.f32 %v1839, %v1887
    %1889 = vmatmul.bf16.gmra.mxu0 %v730
    %v1890 = vpop.f32.mrf.mxu0
    %v1891 = vadd.f32 %v1842, %v1890
    %v1892 = vpop.f32.mrf.mxu0
    %v1893 = vadd.f32 %v1844, %v1892
    %1894 = vmatmul.bf16.gmra.mxu0 %v734
    %v1895 = vpop.f32.mrf.mxu0
    %v1896 = vadd.f32 %v1847, %v1895
    %v1897 = vpop.f32.mrf.mxu0
    %v1898 = vadd.f32 %v1849, %v1897
    %1899 = vmatmul.bf16.gmra.mxu0 %v738
    %v1900 = vpop.f32.mrf.mxu0
    %v1901 = vadd.f32 %v1852, %v1900
    %v1902 = vpop.f32.mrf.mxu0
    %v1903 = vadd.f32 %v1854, %v1902
    %1904 = vmatmul.bf16.gmra.mxu0 %v742
    %v1905 = vpop.f32.mrf.mxu0
    %v1906 = vadd.f32 %v1857, %v1905
    %v1907 = vpop.f32.mrf.mxu0
    %v1908 = vadd.f32 %v1859, %v1907
    %1909 = vmatmul.bf16.gmra.mxu0 %v746
    %v1910 = vpop.f32.mrf.mxu0
    %v1911 = vadd.f32 %v1862, %v1910
    %v1912 = vpop.f32.mrf.mxu0
    %v1913 = vadd.f32 %v1864, %v1912
    %1914 = vmatmul.bf16.gmra.mxu0 %v750
    %v1915 = vpop.f32.mrf.mxu0
    %v1916 = vadd.f32 %v1867, %v1915
    %v1917 = vpop.f32.mrf.mxu0
    %v1918 = vadd.f32 %v1869, %v1917
    %1919 = vmatmul.bf16.gmra.mxu0 %v754
    %v1920 = vpop.f32.mrf.mxu0
    %v1921 = vadd.f32 %v1872, %v1920
    %v1922 = vpop.f32.mrf.mxu0
    %v1923 = vadd.f32 %v1874, %v1922
    %1924 = vdwg.mxu0
    %1925 = vmatpush.bf16.msra.mxu0 %v1307
    %1926 = vmatpush.bf16.msra.mxu0 %v1303
    %1927 = vmatpush.bf16.msra.mxu0 %v1299
    %1928 = vmatpush.bf16.msra.mxu0 %v1295
    %1929 = vmatpush.bf16.msra.mxu0 %v1291
    %1930 = vmatpush.bf16.msra.mxu0 %v1287
    %1931 = vmatpush.bf16.msra.mxu0 %v1283
    %1932 = vmatpush.bf16.msra.mxu0 %v1279
    %1933 = vmatmul.bf16.gmra.mxu0 %v723
    %v1934 = vpop.f32.mrf.mxu0
    %v1935 = vadd.f32 %v887, %v1934
    %v1936 = vpop.f32.mrf.mxu0
    %v1937 = vadd.f32 %v887, %v1936
    %1938 = vmatmul.bf16.gmra.mxu0 %v727
    %v1939 = vpop.f32.mrf.mxu0
    %v1940 = vadd.f32 %v887, %v1939
    %v1941 = vpop.f32.mrf.mxu0
    %v1942 = vadd.f32 %v887, %v1941
    %1943 = vmatmul.bf16.gmra.mxu0 %v731
    %v1944 = vpop.f32.mrf.mxu0
    %v1945 = vadd.f32 %v887, %v1944
    %v1946 = vpop.f32.mrf.mxu0
    %v1947 = vadd.f32 %v887, %v1946
    %1948 = vmatmul.bf16.gmra.mxu0 %v735
    %v1949 = vpop.f32.mrf.mxu0
    %v1950 = vadd.f32 %v887, %v1949
    %v1951 = vpop.f32.mrf.mxu0
    %v1952 = vadd.f32 %v887, %v1951
    %1953 = vmatmul.bf16.gmra.mxu0 %v739
    %v1954 = vpop.f32.mrf.mxu0
    %v1955 = vadd.f32 %v887, %v1954
    %v1956 = vpop.f32.mrf.mxu0
    %v1957 = vadd.f32 %v887, %v1956
    %1958 = vmatmul.bf16.gmra.mxu0 %v743
    %v1959 = vpop.f32.mrf.mxu0
    %v1960 = vadd.f32 %v887, %v1959
    %v1961 = vpop.f32.mrf.mxu0
    %v1962 = vadd.f32 %v887, %v1961
    %1963 = vmatmul.bf16.gmra.mxu0 %v747
    %v1964 = vpop.f32.mrf.mxu0
    %v1965 = vadd.f32 %v887, %v1964
    %v1966 = vpop.f32.mrf.mxu0
    %v1967 = vadd.f32 %v887, %v1966
    %1968 = vmatmul.bf16.gmra.mxu0 %v751
    %v1969 = vpop.f32.mrf.mxu0
    %v1970 = vadd.f32 %v887, %v1969
    %v1971 = vpop.f32.mrf.mxu0
    %v1972 = vadd.f32 %v887, %v1971
    %1973 = vdwg.mxu0
    %1974 = vmatpush.bf16.msra.mxu0 %v1339
    %1975 = vmatpush.bf16.msra.mxu0 %v1335
    %1976 = vmatpush.bf16.msra.mxu0 %v1331
    %1977 = vmatpush.bf16.msra.mxu0 %v1327
    %1978 = vmatpush.bf16.msra.mxu0 %v1323
    %1979 = vmatpush.bf16.msra.mxu0 %v1319
    %1980 = vmatpush.bf16.msra.mxu0 %v1315
    %1981 = vmatpush.bf16.msra.mxu0 %v1311
    %1982 = vmatmul.bf16.gmra.mxu0 %v724
    %v1983 = vpop.f32.mrf.mxu0
    %v1984 = vadd.f32 %v1935, %v1983
    %v1985 = vpop.f32.mrf.mxu0
    %v1986 = vadd.f32 %v1937, %v1985
    %1987 = vmatmul.bf16.gmra.mxu0 %v728
    %v1988 = vpop.f32.mrf.mxu0
    %v1989 = vadd.f32 %v1940, %v1988
    %v1990 = vpop.f32.mrf.mxu0
    %v1991 = vadd.f32 %v1942, %v1990
    %1992 = vmatmul.bf16.gmra.mxu0 %v732
    %v1993 = vpop.f32.mrf.mxu0
    %v1994 = vadd.f32 %v1945, %v1993
    %v1995 = vpop.f32.mrf.mxu0
    %v1996 = vadd.f32 %v1947, %v1995
    %1997 = vmatmul.bf16.gmra.mxu0 %v736
    %v1998 = vpop.f32.mrf.mxu0
    %v1999 = vadd.f32 %v1950, %v1998
    %v2000 = vpop.f32.mrf.mxu0
    %v2001 = vadd.f32 %v1952, %v2000
    %2002 = vmatmul.bf16.gmra.mxu0 %v740
    %v2003 = vpop.f32.mrf.mxu0
    %v2004 = vadd.f32 %v1955, %v2003
    %v2005 = vpop.f32.mrf.mxu0
    %v2006 = vadd.f32 %v1957, %v2005
    %2007 = vmatmul.bf16.gmra.mxu0 %v744
    %v2008 = vpop.f32.mrf.mxu0
    %v2009 = vadd.f32 %v1960, %v2008
    %v2010 = vpop.f32.mrf.mxu0
    %v2011 = vadd.f32 %v1962, %v2010
    %2012 = vmatmul.bf16.gmra.mxu0 %v748
    %v2013 = vpop.f32.mrf.mxu0
    %v2014 = vadd.f32 %v1965, %v2013
    %v2015 = vpop.f32.mrf.mxu0
    %v2016 = vadd.f32 %v1967, %v2015
    %2017 = vmatmul.bf16.gmra.mxu0 %v752
    %v2018 = vpop.f32.mrf.mxu0
    %v2019 = vadd.f32 %v1970, %v2018
    %v2020 = vpop.f32.mrf.mxu0
    %v2021 = vadd.f32 %v1972, %v2020
    %2022 = vdwg.mxu0
    %2023 = vmatpush.bf16.msra.mxu0 %v1371
    %2024 = vmatpush.bf16.msra.mxu0 %v1367
    %2025 = vmatpush.bf16.msra.mxu0 %v1363
    %2026 = vmatpush.bf16.msra.mxu0 %v1359
    %2027 = vmatpush.bf16.msra.mxu0 %v1355
    %2028 = vmatpush.bf16.msra.mxu0 %v1351
    %2029 = vmatpush.bf16.msra.mxu0 %v1347
    %2030 = vmatpush.bf16.msra.mxu0 %v1343
    %2031 = vmatmul.bf16.gmra.mxu0 %v725
    %v2032 = vpop.f32.mrf.mxu0
    %v2033 = vadd.f32 %v1984, %v2032
    %v2034 = vpop.f32.mrf.mxu0
    %v2035 = vadd.f32 %v1986, %v2034
    %2036 = vmatmul.bf16.gmra.mxu0 %v729
    %v2037 = vpop.f32.mrf.mxu0
    %v2038 = vadd.f32 %v1989, %v2037
    %v2039 = vpop.f32.mrf.mxu0
    %v2040 = vadd.f32 %v1991, %v2039
    %2041 = vmatmul.bf16.gmra.mxu0 %v733
    %v2042 = vpop.f32.mrf.mxu0
    %v2043 = vadd.f32 %v1994, %v2042
    %v2044 = vpop.f32.mrf.mxu0
    %v2045 = vadd.f32 %v1996, %v2044
    %2046 = vmatmul.bf16.gmra.mxu0 %v737
    %v2047 = vpop.f32.mrf.mxu0
    %v2048 = vadd.f32 %v1999, %v2047
    %v2049 = vpop.f32.mrf.mxu0
    %v2050 = vadd.f32 %v2001, %v2049
    %2051 = vmatmul.bf16.gmra.mxu0 %v741
    %v2052 = vpop.f32.mrf.mxu0
    %v2053 = vadd.f32 %v2004, %v2052
    %v2054 = vpop.f32.mrf.mxu0
    %v2055 = vadd.f32 %v2006, %v2054
    %2056 = vmatmul.bf16.gmra.mxu0 %v745
    %v2057 = vpop.f32.mrf.mxu0
    %v2058 = vadd.f32 %v2009, %v2057
    %v2059 = vpop.f32.mrf.mxu0
    %v2060 = vadd.f32 %v2011, %v2059
    %2061 = vmatmul.bf16.gmra.mxu0 %v749
    %v2062 = vpop.f32.mrf.mxu0
    %v2063 = vadd.f32 %v2014, %v2062
    %v2064 = vpop.f32.mrf.mxu0
    %v2065 = vadd.f32 %v2016, %v2064
    %2066 = vmatmul.bf16.gmra.mxu0 %v753
    %v2067 = vpop.f32.mrf.mxu0
    %v2068 = vadd.f32 %v2019, %v2067
    %v2069 = vpop.f32.mrf.mxu0
    %v2070 = vadd.f32 %v2021, %v2069
    %2071 = vdwg.mxu0
    %2072 = vmatpush.bf16.msra.mxu0 %v1403
    %2073 = vmatpush.bf16.msra.mxu0 %v1399
    %2074 = vmatpush.bf16.msra.mxu0 %v1395
    %2075 = vmatpush.bf16.msra.mxu0 %v1391
    %2076 = vmatpush.bf16.msra.mxu0 %v1387
    %2077 = vmatpush.bf16.msra.mxu0 %v1383
    %2078 = vmatpush.bf16.msra.mxu0 %v1379
    %2079 = vmatpush.bf16.msra.mxu0 %v1375
    %2080 = vmatmul.bf16.gmra.mxu0 %v726
    %v2081 = vpop.f32.mrf.mxu0
    %v2082 = vadd.f32 %v2033, %v2081
    %v2083 = vpop.f32.mrf.mxu0
    %v2084 = vadd.f32 %v2035, %v2083
    %2085 = vmatmul.bf16.gmra.mxu0 %v730
    %v2086 = vpop.f32.mrf.mxu0
    %v2087 = vadd.f32 %v2038, %v2086
    %v2088 = vpop.f32.mrf.mxu0
    %v2089 = vadd.f32 %v2040, %v2088
    %2090 = vmatmul.bf16.gmra.mxu0 %v734
    %v2091 = vpop.f32.mrf.mxu0
    %v2092 = vadd.f32 %v2043, %v2091
    %v2093 = vpop.f32.mrf.mxu0
    %v2094 = vadd.f32 %v2045, %v2093
    %2095 = vmatmul.bf16.gmra.mxu0 %v738
    %v2096 = vpop.f32.mrf.mxu0
    %v2097 = vadd.f32 %v2048, %v2096
    %v2098 = vpop.f32.mrf.mxu0
    %v2099 = vadd.f32 %v2050, %v2098
    %2100 = vmatmul.bf16.gmra.mxu0 %v742
    %v2101 = vpop.f32.mrf.mxu0
    %v2102 = vadd.f32 %v2053, %v2101
    %v2103 = vpop.f32.mrf.mxu0
    %v2104 = vadd.f32 %v2055, %v2103
    %2105 = vmatmul.bf16.gmra.mxu0 %v746
    %v2106 = vpop.f32.mrf.mxu0
    %v2107 = vadd.f32 %v2058, %v2106
    %v2108 = vpop.f32.mrf.mxu0
    %v2109 = vadd.f32 %v2060, %v2108
    %2110 = vmatmul.bf16.gmra.mxu0 %v750
    %v2111 = vpop.f32.mrf.mxu0
    %v2112 = vadd.f32 %v2063, %v2111
    %v2113 = vpop.f32.mrf.mxu0
    %v2114 = vadd.f32 %v2065, %v2113
    %2115 = vmatmul.bf16.gmra.mxu0 %v754
    %v2116 = vpop.f32.mrf.mxu0
    %v2117 = vadd.f32 %v2068, %v2116
    %v2118 = vpop.f32.mrf.mxu0
    %v2119 = vadd.f32 %v2070, %v2118
    %2120 = vdwg.mxu0
    %2121 = vmatpush.bf16.msra.mxu0 %v1308
    %2122 = vmatpush.bf16.msra.mxu0 %v1304
    %2123 = vmatpush.bf16.msra.mxu0 %v1300
    %2124 = vmatpush.bf16.msra.mxu0 %v1296
    %2125 = vmatpush.bf16.msra.mxu0 %v1292
    %2126 = vmatpush.bf16.msra.mxu0 %v1288
    %2127 = vmatpush.bf16.msra.mxu0 %v1284
    %2128 = vmatpush.bf16.msra.mxu0 %v1280
    %2129 = vmatmul.bf16.gmra.mxu0 %v723
    %v2130 = vpop.f32.mrf.mxu0
    %v2131 = vadd.f32 %v888, %v2130
    %v2132 = vpop.f32.mrf.mxu0
    %v2133 = vadd.f32 %v888, %v2132
    %2134 = vmatmul.bf16.gmra.mxu0 %v727
    %v2135 = vpop.f32.mrf.mxu0
    %v2136 = vadd.f32 %v888, %v2135
    %v2137 = vpop.f32.mrf.mxu0
    %v2138 = vadd.f32 %v888, %v2137
    %2139 = vmatmul.bf16.gmra.mxu0 %v731
    %v2140 = vpop.f32.mrf.mxu0
    %v2141 = vadd.f32 %v888, %v2140
    %v2142 = vpop.f32.mrf.mxu0
    %v2143 = vadd.f32 %v888, %v2142
    %2144 = vmatmul.bf16.gmra.mxu0 %v735
    %v2145 = vpop.f32.mrf.mxu0
    %v2146 = vadd.f32 %v888, %v2145
    %v2147 = vpop.f32.mrf.mxu0
    %v2148 = vadd.f32 %v888, %v2147
    %2149 = vmatmul.bf16.gmra.mxu0 %v739
    %v2150 = vpop.f32.mrf.mxu0
    %v2151 = vadd.f32 %v888, %v2150
    %v2152 = vpop.f32.mrf.mxu0
    %v2153 = vadd.f32 %v888, %v2152
    %2154 = vmatmul.bf16.gmra.mxu0 %v743
    %v2155 = vpop.f32.mrf.mxu0
    %v2156 = vadd.f32 %v888, %v2155
    %v2157 = vpop.f32.mrf.mxu0
    %v2158 = vadd.f32 %v888, %v2157
    %2159 = vmatmul.bf16.gmra.mxu0 %v747
    %v2160 = vpop.f32.mrf.mxu0
    %v2161 = vadd.f32 %v888, %v2160
    %v2162 = vpop.f32.mrf.mxu0
    %v2163 = vadd.f32 %v888, %v2162
    %2164 = vmatmul.bf16.gmra.mxu0 %v751
    %v2165 = vpop.f32.mrf.mxu0
    %v2166 = vadd.f32 %v888, %v2165
    %v2167 = vpop.f32.mrf.mxu0
    %v2168 = vadd.f32 %v888, %v2167
    %2169 = vdwg.mxu0
    %2170 = vmatpush.bf16.msra.mxu0 %v1340
    %2171 = vmatpush.bf16.msra.mxu0 %v1336
    %2172 = vmatpush.bf16.msra.mxu0 %v1332
    %2173 = vmatpush.bf16.msra.mxu0 %v1328
    %2174 = vmatpush.bf16.msra.mxu0 %v1324
    %2175 = vmatpush.bf16.msra.mxu0 %v1320
    %2176 = vmatpush.bf16.msra.mxu0 %v1316
    %2177 = vmatpush.bf16.msra.mxu0 %v1312
    %2178 = vmatmul.bf16.gmra.mxu0 %v724
    %v2179 = vpop.f32.mrf.mxu0
    %v2180 = vadd.f32 %v2131, %v2179
    %v2181 = vpop.f32.mrf.mxu0
    %v2182 = vadd.f32 %v2133, %v2181
    %2183 = vmatmul.bf16.gmra.mxu0 %v728
    %v2184 = vpop.f32.mrf.mxu0
    %v2185 = vadd.f32 %v2136, %v2184
    %v2186 = vpop.f32.mrf.mxu0
    %v2187 = vadd.f32 %v2138, %v2186
    %2188 = vmatmul.bf16.gmra.mxu0 %v732
    %v2189 = vpop.f32.mrf.mxu0
    %v2190 = vadd.f32 %v2141, %v2189
    %v2191 = vpop.f32.mrf.mxu0
    %v2192 = vadd.f32 %v2143, %v2191
    %2193 = vmatmul.bf16.gmra.mxu0 %v736
    %v2194 = vpop.f32.mrf.mxu0
    %v2195 = vadd.f32 %v2146, %v2194
    %v2196 = vpop.f32.mrf.mxu0
    %v2197 = vadd.f32 %v2148, %v2196
    %2198 = vmatmul.bf16.gmra.mxu0 %v740
    %v2199 = vpop.f32.mrf.mxu0
    %v2200 = vadd.f32 %v2151, %v2199
    %v2201 = vpop.f32.mrf.mxu0
    %v2202 = vadd.f32 %v2153, %v2201
    %2203 = vmatmul.bf16.gmra.mxu0 %v744
    %v2204 = vpop.f32.mrf.mxu0
    %v2205 = vadd.f32 %v2156, %v2204
    %v2206 = vpop.f32.mrf.mxu0
    %v2207 = vadd.f32 %v2158, %v2206
    %2208 = vmatmul.bf16.gmra.mxu0 %v748
    %v2209 = vpop.f32.mrf.mxu0
    %v2210 = vadd.f32 %v2161, %v2209
    %v2211 = vpop.f32.mrf.mxu0
    %v2212 = vadd.f32 %v2163, %v2211
    %2213 = vmatmul.bf16.gmra.mxu0 %v752
    %v2214 = vpop.f32.mrf.mxu0
    %v2215 = vadd.f32 %v2166, %v2214
    %v2216 = vpop.f32.mrf.mxu0
    %v2217 = vadd.f32 %v2168, %v2216
    %2218 = vdwg.mxu0
    %2219 = vmatpush.bf16.msra.mxu0 %v1372
    %2220 = vmatpush.bf16.msra.mxu0 %v1368
    %2221 = vmatpush.bf16.msra.mxu0 %v1364
    %2222 = vmatpush.bf16.msra.mxu0 %v1360
    %2223 = vmatpush.bf16.msra.mxu0 %v1356
    %2224 = vmatpush.bf16.msra.mxu0 %v1352
    %2225 = vmatpush.bf16.msra.mxu0 %v1348
    %2226 = vmatpush.bf16.msra.mxu0 %v1344
    %2227 = vmatmul.bf16.gmra.mxu0 %v725
    %v2228 = vpop.f32.mrf.mxu0
    %v2229 = vadd.f32 %v2180, %v2228
    %v2230 = vpop.f32.mrf.mxu0
    %v2231 = vadd.f32 %v2182, %v2230
    %2232 = vmatmul.bf16.gmra.mxu0 %v729
    %v2233 = vpop.f32.mrf.mxu0
    %v2234 = vadd.f32 %v2185, %v2233
    %v2235 = vpop.f32.mrf.mxu0
    %v2236 = vadd.f32 %v2187, %v2235
    %2237 = vmatmul.bf16.gmra.mxu0 %v733
    %v2238 = vpop.f32.mrf.mxu0
    %v2239 = vadd.f32 %v2190, %v2238
    %v2240 = vpop.f32.mrf.mxu0
    %v2241 = vadd.f32 %v2192, %v2240
    %2242 = vmatmul.bf16.gmra.mxu0 %v737
    %v2243 = vpop.f32.mrf.mxu0
    %v2244 = vadd.f32 %v2195, %v2243
    %v2245 = vpop.f32.mrf.mxu0
    %v2246 = vadd.f32 %v2197, %v2245
    %2247 = vmatmul.bf16.gmra.mxu0 %v741
    %v2248 = vpop.f32.mrf.mxu0
    %v2249 = vadd.f32 %v2200, %v2248
    %v2250 = vpop.f32.mrf.mxu0
    %v2251 = vadd.f32 %v2202, %v2250
    %2252 = vmatmul.bf16.gmra.mxu0 %v745
    %v2253 = vpop.f32.mrf.mxu0
    %v2254 = vadd.f32 %v2205, %v2253
    %v2255 = vpop.f32.mrf.mxu0
    %v2256 = vadd.f32 %v2207, %v2255
    %2257 = vmatmul.bf16.gmra.mxu0 %v749
    %v2258 = vpop.f32.mrf.mxu0
    %v2259 = vadd.f32 %v2210, %v2258
    %v2260 = vpop.f32.mrf.mxu0
    %v2261 = vadd.f32 %v2212, %v2260
    %2262 = vmatmul.bf16.gmra.mxu0 %v753
    %v2263 = vpop.f32.mrf.mxu0
    %v2264 = vadd.f32 %v2215, %v2263
    %v2265 = vpop.f32.mrf.mxu0
    %v2266 = vadd.f32 %v2217, %v2265
    %2267 = vdwg.mxu0
    %2268 = vmatpush.bf16.msra.mxu0 %v1404
    %2269 = vmatpush.bf16.msra.mxu0 %v1400
    %2270 = vmatpush.bf16.msra.mxu0 %v1396
    %2271 = vmatpush.bf16.msra.mxu0 %v1392
    %2272 = vmatpush.bf16.msra.mxu0 %v1388
    %2273 = vmatpush.bf16.msra.mxu0 %v1384
    %2274 = vmatpush.bf16.msra.mxu0 %v1380
    %2275 = vmatpush.bf16.msra.mxu0 %v1376
    %2276 = vmatmul.bf16.gmra.mxu0 %v726
    %v2277 = vpop.f32.mrf.mxu0
    %v2278 = vadd.f32 %v2229, %v2277
    %v2279 = vpop.f32.mrf.mxu0
    %v2280 = vadd.f32 %v2231, %v2279
    %2281 = vmatmul.bf16.gmra.mxu0 %v730
    %v2282 = vpop.f32.mrf.mxu0
    %v2283 = vadd.f32 %v2234, %v2282
    %v2284 = vpop.f32.mrf.mxu0
    %v2285 = vadd.f32 %v2236, %v2284
    %2286 = vmatmul.bf16.gmra.mxu0 %v734
    %v2287 = vpop.f32.mrf.mxu0
    %v2288 = vadd.f32 %v2239, %v2287
    %v2289 = vpop.f32.mrf.mxu0
    %v2290 = vadd.f32 %v2241, %v2289
    %2291 = vmatmul.bf16.gmra.mxu0 %v738
    %v2292 = vpop.f32.mrf.mxu0
    %v2293 = vadd.f32 %v2244, %v2292
    %v2294 = vpop.f32.mrf.mxu0
    %v2295 = vadd.f32 %v2246, %v2294
    %2296 = vmatmul.bf16.gmra.mxu0 %v742
    %v2297 = vpop.f32.mrf.mxu0
    %v2298 = vadd.f32 %v2249, %v2297
    %v2299 = vpop.f32.mrf.mxu0
    %v2300 = vadd.f32 %v2251, %v2299
    %2301 = vmatmul.bf16.gmra.mxu0 %v746
    %v2302 = vpop.f32.mrf.mxu0
    %v2303 = vadd.f32 %v2254, %v2302
    %v2304 = vpop.f32.mrf.mxu0
    %v2305 = vadd.f32 %v2256, %v2304
    %2306 = vmatmul.bf16.gmra.mxu0 %v750
    %v2307 = vpop.f32.mrf.mxu0
    %v2308 = vadd.f32 %v2259, %v2307
    %v2309 = vpop.f32.mrf.mxu0
    %v2310 = vadd.f32 %v2261, %v2309
    %2311 = vmatmul.bf16.gmra.mxu0 %v754
    %v2312 = vpop.f32.mrf.mxu0
    %v2313 = vadd.f32 %v2264, %v2312
    %v2314 = vpop.f32.mrf.mxu0
    %v2315 = vadd.f32 %v2266, %v2314
    %2316 = vdwg.mxu0
    %v2317 = vmax.f32 %v1690, 0.0
    %v2318 = vmax.f32 %v1886, 0.0
    %v2319 = vmax.f32 %v2082, 0.0
    %v2320 = vmax.f32 %v2278, 0.0
    %v2321 = vmax.f32 %v1692, 0.0
    %v2322 = vmax.f32 %v1888, 0.0
    %v2323 = vmax.f32 %v2084, 0.0
    %v2324 = vmax.f32 %v2280, 0.0
    %v2325 = vmax.f32 %v1695, 0.0
    %v2326 = vmax.f32 %v1891, 0.0
    %v2327 = vmax.f32 %v2087, 0.0
    %v2328 = vmax.f32 %v2283, 0.0
    %v2329 = vmax.f32 %v1697, 0.0
    %v2330 = vmax.f32 %v1893, 0.0
    %v2331 = vmax.f32 %v2089, 0.0
    %v2332 = vmax.f32 %v2285, 0.0
    %v2333 = vmax.f32 %v1700, 0.0
    %v2334 = vmax.f32 %v1896, 0.0
    %v2335 = vmax.f32 %v2092, 0.0
    %v2336 = vmax.f32 %v2288, 0.0
    %v2337 = vmax.f32 %v1702, 0.0
    %v2338 = vmax.f32 %v1898, 0.0
    %v2339 = vmax.f32 %v2094, 0.0
    %v2340 = vmax.f32 %v2290, 0.0
    %v2341 = vmax.f32 %v1705, 0.0
    %v2342 = vmax.f32 %v1901, 0.0
    %v2343 = vmax.f32 %v2097, 0.0
    %v2344 = vmax.f32 %v2293, 0.0
    %v2345 = vmax.f32 %v1707, 0.0
    %v2346 = vmax.f32 %v1903, 0.0
    %v2347 = vmax.f32 %v2099, 0.0
    %v2348 = vmax.f32 %v2295, 0.0
    %v2349 = vmax.f32 %v1710, 0.0
    %v2350 = vmax.f32 %v1906, 0.0
    %v2351 = vmax.f32 %v2102, 0.0
    %v2352 = vmax.f32 %v2298, 0.0
    %v2353 = vmax.f32 %v1712, 0.0
    %v2354 = vmax.f32 %v1908, 0.0
    %v2355 = vmax.f32 %v2104, 0.0
    %v2356 = vmax.f32 %v2300, 0.0
    %v2357 = vmax.f32 %v1715, 0.0
    %v2358 = vmax.f32 %v1911, 0.0
    %v2359 = vmax.f32 %v2107, 0.0
    %v2360 = vmax.f32 %v2303, 0.0
    %v2361 = vmax.f32 %v1717, 0.0
    %v2362 = vmax.f32 %v1913, 0.0
    %v2363 = vmax.f32 %v2109, 0.0
    %v2364 = vmax.f32 %v2305, 0.0
    %v2365 = vmax.f32 %v1720, 0.0
    %v2366 = vmax.f32 %v1916, 0.0
    %v2367 = vmax.f32 %v2112, 0.0
    %v2368 = vmax.f32 %v2308, 0.0
    %v2369 = vmax.f32 %v1722, 0.0
    %v2370 = vmax.f32 %v1918, 0.0
    %v2371 = vmax.f32 %v2114, 0.0
    %v2372 = vmax.f32 %v2310, 0.0
    %v2373 = vmax.f32 %v1725, 0.0
    %v2374 = vmax.f32 %v1921, 0.0
    %v2375 = vmax.f32 %v2117, 0.0
    %v2376 = vmax.f32 %v2313, 0.0
    %v2377 = vmax.f32 %v1727, 0.0
    %v2378 = vmax.f32 %v1923, 0.0
    %v2379 = vmax.f32 %v2119, 0.0
    %v2380 = vmax.f32 %v2315, 0.0
    %v2381 = vpack.c.bf16 %v2321, %v2317
    %v2382 = vpack.c.bf16 %v2322, %v2318
    %v2383 = vpack.c.bf16 %v2323, %v2319
    %v2384 = vpack.c.bf16 %v2324, %v2320
    %v2385 = vpack.c.bf16 %v2329, %v2325
    %v2386 = vpack.c.bf16 %v2330, %v2326
    %v2387 = vpack.c.bf16 %v2331, %v2327
    %v2388 = vpack.c.bf16 %v2332, %v2328
    %v2389 = vpack.c.bf16 %v2337, %v2333
    %v2390 = vpack.c.bf16 %v2338, %v2334
    %v2391 = vpack.c.bf16 %v2339, %v2335
    %v2392 = vpack.c.bf16 %v2340, %v2336
    %v2393 = vpack.c.bf16 %v2345, %v2341
    %v2394 = vpack.c.bf16 %v2346, %v2342
    %v2395 = vpack.c.bf16 %v2347, %v2343
    %v2396 = vpack.c.bf16 %v2348, %v2344
    %v2397 = vpack.c.bf16 %v2353, %v2349
    %v2398 = vpack.c.bf16 %v2354, %v2350
    %v2399 = vpack.c.bf16 %v2355, %v2351
    %v2400 = vpack.c.bf16 %v2356, %v2352
    %v2401 = vpack.c.bf16 %v2361, %v2357
    %v2402 = vpack.c.bf16 %v2362, %v2358
    %v2403 = vpack.c.bf16 %v2363, %v2359
    %v2404 = vpack.c.bf16 %v2364, %v2360
    %v2405 = vpack.c.bf16 %v2369, %v2365
    %v2406 = vpack.c.bf16 %v2370, %v2366
    %v2407 = vpack.c.bf16 %v2371, %v2367
    %v2408 = vpack.c.bf16 %v2372, %v2368
    %v2409 = vpack.c.bf16 %v2377, %v2373
    %v2410 = vpack.c.bf16 %v2378, %v2374
    %v2411 = vpack.c.bf16 %v2379, %v2375
    %v2412 = vpack.c.bf16 %v2380, %v2376
    %v2413 = vld [vmem:[#allocation11] sm:$0xff]
    %v2414 = vld [vmem:[#allocation11 + $0x8] sm:$0xff]
    %v2415 = vld [vmem:[#allocation11 + $0x10] sm:$0xff]
    %v2416 = vld [vmem:[#allocation11 + $0x18] sm:$0xff]
    %v2417 = vld [vmem:[#allocation11 + $0x20] sm:$0xff]
    %v2418 = vld [vmem:[#allocation11 + $0x28] sm:$0xff]
    %v2419 = vld [vmem:[#allocation11 + $0x30] sm:$0xff]
    %v2420 = vld [vmem:[#allocation11 + $0x38] sm:$0xff]
    %v2421 = vld [vmem:[#allocation11 + $0x40] sm:$0xff]
    %v2422 = vld [vmem:[#allocation11 + $0x48] sm:$0xff]
    %v2423 = vld [vmem:[#allocation11 + $0x50] sm:$0xff]
    %v2424 = vld [vmem:[#allocation11 + $0x58] sm:$0xff]
    %v2425 = vld [vmem:[#allocation11 + $0x60] sm:$0xff]
    %v2426 = vld [vmem:[#allocation11 + $0x68] sm:$0xff]
    %v2427 = vld [vmem:[#allocation11 + $0x70] sm:$0xff]
    %v2428 = vld [vmem:[#allocation11 + $0x78] sm:$0xff]
    %v2429 = vld [vmem:[#allocation11 + $0x80] sm:$0xff]
    %v2430 = vld [vmem:[#allocation11 + $0x88] sm:$0xff]
    %v2431 = vld [vmem:[#allocation11 + $0x90] sm:$0xff]
    %v2432 = vld [vmem:[#allocation11 + $0x98] sm:$0xff]
    %v2433 = vld [vmem:[#allocation11 + $0xa0] sm:$0xff]
    %v2434 = vld [vmem:[#allocation11 + $0xa8] sm:$0xff]
    %v2435 = vld [vmem:[#allocation11 + $0xb0] sm:$0xff]
    %v2436 = vld [vmem:[#allocation11 + $0xb8] sm:$0xff]
    %v2437 = vld [vmem:[#allocation11 + $0xc0] sm:$0xff]
    %v2438 = vld [vmem:[#allocation11 + $0xc8] sm:$0xff]
    %v2439 = vld [vmem:[#allocation11 + $0xd0] sm:$0xff]
    %v2440 = vld [vmem:[#allocation11 + $0xd8] sm:$0xff]
    %v2441 = vld [vmem:[#allocation11 + $0xe0] sm:$0xff]
    %v2442 = vld [vmem:[#allocation11 + $0xe8] sm:$0xff]
    %v2443 = vld [vmem:[#allocation11 + $0xf0] sm:$0xff]
    %v2444 = vld [vmem:[#allocation11 + $0xf8] sm:$0xff]
    %v2445 = vld [vmem:[#allocation11 + $0x100] sm:$0xff]
    %v2446 = vld [vmem:[#allocation11 + $0x108] sm:$0xff]
    %v2447 = vld [vmem:[#allocation11 + $0x110] sm:$0xff]
    %v2448 = vld [vmem:[#allocation11 + $0x118] sm:$0xff]
    %v2449 = vld [vmem:[#allocation11 + $0x120] sm:$0xff]
    %v2450 = vld [vmem:[#allocation11 + $0x128] sm:$0xff]
    %v2451 = vld [vmem:[#allocation11 + $0x130] sm:$0xff]
    %v2452 = vld [vmem:[#allocation11 + $0x138] sm:$0xff]
    %v2453 = vld [vmem:[#allocation11 + $0x140] sm:$0xff]
    %v2454 = vld [vmem:[#allocation11 + $0x148] sm:$0xff]
    %v2455 = vld [vmem:[#allocation11 + $0x150] sm:$0xff]
    %v2456 = vld [vmem:[#allocation11 + $0x158] sm:$0xff]
    %v2457 = vld [vmem:[#allocation11 + $0x160] sm:$0xff]
    %v2458 = vld [vmem:[#allocation11 + $0x168] sm:$0xff]
    %v2459 = vld [vmem:[#allocation11 + $0x170] sm:$0xff]
    %v2460 = vld [vmem:[#allocation11 + $0x178] sm:$0xff]
    %v2461 = vld [vmem:[#allocation11 + $0x180] sm:$0xff]
    %v2462 = vld [vmem:[#allocation11 + $0x188] sm:$0xff]
    %v2463 = vld [vmem:[#allocation11 + $0x190] sm:$0xff]
    %v2464 = vld [vmem:[#allocation11 + $0x198] sm:$0xff]
    %v2465 = vld [vmem:[#allocation11 + $0x1a0] sm:$0xff]
    %v2466 = vld [vmem:[#allocation11 + $0x1a8] sm:$0xff]
    %v2467 = vld [vmem:[#allocation11 + $0x1b0] sm:$0xff]
    %v2468 = vld [vmem:[#allocation11 + $0x1b8] sm:$0xff]
    %v2469 = vld [vmem:[#allocation11 + $0x1c0] sm:$0xff]
    %v2470 = vld [vmem:[#allocation11 + $0x1c8] sm:$0xff]
    %v2471 = vld [vmem:[#allocation11 + $0x1d0] sm:$0xff]
    %v2472 = vld [vmem:[#allocation11 + $0x1d8] sm:$0xff]
    %v2473 = vld [vmem:[#allocation11 + $0x1e0] sm:$0xff]
    %v2474 = vld [vmem:[#allocation11 + $0x1e8] sm:$0xff]
    %v2475 = vld [vmem:[#allocation11 + $0x1f0] sm:$0xff]
    %v2476 = vld [vmem:[#allocation11 + $0x1f8] sm:$0xff]
    %v2477 = vld [vmem:[%s5] sm:$0x3]
    %v2479 = vperm.slane %v2477, 0
    %v2480 = vperm.slane %v2477, 1
    %v2547 = vunpack.c.l.b16 %v2413
    %v2548 = vunpack.c.h.b16 %v2413
    %v2549 = vunpack.c.l.b16 %v2414
    %v2550 = vunpack.c.h.b16 %v2414
    %v2551 = vunpack.c.l.b16 %v2415
    %v2552 = vunpack.c.h.b16 %v2415
    %v2553 = vunpack.c.l.b16 %v2416
    %v2554 = vunpack.c.h.b16 %v2416
    %v2555 = vunpack.c.l.b16 %v2417
    %v2556 = vunpack.c.h.b16 %v2417
    %v2557 = vunpack.c.l.b16 %v2418
    %v2558 = vunpack.c.h.b16 %v2418
    %v2559 = vunpack.c.l.b16 %v2419
    %v2560 = vunpack.c.h.b16 %v2419
    %v2561 = vunpack.c.l.b16 %v2420
    %v2562 = vunpack.c.h.b16 %v2420
    %v2563 = vunpack.c.l.b16 %v2421
    %v2564 = vunpack.c.h.b16 %v2421
    %v2565 = vunpack.c.l.b16 %v2422
    %v2566 = vunpack.c.h.b16 %v2422
    %v2567 = vunpack.c.l.b16 %v2423
    %v2568 = vunpack.c.h.b16 %v2423
    %v2569 = vunpack.c.l.b16 %v2424
    %v2570 = vunpack.c.h.b16 %v2424
    %v2571 = vunpack.c.l.b16 %v2425
    %v2572 = vunpack.c.h.b16 %v2425
    %v2573 = vunpack.c.l.b16 %v2426
    %v2574 = vunpack.c.h.b16 %v2426
    %v2575 = vunpack.c.l.b16 %v2427
    %v2576 = vunpack.c.h.b16 %v2427
    %v2577 = vunpack.c.l.b16 %v2428
    %v2578 = vunpack.c.h.b16 %v2428
    %v2579 = vunpack.c.l.b16 %v2429
    %v2580 = vunpack.c.h.b16 %v2429
    %v2581 = vunpack.c.l.b16 %v2430
    %v2582 = vunpack.c.h.b16 %v2430
    %v2583 = vunpack.c.l.b16 %v2431
    %v2584 = vunpack.c.h.b16 %v2431
    %v2585 = vunpack.c.l.b16 %v2432
    %v2586 = vunpack.c.h.b16 %v2432
    %v2587 = vunpack.c.l.b16 %v2433
    %v2588 = vunpack.c.h.b16 %v2433
    %v2589 = vunpack.c.l.b16 %v2434
    %v2590 = vunpack.c.h.b16 %v2434
    %v2591 = vunpack.c.l.b16 %v2435
    %v2592 = vunpack.c.h.b16 %v2435
    %v2593 = vunpack.c.l.b16 %v2436
    %v2594 = vunpack.c.h.b16 %v2436
    %v2595 = vunpack.c.l.b16 %v2437
    %v2596 = vunpack.c.h.b16 %v2437
    %v2597 = vunpack.c.l.b16 %v2438
    %v2598 = vunpack.c.h.b16 %v2438
    %v2599 = vunpack.c.l.b16 %v2439
    %v2600 = vunpack.c.h.b16 %v2439
    %v2601 = vunpack.c.l.b16 %v2440
    %v2602 = vunpack.c.h.b16 %v2440
    %v2603 = vunpack.c.l.b16 %v2441
    %v2604 = vunpack.c.h.b16 %v2441
    %v2605 = vunpack.c.l.b16 %v2442
    %v2606 = vunpack.c.h.b16 %v2442
    %v2607 = vunpack.c.l.b16 %v2443
    %v2608 = vunpack.c.h.b16 %v2443
    %v2609 = vunpack.c.l.b16 %v2444
    %v2610 = vunpack.c.h.b16 %v2444
    %v2611 = vunpack.c.l.b16 %v2445
    %v2612 = vunpack.c.h.b16 %v2445
    %v2613 = vunpack.c.l.b16 %v2446
    %v2614 = vunpack.c.h.b16 %v2446
    %v2615 = vunpack.c.l.b16 %v2447
    %v2616 = vunpack.c.h.b16 %v2447
    %v2617 = vunpack.c.l.b16 %v2448
    %v2618 = vunpack.c.h.b16 %v2448
    %v2619 = vunpack.c.l.b16 %v2449
    %v2620 = vunpack.c.h.b16 %v2449
    %v2621 = vunpack.c.l.b16 %v2450
    %v2622 = vunpack.c.h.b16 %v2450
    %v2623 = vunpack.c.l.b16 %v2451
    %v2624 = vunpack.c.h.b16 %v2451
    %v2625 = vunpack.c.l.b16 %v2452
    %v2626 = vunpack.c.h.b16 %v2452
    %v2627 = vunpack.c.l.b16 %v2453
    %v2628 = vunpack.c.h.b16 %v2453
    %v2629 = vunpack.c.l.b16 %v2454
    %v2630 = vunpack.c.h.b16 %v2454
    %v2631 = vunpack.c.l.b16 %v2455
    %v2632 = vunpack.c.h.b16 %v2455
    %v2633 = vunpack.c.l.b16 %v2456
    %v2634 = vunpack.c.h.b16 %v2456
    %v2635 = vunpack.c.l.b16 %v2457
    %v2636 = vunpack.c.h.b16 %v2457
    %v2637 = vunpack.c.l.b16 %v2458
    %v2638 = vunpack.c.h.b16 %v2458
    %v2639 = vunpack.c.l.b16 %v2459
    %v2640 = vunpack.c.h.b16 %v2459
    %v2641 = vunpack.c.l.b16 %v2460
    %v2642 = vunpack.c.h.b16 %v2460
    %v2643 = vunpack.c.l.b16 %v2461
    %v2644 = vunpack.c.h.b16 %v2461
    %v2645 = vunpack.c.l.b16 %v2462
    %v2646 = vunpack.c.h.b16 %v2462
    %v2647 = vunpack.c.l.b16 %v2463
    %v2648 = vunpack.c.h.b16 %v2463
    %v2649 = vunpack.c.l.b16 %v2464
    %v2650 = vunpack.c.h.b16 %v2464
    %v2651 = vunpack.c.l.b16 %v2465
    %v2652 = vunpack.c.h.b16 %v2465
    %v2653 = vunpack.c.l.b16 %v2466
    %v2654 = vunpack.c.h.b16 %v2466
    %v2655 = vunpack.c.l.b16 %v2467
    %v2656 = vunpack.c.h.b16 %v2467
    %v2657 = vunpack.c.l.b16 %v2468
    %v2658 = vunpack.c.h.b16 %v2468
    %v2659 = vunpack.c.l.b16 %v2469
    %v2660 = vunpack.c.h.b16 %v2469
    %v2661 = vunpack.c.l.b16 %v2470
    %v2662 = vunpack.c.h.b16 %v2470
    %v2663 = vunpack.c.l.b16 %v2471
    %v2664 = vunpack.c.h.b16 %v2471
    %v2665 = vunpack.c.l.b16 %v2472
    %v2666 = vunpack.c.h.b16 %v2472
    %v2667 = vunpack.c.l.b16 %v2473
    %v2668 = vunpack.c.h.b16 %v2473
    %v2669 = vunpack.c.l.b16 %v2474
    %v2670 = vunpack.c.h.b16 %v2474
    %v2671 = vunpack.c.l.b16 %v2475
    %v2672 = vunpack.c.h.b16 %v2475
    %v2673 = vunpack.c.l.b16 %v2476
    %v2674 = vunpack.c.h.b16 %v2476
    %v2675 = vpack.c.b16 %v2549, %v2547
    %v2676 = vpack.c.b16 %v2550, %v2548
    %v2677 = vpack.c.b16 %v2553, %v2551
    %v2678 = vpack.c.b16 %v2554, %v2552
    %v2679 = vpack.c.b16 %v2557, %v2555
    %v2680 = vpack.c.b16 %v2558, %v2556
    %v2681 = vpack.c.b16 %v2561, %v2559
    %v2682 = vpack.c.b16 %v2562, %v2560
    %v2683 = vpack.c.b16 %v2565, %v2563
    %v2684 = vpack.c.b16 %v2566, %v2564
    %v2685 = vpack.c.b16 %v2569, %v2567
    %v2686 = vpack.c.b16 %v2570, %v2568
    %v2687 = vpack.c.b16 %v2573, %v2571
    %v2688 = vpack.c.b16 %v2574, %v2572
    %v2689 = vpack.c.b16 %v2577, %v2575
    %v2690 = vpack.c.b16 %v2578, %v2576
    %v2691 = vpack.c.b16 %v2581, %v2579
    %v2692 = vpack.c.b16 %v2582, %v2580
    %v2693 = vpack.c.b16 %v2585, %v2583
    %v2694 = vpack.c.b16 %v2586, %v2584
    %v2695 = vpack.c.b16 %v2589, %v2587
    %v2696 = vpack.c.b16 %v2590, %v2588
    %v2697 = vpack.c.b16 %v2593, %v2591
    %v2698 = vpack.c.b16 %v2594, %v2592
    %v2699 = vpack.c.b16 %v2597, %v2595
    %v2700 = vpack.c.b16 %v2598, %v2596
    %v2701 = vpack.c.b16 %v2601, %v2599
    %v2702 = vpack.c.b16 %v2602, %v2600
    %v2703 = vpack.c.b16 %v2605, %v2603
    %v2704 = vpack.c.b16 %v2606, %v2604
    %v2705 = vpack.c.b16 %v2609, %v2607
    %v2706 = vpack.c.b16 %v2610, %v2608
    %v2707 = vpack.c.b16 %v2613, %v2611
    %v2708 = vpack.c.b16 %v2614, %v2612
    %v2709 = vpack.c.b16 %v2617, %v2615
    %v2710 = vpack.c.b16 %v2618, %v2616
    %v2711 = vpack.c.b16 %v2621, %v2619
    %v2712 = vpack.c.b16 %v2622, %v2620
    %v2713 = vpack.c.b16 %v2625, %v2623
    %v2714 = vpack.c.b16 %v2626, %v2624
    %v2715 = vpack.c.b16 %v2629, %v2627
    %v2716 = vpack.c.b16 %v2630, %v2628
    %v2717 = vpack.c.b16 %v2633, %v2631
    %v2718 = vpack.c.b16 %v2634, %v2632
    %v2719 = vpack.c.b16 %v2637, %v2635
    %v2720 = vpack.c.b16 %v2638, %v2636
    %v2721 = vpack.c.b16 %v2641, %v2639
    %v2722 = vpack.c.b16 %v2642, %v2640
    %v2723 = vpack.c.b16 %v2645, %v2643
    %v2724 = vpack.c.b16 %v2646, %v2644
    %v2725 = vpack.c.b16 %v2649, %v2647
    %v2726 = vpack.c.b16 %v2650, %v2648
    %v2727 = vpack.c.b16 %v2653, %v2651
    %v2728 = vpack.c.b16 %v2654, %v2652
    %v2729 = vpack.c.b16 %v2657, %v2655
    %v2730 = vpack.c.b16 %v2658, %v2656
    %v2731 = vpack.c.b16 %v2661, %v2659
    %v2732 = vpack.c.b16 %v2662, %v2660
    %v2733 = vpack.c.b16 %v2665, %v2663
    %v2734 = vpack.c.b16 %v2666, %v2664
    %v2735 = vpack.c.b16 %v2669, %v2667
    %v2736 = vpack.c.b16 %v2670, %v2668
    %v2737 = vpack.c.b16 %v2673, %v2671
    %v2738 = vpack.c.b16 %v2674, %v2672
    %2803 = vmatpush.bf16.msra.mxu0 %v2689
    %2804 = vmatpush.bf16.msra.mxu0 %v2687
    %2805 = vmatpush.bf16.msra.mxu0 %v2685
    %2806 = vmatpush.bf16.msra.mxu0 %v2683
    %2807 = vmatpush.bf16.msra.mxu0 %v2681
    %2808 = vmatpush.bf16.msra.mxu0 %v2679
    %2809 = vmatpush.bf16.msra.mxu0 %v2677
    %2810 = vmatpush.bf16.msra.mxu0 %v2675
    %2811 = vmatmul.bf16.gmra.mxu0 %v2381
    %v2812 = vpop.f32.mrf.mxu0
    %v2813 = vadd.f32 %v2479, %v2812
    %v2814 = vpop.f32.mrf.mxu0
    %v2815 = vadd.f32 %v2479, %v2814
    %2816 = vmatmul.bf16.gmra.mxu0 %v2385
    %v2817 = vpop.f32.mrf.mxu0
    %v2818 = vadd.f32 %v2479, %v2817
    %v2819 = vpop.f32.mrf.mxu0
    %v2820 = vadd.f32 %v2479, %v2819
    %2821 = vmatmul.bf16.gmra.mxu0 %v2389
    %v2822 = vpop.f32.mrf.mxu0
    %v2823 = vadd.f32 %v2479, %v2822
    %v2824 = vpop.f32.mrf.mxu0
    %v2825 = vadd.f32 %v2479, %v2824
    %2826 = vmatmul.bf16.gmra.mxu0 %v2393
    %v2827 = vpop.f32.mrf.mxu0
    %v2828 = vadd.f32 %v2479, %v2827
    %v2829 = vpop.f32.mrf.mxu0
    %v2830 = vadd.f32 %v2479, %v2829
    %2831 = vmatmul.bf16.gmra.mxu0 %v2397
    %v2832 = vpop.f32.mrf.mxu0
    %v2833 = vadd.f32 %v2479, %v2832
    %v2834 = vpop.f32.mrf.mxu0
    %v2835 = vadd.f32 %v2479, %v2834
    %2836 = vmatmul.bf16.gmra.mxu0 %v2401
    %v2837 = vpop.f32.mrf.mxu0
    %v2838 = vadd.f32 %v2479, %v2837
    %v2839 = vpop.f32.mrf.mxu0
    %v2840 = vadd.f32 %v2479, %v2839
    %2841 = vmatmul.bf16.gmra.mxu0 %v2405
    %v2842 = vpop.f32.mrf.mxu0
    %v2843 = vadd.f32 %v2479, %v2842
    %v2844 = vpop.f32.mrf.mxu0
    %v2845 = vadd.f32 %v2479, %v2844
    %2846 = vmatmul.bf16.gmra.mxu0 %v2409
    %v2847 = vpop.f32.mrf.mxu0
    %v2848 = vadd.f32 %v2479, %v2847
    %v2849 = vpop.f32.mrf.mxu0
    %v2850 = vadd.f32 %v2479, %v2849
    %2851 = vdwg.mxu0
    %2852 = vmatpush.bf16.msra.mxu0 %v2705
    %2853 = vmatpush.bf16.msra.mxu0 %v2703
    %2854 = vmatpush.bf16.msra.mxu0 %v2701
    %2855 = vmatpush.bf16.msra.mxu0 %v2699
    %2856 = vmatpush.bf16.msra.mxu0 %v2697
    %2857 = vmatpush.bf16.msra.mxu0 %v2695
    %2858 = vmatpush.bf16.msra.mxu0 %v2693
    %2859 = vmatpush.bf16.msra.mxu0 %v2691
    %2860 = vmatmul.bf16.gmra.mxu0 %v2382
    %v2861 = vpop.f32.mrf.mxu0
    %v2862 = vadd.f32 %v2813, %v2861
    %v2863 = vpop.f32.mrf.mxu0
    %v2864 = vadd.f32 %v2815, %v2863
    %2865 = vmatmul.bf16.gmra.mxu0 %v2386
    %v2866 = vpop.f32.mrf.mxu0
    %v2867 = vadd.f32 %v2818, %v2866
    %v2868 = vpop.f32.mrf.mxu0
    %v2869 = vadd.f32 %v2820, %v2868
    %2870 = vmatmul.bf16.gmra.mxu0 %v2390
    %v2871 = vpop.f32.mrf.mxu0
    %v2872 = vadd.f32 %v2823, %v2871
    %v2873 = vpop.f32.mrf.mxu0
    %v2874 = vadd.f32 %v2825, %v2873
    %2875 = vmatmul.bf16.gmra.mxu0 %v2394
    %v2876 = vpop.f32.mrf.mxu0
    %v2877 = vadd.f32 %v2828, %v2876
    %v2878 = vpop.f32.mrf.mxu0
    %v2879 = vadd.f32 %v2830, %v2878
    %2880 = vmatmul.bf16.gmra.mxu0 %v2398
    %v2881 = vpop.f32.mrf.mxu0
    %v2882 = vadd.f32 %v2833, %v2881
    %v2883 = vpop.f32.mrf.mxu0
    %v2884 = vadd.f32 %v2835, %v2883
    %2885 = vmatmul.bf16.gmra.mxu0 %v2402
    %v2886 = vpop.f32.mrf.mxu0
    %v2887 = vadd.f32 %v2838, %v2886
    %v2888 = vpop.f32.mrf.mxu0
    %v2889 = vadd.f32 %v2840, %v2888
    %2890 = vmatmul.bf16.gmra.mxu0 %v2406
    %v2891 = vpop.f32.mrf.mxu0
    %v2892 = vadd.f32 %v2843, %v2891
    %v2893 = vpop.f32.mrf.mxu0
    %v2894 = vadd.f32 %v2845, %v2893
    %2895 = vmatmul.bf16.gmra.mxu0 %v2410
    %v2896 = vpop.f32.mrf.mxu0
    %v2897 = vadd.f32 %v2848, %v2896
    %v2898 = vpop.f32.mrf.mxu0
    %v2899 = vadd.f32 %v2850, %v2898
    %2900 = vdwg.mxu0
    %2901 = vmatpush.bf16.msra.mxu0 %v2721
    %2902 = vmatpush.bf16.msra.mxu0 %v2719
    %2903 = vmatpush.bf16.msra.mxu0 %v2717
    %2904 = vmatpush.bf16.msra.mxu0 %v2715
    %2905 = vmatpush.bf16.msra.mxu0 %v2713
    %2906 = vmatpush.bf16.msra.mxu0 %v2711
    %2907 = vmatpush.bf16.msra.mxu0 %v2709
    %2908 = vmatpush.bf16.msra.mxu0 %v2707
    %2909 = vmatmul.bf16.gmra.mxu0 %v2383
    %v2910 = vpop.f32.mrf.mxu0
    %v2911 = vadd.f32 %v2862, %v2910
    %v2912 = vpop.f32.mrf.mxu0
    %v2913 = vadd.f32 %v2864, %v2912
    %2914 = vmatmul.bf16.gmra.mxu0 %v2387
    %v2915 = vpop.f32.mrf.mxu0
    %v2916 = vadd.f32 %v2867, %v2915
    %v2917 = vpop.f32.mrf.mxu0
    %v2918 = vadd.f32 %v2869, %v2917
    %2919 = vmatmul.bf16.gmra.mxu0 %v2391
    %v2920 = vpop.f32.mrf.mxu0
    %v2921 = vadd.f32 %v2872, %v2920
    %v2922 = vpop.f32.mrf.mxu0
    %v2923 = vadd.f32 %v2874, %v2922
    %2924 = vmatmul.bf16.gmra.mxu0 %v2395
    %v2925 = vpop.f32.mrf.mxu0
    %v2926 = vadd.f32 %v2877, %v2925
    %v2927 = vpop.f32.mrf.mxu0
    %v2928 = vadd.f32 %v2879, %v2927
    %2929 = vmatmul.bf16.gmra.mxu0 %v2399
    %v2930 = vpop.f32.mrf.mxu0
    %v2931 = vadd.f32 %v2882, %v2930
    %v2932 = vpop.f32.mrf.mxu0
    %v2933 = vadd.f32 %v2884, %v2932
    %2934 = vmatmul.bf16.gmra.mxu0 %v2403
    %v2935 = vpop.f32.mrf.mxu0
    %v2936 = vadd.f32 %v2887, %v2935
    %v2937 = vpop.f32.mrf.mxu0
    %v2938 = vadd.f32 %v2889, %v2937
    %2939 = vmatmul.bf16.gmra.mxu0 %v2407
    %v2940 = vpop.f32.mrf.mxu0
    %v2941 = vadd.f32 %v2892, %v2940
    %v2942 = vpop.f32.mrf.mxu0
    %v2943 = vadd.f32 %v2894, %v2942
    %2944 = vmatmul.bf16.gmra.mxu0 %v2411
    %v2945 = vpop.f32.mrf.mxu0
    %v2946 = vadd.f32 %v2897, %v2945
    %v2947 = vpop.f32.mrf.mxu0
    %v2948 = vadd.f32 %v2899, %v2947
    %2949 = vdwg.mxu0
    %2950 = vmatpush.bf16.msra.mxu0 %v2737
    %2951 = vmatpush.bf16.msra.mxu0 %v2735
    %2952 = vmatpush.bf16.msra.mxu0 %v2733
    %2953 = vmatpush.bf16.msra.mxu0 %v2731
    %2954 = vmatpush.bf16.msra.mxu0 %v2729
    %2955 = vmatpush.bf16.msra.mxu0 %v2727
    %2956 = vmatpush.bf16.msra.mxu0 %v2725
    %2957 = vmatpush.bf16.msra.mxu0 %v2723
    %2958 = vmatmul.bf16.gmra.mxu0 %v2384
    %v2959 = vpop.f32.mrf.mxu0
    %v2960 = vadd.f32 %v2911, %v2959
    %v2961 = vpop.f32.mrf.mxu0
    %v2962 = vadd.f32 %v2913, %v2961
    %2963 = vmatmul.bf16.gmra.mxu0 %v2388
    %v2964 = vpop.f32.mrf.mxu0
    %v2965 = vadd.f32 %v2916, %v2964
    %v2966 = vpop.f32.mrf.mxu0
    %v2967 = vadd.f32 %v2918, %v2966
    %2968 = vmatmul.bf16.gmra.mxu0 %v2392
    %v2969 = vpop.f32.mrf.mxu0
    %v2970 = vadd.f32 %v2921, %v2969
    %v2971 = vpop.f32.mrf.mxu0
    %v2972 = vadd.f32 %v2923, %v2971
    %2973 = vmatmul.bf16.gmra.mxu0 %v2396
    %v2974 = vpop.f32.mrf.mxu0
    %v2975 = vadd.f32 %v2926, %v2974
    %v2976 = vpop.f32.mrf.mxu0
    %v2977 = vadd.f32 %v2928, %v2976
    %2978 = vmatmul.bf16.gmra.mxu0 %v2400
    %v2979 = vpop.f32.mrf.mxu0
    %v2980 = vadd.f32 %v2931, %v2979
    %v2981 = vpop.f32.mrf.mxu0
    %v2982 = vadd.f32 %v2933, %v2981
    %2983 = vmatmul.bf16.gmra.mxu0 %v2404
    %v2984 = vpop.f32.mrf.mxu0
    %v2985 = vadd.f32 %v2936, %v2984
    %v2986 = vpop.f32.mrf.mxu0
    %v2987 = vadd.f32 %v2938, %v2986
    %2988 = vmatmul.bf16.gmra.mxu0 %v2408
    %v2989 = vpop.f32.mrf.mxu0
    %v2990 = vadd.f32 %v2941, %v2989
    %v2991 = vpop.f32.mrf.mxu0
    %v2992 = vadd.f32 %v2943, %v2991
    %2993 = vmatmul.bf16.gmra.mxu0 %v2412
    %v2994 = vpop.f32.mrf.mxu0
    %v2995 = vadd.f32 %v2946, %v2994
    %v2996 = vpop.f32.mrf.mxu0
    %v2997 = vadd.f32 %v2948, %v2996
    %2998 = vdwg.mxu0
    %2999 = vmatpush.bf16.msra.mxu0 %v2690
    %3000 = vmatpush.bf16.msra.mxu0 %v2688
    %3001 = vmatpush.bf16.msra.mxu0 %v2686
    %3002 = vmatpush.bf16.msra.mxu0 %v2684
    %3003 = vmatpush.bf16.msra.mxu0 %v2682
    %3004 = vmatpush.bf16.msra.mxu0 %v2680
    %3005 = vmatpush.bf16.msra.mxu0 %v2678
    %3006 = vmatpush.bf16.msra.mxu0 %v2676
    %3007 = vmatmul.bf16.gmra.mxu0 %v2381
    %v3008 = vpop.f32.mrf.mxu0
    %v3009 = vadd.f32 %v2480, %v3008
    %v3010 = vpop.f32.mrf.mxu0
    %v3011 = vadd.f32 %v2480, %v3010
    %3012 = vmatmul.bf16.gmra.mxu0 %v2385
    %v3013 = vpop.f32.mrf.mxu0
    %v3014 = vadd.f32 %v2480, %v3013
    %v3015 = vpop.f32.mrf.mxu0
    %v3016 = vadd.f32 %v2480, %v3015
    %3017 = vmatmul.bf16.gmra.mxu0 %v2389
    %v3018 = vpop.f32.mrf.mxu0
    %v3019 = vadd.f32 %v2480, %v3018
    %v3020 = vpop.f32.mrf.mxu0
    %v3021 = vadd.f32 %v2480, %v3020
    %3022 = vmatmul.bf16.gmra.mxu0 %v2393
    %v3023 = vpop.f32.mrf.mxu0
    %v3024 = vadd.f32 %v2480, %v3023
    %v3025 = vpop.f32.mrf.mxu0
    %v3026 = vadd.f32 %v2480, %v3025
    %3027 = vmatmul.bf16.gmra.mxu0 %v2397
    %v3028 = vpop.f32.mrf.mxu0
    %v3029 = vadd.f32 %v2480, %v3028
    %v3030 = vpop.f32.mrf.mxu0
    %v3031 = vadd.f32 %v2480, %v3030
    %3032 = vmatmul.bf16.gmra.mxu0 %v2401
    %v3033 = vpop.f32.mrf.mxu0
    %v3034 = vadd.f32 %v2480, %v3033
    %v3035 = vpop.f32.mrf.mxu0
    %v3036 = vadd.f32 %v2480, %v3035
    %3037 = vmatmul.bf16.gmra.mxu0 %v2405
    %v3038 = vpop.f32.mrf.mxu0
    %v3039 = vadd.f32 %v2480, %v3038
    %v3040 = vpop.f32.mrf.mxu0
    %v3041 = vadd.f32 %v2480, %v3040
    %3042 = vmatmul.bf16.gmra.mxu0 %v2409
    %v3043 = vpop.f32.mrf.mxu0
    %v3044 = vadd.f32 %v2480, %v3043
    %v3045 = vpop.f32.mrf.mxu0
    %v3046 = vadd.f32 %v2480, %v3045
    %3047 = vdwg.mxu0
    %3048 = vmatpush.bf16.msra.mxu0 %v2706
    %3049 = vmatpush.bf16.msra.mxu0 %v2704
    %3050 = vmatpush.bf16.msra.mxu0 %v2702
    %3051 = vmatpush.bf16.msra.mxu0 %v2700
    %3052 = vmatpush.bf16.msra.mxu0 %v2698
    %3053 = vmatpush.bf16.msra.mxu0 %v2696
    %3054 = vmatpush.bf16.msra.mxu0 %v2694
    %3055 = vmatpush.bf16.msra.mxu0 %v2692
    %3056 = vmatmul.bf16.gmra.mxu0 %v2382
    %v3057 = vpop.f32.mrf.mxu0
    %v3058 = vadd.f32 %v3009, %v3057
    %v3059 = vpop.f32.mrf.mxu0
    %v3060 = vadd.f32 %v3011, %v3059
    %3061 = vmatmul.bf16.gmra.mxu0 %v2386
    %v3062 = vpop.f32.mrf.mxu0
    %v3063 = vadd.f32 %v3014, %v3062
    %v3064 = vpop.f32.mrf.mxu0
    %v3065 = vadd.f32 %v3016, %v3064
    %3066 = vmatmul.bf16.gmra.mxu0 %v2390
    %v3067 = vpop.f32.mrf.mxu0
    %v3068 = vadd.f32 %v3019, %v3067
    %v3069 = vpop.f32.mrf.mxu0
    %v3070 = vadd.f32 %v3021, %v3069
    %3071 = vmatmul.bf16.gmra.mxu0 %v2394
    %v3072 = vpop.f32.mrf.mxu0
    %v3073 = vadd.f32 %v3024, %v3072
    %v3074 = vpop.f32.mrf.mxu0
    %v3075 = vadd.f32 %v3026, %v3074
    %3076 = vmatmul.bf16.gmra.mxu0 %v2398
    %v3077 = vpop.f32.mrf.mxu0
    %v3078 = vadd.f32 %v3029, %v3077
    %v3079 = vpop.f32.mrf.mxu0
    %v3080 = vadd.f32 %v3031, %v3079
    %3081 = vmatmul.bf16.gmra.mxu0 %v2402
    %v3082 = vpop.f32.mrf.mxu0
    %v3083 = vadd.f32 %v3034, %v3082
    %v3084 = vpop.f32.mrf.mxu0
    %v3085 = vadd.f32 %v3036, %v3084
    %3086 = vmatmul.bf16.gmra.mxu0 %v2406
    %v3087 = vpop.f32.mrf.mxu0
    %v3088 = vadd.f32 %v3039, %v3087
    %v3089 = vpop.f32.mrf.mxu0
    %v3090 = vadd.f32 %v3041, %v3089
    %3091 = vmatmul.bf16.gmra.mxu0 %v2410
    %v3092 = vpop.f32.mrf.mxu0
    %v3093 = vadd.f32 %v3044, %v3092
    %v3094 = vpop.f32.mrf.mxu0
    %v3095 = vadd.f32 %v3046, %v3094
    %3096 = vdwg.mxu0
    %3097 = vmatpush.bf16.msra.mxu0 %v2722
    %3098 = vmatpush.bf16.msra.mxu0 %v2720
    %3099 = vmatpush.bf16.msra.mxu0 %v2718
    %3100 = vmatpush.bf16.msra.mxu0 %v2716
    %3101 = vmatpush.bf16.msra.mxu0 %v2714
    %3102 = vmatpush.bf16.msra.mxu0 %v2712
    %3103 = vmatpush.bf16.msra.mxu0 %v2710
    %3104 = vmatpush.bf16.msra.mxu0 %v2708
    %3105 = vmatmul.bf16.gmra.mxu0 %v2383
    %v3106 = vpop.f32.mrf.mxu0
    %v3107 = vadd.f32 %v3058, %v3106
    %v3108 = vpop.f32.mrf.mxu0
    %v3109 = vadd.f32 %v3060, %v3108
    %3110 = vmatmul.bf16.gmra.mxu0 %v2387
    %v3111 = vpop.f32.mrf.mxu0
    %v3112 = vadd.f32 %v3063, %v3111
    %v3113 = vpop.f32.mrf.mxu0
    %v3114 = vadd.f32 %v3065, %v3113
    %3115 = vmatmul.bf16.gmra.mxu0 %v2391
    %v3116 = vpop.f32.mrf.mxu0
    %v3117 = vadd.f32 %v3068, %v3116
    %v3118 = vpop.f32.mrf.mxu0
    %v3119 = vadd.f32 %v3070, %v3118
    %3120 = vmatmul.bf16.gmra.mxu0 %v2395
    %v3121 = vpop.f32.mrf.mxu0
    %v3122 = vadd.f32 %v3073, %v3121
    %v3123 = vpop.f32.mrf.mxu0
    %v3124 = vadd.f32 %v3075, %v3123
    %3125 = vmatmul.bf16.gmra.mxu0 %v2399
    %v3126 = vpop.f32.mrf.mxu0
    %v3127 = vadd.f32 %v3078, %v3126
    %v3128 = vpop.f32.mrf.mxu0
    %v3129 = vadd.f32 %v3080, %v3128
    %3130 = vmatmul.bf16.gmra.mxu0 %v2403
    %v3131 = vpop.f32.mrf.mxu0
    %v3132 = vadd.f32 %v3083, %v3131
    %v3133 = vpop.f32.mrf.mxu0
    %v3134 = vadd.f32 %v3085, %v3133
    %3135 = vmatmul.bf16.gmra.mxu0 %v2407
    %v3136 = vpop.f32.mrf.mxu0
    %v3137 = vadd.f32 %v3088, %v3136
    %v3138 = vpop.f32.mrf.mxu0
    %v3139 = vadd.f32 %v3090, %v3138
    %3140 = vmatmul.bf16.gmra.mxu0 %v2411
    %v3141 = vpop.f32.mrf.mxu0
    %v3142 = vadd.f32 %v3093, %v3141
    %v3143 = vpop.f32.mrf.mxu0
    %v3144 = vadd.f32 %v3095, %v3143
    %3145 = vdwg.mxu0
    %3146 = vmatpush.bf16.msra.mxu0 %v2738
    %3147 = vmatpush.bf16.msra.mxu0 %v2736
    %3148 = vmatpush.bf16.msra.mxu0 %v2734
    %3149 = vmatpush.bf16.msra.mxu0 %v2732
    %3150 = vmatpush.bf16.msra.mxu0 %v2730
    %3151 = vmatpush.bf16.msra.mxu0 %v2728
    %3152 = vmatpush.bf16.msra.mxu0 %v2726
    %3153 = vmatpush.bf16.msra.mxu0 %v2724
    %3154 = vmatmul.bf16.gmra.mxu0 %v2384
    %v3155 = vpop.f32.mrf.mxu0
    %v3156 = vadd.f32 %v3107, %v3155
    %v3157 = vpop.f32.mrf.mxu0
    %v3158 = vadd.f32 %v3109, %v3157
    %3159 = vmatmul.bf16.gmra.mxu0 %v2388
    %v3160 = vpop.f32.mrf.mxu0
    %v3161 = vadd.f32 %v3112, %v3160
    %v3162 = vpop.f32.mrf.mxu0
    %v3163 = vadd.f32 %v3114, %v3162
    %3164 = vmatmul.bf16.gmra.mxu0 %v2392
    %v3165 = vpop.f32.mrf.mxu0
    %v3166 = vadd.f32 %v3117, %v3165
    %v3167 = vpop.f32.mrf.mxu0
    %v3168 = vadd.f32 %v3119, %v3167
    %3169 = vmatmul.bf16.gmra.mxu0 %v2396
    %v3170 = vpop.f32.mrf.mxu0
    %v3171 = vadd.f32 %v3122, %v3170
    %v3172 = vpop.f32.mrf.mxu0
    %v3173 = vadd.f32 %v3124, %v3172
    %3174 = vmatmul.bf16.gmra.mxu0 %v2400
    %v3175 = vpop.f32.mrf.mxu0
    %v3176 = vadd.f32 %v3127, %v3175
    %v3177 = vpop.f32.mrf.mxu0
    %v3178 = vadd.f32 %v3129, %v3177
    %3179 = vmatmul.bf16.gmra.mxu0 %v2404
    %v3180 = vpop.f32.mrf.mxu0
    %v3181 = vadd.f32 %v3132, %v3180
    %v3182 = vpop.f32.mrf.mxu0
    %v3183 = vadd.f32 %v3134, %v3182
    %3184 = vmatmul.bf16.gmra.mxu0 %v2408
    %v3185 = vpop.f32.mrf.mxu0
    %v3186 = vadd.f32 %v3137, %v3185
    %v3187 = vpop.f32.mrf.mxu0
    %v3188 = vadd.f32 %v3139, %v3187
    %3189 = vmatmul.bf16.gmra.mxu0 %v2412
    %v3190 = vpop.f32.mrf.mxu0
    %v3191 = vadd.f32 %v3142, %v3190
    %v3192 = vpop.f32.mrf.mxu0
    %v3193 = vadd.f32 %v3144, %v3192
    %3194 = vdwg.mxu0
    %v3195 = vmax.f32 %v2960, 0.0
    %v3196 = vmax.f32 %v3156, 0.0
    %v3197 = vmax.f32 %v2962, 0.0
    %v3198 = vmax.f32 %v3158, 0.0
    %v3199 = vmax.f32 %v2965, 0.0
    %v3200 = vmax.f32 %v3161, 0.0
    %v3201 = vmax.f32 %v2967, 0.0
    %v3202 = vmax.f32 %v3163, 0.0
    %v3203 = vmax.f32 %v2970, 0.0
    %v3204 = vmax.f32 %v3166, 0.0
    %v3205 = vmax.f32 %v2972, 0.0
    %v3206 = vmax.f32 %v3168, 0.0
    %v3207 = vmax.f32 %v2975, 0.0
    %v3208 = vmax.f32 %v3171, 0.0
    %v3209 = vmax.f32 %v2977, 0.0
    %v3210 = vmax.f32 %v3173, 0.0
    %v3211 = vmax.f32 %v2980, 0.0
    %v3212 = vmax.f32 %v3176, 0.0
    %v3213 = vmax.f32 %v2982, 0.0
    %v3214 = vmax.f32 %v3178, 0.0
    %v3215 = vmax.f32 %v2985, 0.0
    %v3216 = vmax.f32 %v3181, 0.0
    %v3217 = vmax.f32 %v2987, 0.0
    %v3218 = vmax.f32 %v3183, 0.0
    %v3219 = vmax.f32 %v2990, 0.0
    %v3220 = vmax.f32 %v3186, 0.0
    %v3221 = vmax.f32 %v2992, 0.0
    %v3222 = vmax.f32 %v3188, 0.0
    %v3223 = vmax.f32 %v2995, 0.0
    %v3224 = vmax.f32 %v3191, 0.0
    %v3225 = vmax.f32 %v2997, 0.0
    %v3226 = vmax.f32 %v3193, 0.0
    %v3227 = vpack.c.bf16 %v3197, %v3195
    %v3228 = vpack.c.bf16 %v3198, %v3196
    %v3229 = vpack.c.bf16 %v3201, %v3199
    %v3230 = vpack.c.bf16 %v3202, %v3200
    %v3231 = vpack.c.bf16 %v3205, %v3203
    %v3232 = vpack.c.bf16 %v3206, %v3204
    %v3233 = vpack.c.bf16 %v3209, %v3207
    %v3234 = vpack.c.bf16 %v3210, %v3208
    %v3235 = vpack.c.bf16 %v3213, %v3211
    %v3236 = vpack.c.bf16 %v3214, %v3212
    %v3237 = vpack.c.bf16 %v3217, %v3215
    %v3238 = vpack.c.bf16 %v3218, %v3216
    %v3239 = vpack.c.bf16 %v3221, %v3219
    %v3240 = vpack.c.bf16 %v3222, %v3220
    %v3241 = vpack.c.bf16 %v3225, %v3223
    %v3242 = vpack.c.bf16 %v3226, %v3224
    %v3243 = vld [vmem:[#allocation12] sm:$0xf]
    %v3244 = vld [vmem:[#allocation12 + $0x4] sm:$0xf]
    %v3245 = vld [vmem:[#allocation12 + $0x8] sm:$0xf]
    %v3246 = vld [vmem:[#allocation12 + $0xc] sm:$0xf]
    %v3247 = vld [vmem:[#allocation12 + $0x10] sm:$0xf]
    %v3248 = vld [vmem:[#allocation12 + $0x14] sm:$0xf]
    %v3249 = vld [vmem:[#allocation12 + $0x18] sm:$0xf]
    %v3250 = vld [vmem:[#allocation12 + $0x1c] sm:$0xf]
    %v3251 = vld [vmem:[#allocation12 + $0x20] sm:$0xf]
    %v3252 = vld [vmem:[#allocation12 + $0x24] sm:$0xf]
    %v3253 = vld [vmem:[#allocation12 + $0x28] sm:$0xf]
    %v3254 = vld [vmem:[#allocation12 + $0x2c] sm:$0xf]
    %v3255 = vld [vmem:[#allocation12 + $0x30] sm:$0xf]
    %v3256 = vld [vmem:[#allocation12 + $0x34] sm:$0xf]
    %v3257 = vld [vmem:[#allocation12 + $0x38] sm:$0xf]
    %v3258 = vld [vmem:[#allocation12 + $0x3c] sm:$0xf]
    %v3259 = vld [vmem:[#allocation12 + $0x40] sm:$0xf]
    %v3260 = vld [vmem:[#allocation12 + $0x44] sm:$0xf]
    %v3261 = vld [vmem:[#allocation12 + $0x48] sm:$0xf]
    %v3262 = vld [vmem:[#allocation12 + $0x4c] sm:$0xf]
    %v3263 = vld [vmem:[#allocation12 + $0x50] sm:$0xf]
    %v3264 = vld [vmem:[#allocation12 + $0x54] sm:$0xf]
    %v3265 = vld [vmem:[#allocation12 + $0x58] sm:$0xf]
    %v3266 = vld [vmem:[#allocation12 + $0x5c] sm:$0xf]
    %v3267 = vld [vmem:[#allocation12 + $0x60] sm:$0xf]
    %v3268 = vld [vmem:[#allocation12 + $0x64] sm:$0xf]
    %v3269 = vld [vmem:[#allocation12 + $0x68] sm:$0xf]
    %v3270 = vld [vmem:[#allocation12 + $0x6c] sm:$0xf]
    %v3271 = vld [vmem:[#allocation12 + $0x70] sm:$0xf]
    %v3272 = vld [vmem:[#allocation12 + $0x74] sm:$0xf]
    %v3273 = vld [vmem:[#allocation12 + $0x78] sm:$0xf]
    %v3274 = vld [vmem:[#allocation12 + $0x7c] sm:$0xf]
    %v3275 = vld [vmem:[%s7] sm:$0x1]
    %v3277 = vperm.slane %v3275, 0
    %v3311 = vunpack.c.l.b16 %v3243
    %v3312 = vunpack.c.l.b16 %v3244
    %v3313 = vunpack.c.l.b16 %v3245
    %v3314 = vunpack.c.l.b16 %v3246
    %v3315 = vunpack.c.l.b16 %v3247
    %v3316 = vunpack.c.l.b16 %v3248
    %v3317 = vunpack.c.l.b16 %v3249
    %v3318 = vunpack.c.l.b16 %v3250
    %v3319 = vunpack.c.l.b16 %v3251
    %v3320 = vunpack.c.l.b16 %v3252
    %v3321 = vunpack.c.l.b16 %v3253
    %v3322 = vunpack.c.l.b16 %v3254
    %v3323 = vunpack.c.l.b16 %v3255
    %v3324 = vunpack.c.l.b16 %v3256
    %v3325 = vunpack.c.l.b16 %v3257
    %v3326 = vunpack.c.l.b16 %v3258
    %v3327 = vunpack.c.l.b16 %v3259
    %v3328 = vunpack.c.l.b16 %v3260
    %v3329 = vunpack.c.l.b16 %v3261
    %v3330 = vunpack.c.l.b16 %v3262
    %v3331 = vunpack.c.l.b16 %v3263
    %v3332 = vunpack.c.l.b16 %v3264
    %v3333 = vunpack.c.l.b16 %v3265
    %v3334 = vunpack.c.l.b16 %v3266
    %v3335 = vunpack.c.l.b16 %v3267
    %v3336 = vunpack.c.l.b16 %v3268
    %v3337 = vunpack.c.l.b16 %v3269
    %v3338 = vunpack.c.l.b16 %v3270
    %v3339 = vunpack.c.l.b16 %v3271
    %v3340 = vunpack.c.l.b16 %v3272
    %v3341 = vunpack.c.l.b16 %v3273
    %v3342 = vunpack.c.l.b16 %v3274
    %v3343 = vpack.c.b16 %v3312, %v3311
    %v3344 = vpack.c.b16 %v3314, %v3313
    %v3345 = vpack.c.b16 %v3316, %v3315
    %v3346 = vpack.c.b16 %v3318, %v3317
    %v3347 = vpack.c.b16 %v3320, %v3319
    %v3348 = vpack.c.b16 %v3322, %v3321
    %v3349 = vpack.c.b16 %v3324, %v3323
    %v3350 = vpack.c.b16 %v3326, %v3325
    %v3351 = vpack.c.b16 %v3328, %v3327
    %v3352 = vpack.c.b16 %v3330, %v3329
    %v3353 = vpack.c.b16 %v3332, %v3331
    %v3354 = vpack.c.b16 %v3334, %v3333
    %v3355 = vpack.c.b16 %v3336, %v3335
    %v3356 = vpack.c.b16 %v3338, %v3337
    %v3357 = vpack.c.b16 %v3340, %v3339
    %v3358 = vpack.c.b16 %v3342, %v3341
    %3375 = vmatpush.bf16.msra.mxu0 %v3350
    %3376 = vmatpush.bf16.msra.mxu0 %v3349
    %3377 = vmatpush.bf16.msra.mxu0 %v3348
    %3378 = vmatpush.bf16.msra.mxu0 %v3347
    %3379 = vmatpush.bf16.msra.mxu0 %v3346
    %3380 = vmatpush.bf16.msra.mxu0 %v3345
    %3381 = vmatpush.bf16.msra.mxu0 %v3344
    %3382 = vmatpush.bf16.msra.mxu0 %v3343
    %3383 = vmatmul.bf16.gmra.mxu0 %v3227
    %v3384 = vpop.f32.mrf.mxu0
    %v3385 = vadd.f32 %v3277, %v3384
    %v3386 = vpop.f32.mrf.mxu0
    %v3387 = vadd.f32 %v3277, %v3386
    %3388 = vmatmul.bf16.gmra.mxu0 %v3229
    %v3389 = vpop.f32.mrf.mxu0
    %v3390 = vadd.f32 %v3277, %v3389
    %v3391 = vpop.f32.mrf.mxu0
    %v3392 = vadd.f32 %v3277, %v3391
    %3393 = vmatmul.bf16.gmra.mxu0 %v3231
    %v3394 = vpop.f32.mrf.mxu0
    %v3395 = vadd.f32 %v3277, %v3394
    %v3396 = vpop.f32.mrf.mxu0
    %v3397 = vadd.f32 %v3277, %v3396
    %3398 = vmatmul.bf16.gmra.mxu0 %v3233
    %v3399 = vpop.f32.mrf.mxu0
    %v3400 = vadd.f32 %v3277, %v3399
    %v3401 = vpop.f32.mrf.mxu0
    %v3402 = vadd.f32 %v3277, %v3401
    %3403 = vmatmul.bf16.gmra.mxu0 %v3235
    %v3404 = vpop.f32.mrf.mxu0
    %v3405 = vadd.f32 %v3277, %v3404
    %v3406 = vpop.f32.mrf.mxu0
    %v3407 = vadd.f32 %v3277, %v3406
    %3408 = vmatmul.bf16.gmra.mxu0 %v3237
    %v3409 = vpop.f32.mrf.mxu0
    %v3410 = vadd.f32 %v3277, %v3409
    %v3411 = vpop.f32.mrf.mxu0
    %v3412 = vadd.f32 %v3277, %v3411
    %3413 = vmatmul.bf16.gmra.mxu0 %v3239
    %v3414 = vpop.f32.mrf.mxu0
    %v3415 = vadd.f32 %v3277, %v3414
    %v3416 = vpop.f32.mrf.mxu0
    %v3417 = vadd.f32 %v3277, %v3416
    %3418 = vmatmul.bf16.gmra.mxu0 %v3241
    %v3419 = vpop.f32.mrf.mxu0
    %v3420 = vadd.f32 %v3277, %v3419
    %v3421 = vpop.f32.mrf.mxu0
    %v3422 = vadd.f32 %v3277, %v3421
    %3423 = vdwg.mxu0
    %3424 = vmatpush.bf16.msra.mxu0 %v3358
    %3425 = vmatpush.bf16.msra.mxu0 %v3357
    %3426 = vmatpush.bf16.msra.mxu0 %v3356
    %3427 = vmatpush.bf16.msra.mxu0 %v3355
    %3428 = vmatpush.bf16.msra.mxu0 %v3354
    %3429 = vmatpush.bf16.msra.mxu0 %v3353
    %3430 = vmatpush.bf16.msra.mxu0 %v3352
    %3431 = vmatpush.bf16.msra.mxu0 %v3351
    %3432 = vmatmul.bf16.gmra.mxu0 %v3228
    %v3433 = vpop.f32.mrf.mxu0
    %v3434 = vadd.f32 %v3385, %v3433
    %v3435 = vpop.f32.mrf.mxu0
    %v3436 = vadd.f32 %v3387, %v3435
    %3437 = vmatmul.bf16.gmra.mxu0 %v3230
    %v3438 = vpop.f32.mrf.mxu0
    %v3439 = vadd.f32 %v3390, %v3438
    %v3440 = vpop.f32.mrf.mxu0
    %v3441 = vadd.f32 %v3392, %v3440
    %3442 = vmatmul.bf16.gmra.mxu0 %v3232
    %v3443 = vpop.f32.mrf.mxu0
    %v3444 = vadd.f32 %v3395, %v3443
    %v3445 = vpop.f32.mrf.mxu0
    %v3446 = vadd.f32 %v3397, %v3445
    %3447 = vmatmul.bf16.gmra.mxu0 %v3234
    %v3448 = vpop.f32.mrf.mxu0
    %v3449 = vadd.f32 %v3400, %v3448
    %v3450 = vpop.f32.mrf.mxu0
    %v3451 = vadd.f32 %v3402, %v3450
    %3452 = vmatmul.bf16.gmra.mxu0 %v3236
    %v3453 = vpop.f32.mrf.mxu0
    %v3454 = vadd.f32 %v3405, %v3453
    %v3455 = vpop.f32.mrf.mxu0
    %v3456 = vadd.f32 %v3407, %v3455
    %3457 = vmatmul.bf16.gmra.mxu0 %v3238
    %v3458 = vpop.f32.mrf.mxu0
    %v3459 = vadd.f32 %v3410, %v3458
    %v3460 = vpop.f32.mrf.mxu0
    %v3461 = vadd.f32 %v3412, %v3460
    %3462 = vmatmul.bf16.gmra.mxu0 %v3240
    %v3463 = vpop.f32.mrf.mxu0
    %v3464 = vadd.f32 %v3415, %v3463
    %v3465 = vpop.f32.mrf.mxu0
    %v3466 = vadd.f32 %v3417, %v3465
    %3467 = vmatmul.bf16.gmra.mxu0 %v3242
    %v3468 = vpop.f32.mrf.mxu0
    %v3469 = vadd.f32 %v3420, %v3468
    %v3470 = vpop.f32.mrf.mxu0
    %v3471 = vadd.f32 %v3422, %v3470
    %3472 = vdwg.mxu0
    %3473 = vst [vmem:[%s10] sm:$0xff] %v3434
    %3474 = vst [vmem:[%s10 + $0x8] sm:$0xff] %v3436
    %3475 = vst [vmem:[%s10 + $0x10] sm:$0xff] %v3439
    %3476 = vst [vmem:[%s10 + $0x18] sm:$0xff] %v3441
    %3477 = vst [vmem:[%s10 + $0x20] sm:$0xff] %v3444
    %3478 = vst [vmem:[%s10 + $0x28] sm:$0xff] %v3446
    %3479 = vst [vmem:[%s10 + $0x30] sm:$0xff] %v3449
    %3480 = vst [vmem:[%s10 + $0x38] sm:$0xff] %v3451
    %3481 = vst [vmem:[%s10 + $0x40] sm:$0xff] %v3454
    %3482 = vst [vmem:[%s10 + $0x48] sm:$0xff] %v3456
    %3483 = vst [vmem:[%s10 + $0x50] sm:$0xff] %v3459
    %3484 = vst [vmem:[%s10 + $0x58] sm:$0xff] %v3461
    %3485 = vst [vmem:[%s10 + $0x60] sm:$0xff] %v3464
    %3486 = vst [vmem:[%s10 + $0x68] sm:$0xff] %v3466
    %3487 = vst [vmem:[%s10 + $0x70] sm:$0xff] %v3469
    %3488 = vst [vmem:[%s10 + $0x78] sm:$0xff] %v3471
    // Predicated region
    $region54: #{_forward_impl.2} parent=1 // pred_check
      _
    $region55: #{_forward_impl.2} parent=1 // pred_check_branch
      %3490 = sbr.rel (0) target = $region57
    $region56: #{_forward_impl.2} parent=1 // pred_region
      _
    $region57: #{_forward_impl.2} parent=1 // pred_fallthru
      _
    // Predicated region
    $region58: #{_forward_impl.2} parent=1 // pred_check
      _
    $region59: #{_forward_impl.2} parent=1 // pred_check_branch
      %3492 = sbr.rel (0) target = $region61
    $region60: #{_forward_impl.2} parent=1 // pred_region
      _
    $region61: #{_forward_impl.2} parent=1 // pred_fallthru
      _
    %3493 = vsyncpa [#allocation8], 1
    %3494 = vsyncpa [#allocation10], 1
    %3495 = vsyncpa [#allocation13], 1

</llo_original>
